<compile_context>
chip_gen: v7x
topology: tpu7x:2x2x1
jax: 0.10.0
libtpu: 0.0.40
codegen_flags: <defaults>
</compile_context>

<pallas_src>
import math
from functools import partial

import jax
import jax.numpy as jnp
from jax.experimental import pallas as pl
from jax.experimental.pallas import tpu as pltpu


def _round_up(x, m):
    return (x + m - 1) // m * m


# ----------------------------------------------------------------------------
# Fused kernel: conv3x3 -> BN -> ReLU -> conv3x3 -> BN -> ReLU
# Layout: (channels on sublanes, flattened padded pixels T on lanes), T % 128 == 0.
# ----------------------------------------------------------------------------
def _unet_block_kernel(x_ref, mask_ref, w1_ref, g1_ref, b1_ref,
                       w2_ref, g2_ref, b2_ref, o_ref,
                       *, shifts, inv_count, eps):
    mask = mask_ref[...]                      # (1, T): 1.0 at valid (non-padding) pixels

    def conv3x3(xv, w_ref):
        # xv: (Cin, T). Each of the 9 taps is a lane rotation (XLU) of the padded
        # canvas followed by an MXU matmul, accumulated in f32.
        acc = None
        for t, s in enumerate(shifts):
            xs = pltpu.roll(xv, s, axis=1) if s else xv
            p = jnp.dot(w_ref[t], xs, preferred_element_type=jnp.float32)
            acc = p if acc is None else acc + p
        return acc                            # (Cout, T)

    def bn_relu(y, gamma, beta):
        # Training-mode BatchNorm: biased batch stats over the valid pixels only.
        mean = jnp.sum(y * mask, axis=1, keepdims=True) * inv_count
        d = (y - mean) * mask
        var = jnp.sum(d * d, axis=1, keepdims=True) * inv_count
        yn = (y - mean) * jax.lax.rsqrt(var + eps)
        return jnp.maximum(yn * gamma + beta, 0.0)

    # conv1 -> bn1 -> relu ; re-mask so canvas padding / lane filler stay exactly 0
    f1 = bn_relu(conv3x3(x_ref[...], w1_ref), g1_ref[...], b1_ref[...]) * mask
    # conv2 -> bn2 -> relu  (intermediate f1 never leaves VMEM)
    o_ref[...] = bn_relu(conv3x3(f1, w2_ref), g2_ref[...], b2_ref[...]) * mask


# ----------------------------------------------------------------------------
# Wrapper: layout plumbing (XLA) + single pallas_call
# ----------------------------------------------------------------------------
def unet_block_forward(x_nchw, params, eps=1e-5):
    """UNetBlock forward (batch_norm + ReLU), input/output in NCHW."""
    N, Cin, H, W = x_nchw.shape
    Hp, Wp = H + 2, W + 2
    S = _round_up(Hp * Wp, 128)     # per-image flat stride, lane aligned
    T = N * S
    w1_t = params["conv1"]["w"]
    w2_t = params["conv2"]["w"]
    Cout1, Cout2 = w1_t.shape[0], w2_t.shape[0]
    # TODO(synk): grouped convolution (conv_group > 1), group/instance norm and
    # non-ReLU activations are not implemented; the tested config uses groups=1,
    # batch_norm and ReLU (in_channels < 8 forces group1 = 1 in the reference).

    # ---- layout plumbing: NCHW -> channel-major flattened zero-padded canvas ----
    xp = jnp.pad(x_nchw, ((0, 0), (0, 0), (1, 1), (1, 1)))          # (N, Cin, Hp, Wp)
    xflat = jnp.transpose(xp, (1, 0, 2, 3)).reshape(Cin, N, Hp * Wp)
    xflat = jnp.pad(xflat, ((0, 0), (0, 0), (0, S - Hp * Wp))).reshape(Cin, T)

    mrow = jnp.zeros((Hp, Wp), jnp.float32).at[1:1 + H, 1:1 + W].set(1.0).reshape(-1)
    mrow = jnp.pad(mrow, (0, S - Hp * Wp))
    mask = jnp.tile(mrow, N).reshape(1, T)

    # 3x3 taps: (Cout, Cin, 3, 3) -> (9, Cout, Cin), tap index t = kh * 3 + kw.
    def taps(w):
        return jnp.transpose(w, (2, 3, 0, 1)).reshape(9, w.shape[0], w.shape[1])

    w1 = taps(w1_t.astype(jnp.float32))
    w2 = taps(w2_t.astype(jnp.float32))
    g1 = params["bn1"]["gamma"].reshape(Cout1, 1).astype(jnp.float32)
    b1 = params["bn1"]["beta"].reshape(Cout1, 1).astype(jnp.float32)
    g2 = params["bn2"]["gamma"].reshape(Cout2, 1).astype(jnp.float32)
    b2 = params["bn2"]["beta"].reshape(Cout2, 1).astype(jnp.float32)
    # NOTE: conv biases are intentionally not passed: with batch-stat BatchNorm the
    # per-channel bias is cancelled exactly by the mean subtraction.

    # Lane-roll amount for tap (kh, kw): output pixel q reads canvas pixel
    # q + (kh-1)*Wp + (kw-1), i.e. roll the canvas by the negated offset (mod T).
    shifts = tuple((-((kh - 1) * Wp + (kw - 1))) % T
                   for kh in range(3) for kw in range(3))

    kernel = partial(_unet_block_kernel, shifts=shifts,
                     inv_count=1.0 / float(N * H * W), eps=eps)

    def full(shape):
        return pl.BlockSpec(shape, lambda i, n=len(shape): (0,) * n)

    args = (xflat, mask, w1, g1, b1, w2, g2, b2)
    y = pl.pallas_call(
        kernel,
        out_shape=jax.ShapeDtypeStruct((Cout2, T), jnp.float32),
        grid=(1,),
        in_specs=[full(a.shape) for a in args],
        out_specs=full((Cout2, T)),
        compiler_params=pltpu.CompilerParams(dimension_semantics=("arbitrary",)),
    )(*args)

    # (Cout2, T) -> NCHW, dropping the 1-pixel canvas padding and the lane filler.
    y = y.reshape(Cout2, N, S)[:, :, :Hp * Wp].reshape(Cout2, N, Hp, Wp)
    y = y[:, :, 1:1 + H, 1:1 + W]
    return jnp.transpose(y, (1, 0, 2, 3))


# ----------------------------------------------------------------------------
# Pure-JAX reference (mirrors the PyTorch UNetBlock forward, training-mode BN)
# ----------------------------------------------------------------------------
def unet_block_reference(x, params, eps=1e-5):
    def conv_bn_relu(x, conv, bn):
        y = jax.lax.conv_general_dilated(
            x, conv["w"], window_strides=(1, 1), padding="SAME",
            dimension_numbers=("NCHW", "OIHW", "NCHW"),
            precision=jax.lax.Precision.HIGHEST)
        y = y + conv["b"].reshape(1, -1, 1, 1)
        mean = jnp.mean(y, axis=(0, 2, 3), keepdims=True)
        var = jnp.mean((y - mean) ** 2, axis=(0, 2, 3), keepdims=True)
        yn = (y - mean) * jax.lax.rsqrt(var + eps)
        return jnp.maximum(yn * bn["gamma"].reshape(1, -1, 1, 1)
                           + bn["beta"].reshape(1, -1, 1, 1), 0.0)

    f1 = conv_bn_relu(x, params["conv1"], params["bn1"])
    return conv_bn_relu(f1, params["conv2"], params["bn2"])


# ----------------------------------------------------------------------------
# Deterministic parameter init
# ----------------------------------------------------------------------------
def init_unet_block_params(key, in_chns, out_chns):
    ks = jax.random.split(key, 4)

    def conv(k, cin, cout):
        kw, kb = jax.random.split(k)
        bound = 1.0 / math.sqrt(cin * 9)
        return {"w": jax.random.uniform(kw, (cout, cin, 3, 3), jnp.float32, -bound, bound),
                "b": jax.random.uniform(kb, (cout,), jnp.float32, -bound, bound)}

    def bn(k, c):
        kg, kb = jax.random.split(k)
        return {"gamma": 1.0 + 0.1 * jax.random.normal(kg, (c,), jnp.float32),
                "beta": 0.1 * jax.random.normal(kb, (c,), jnp.float32)}

    return {"conv1": conv(ks[0], in_chns, out_chns), "bn1": bn(ks[1], out_chns),
            "conv2": conv(ks[2], out_chns, out_chns), "bn2": bn(ks[3], out_chns)}


# ----------------------------------------------------------------------------
if __name__ == "__main__":
    key = jax.random.PRNGKey(0)
    kp, kx = jax.random.split(key)

    N, Cin, Cout, H, W = 2, 4, 8, 16, 16
    params = init_unet_block_params(kp, Cin, Cout)
    x = jax.random.normal(kx, (N, Cin, H, W), jnp.float32)

    fwd = jax.jit(partial(unet_block_forward, params=params))
    y = fwd(x)
    jax.block_until_ready(y)

    y_ref = unet_block_reference(x, params)
    jax.block_until_ready(y_ref)

    assert y.shape == (N, Cout, H, W)
    assert bool(jnp.all(jnp.isfinite(y)))
    max_err = float(jnp.max(jnp.abs(y - y_ref)))
    # Loose tolerance covers MXU-vs-XLA precision differences while still catching
    # any structural error (a wrong conv tap gives O(1) mismatches).
    assert max_err < 5e-2, f"max |kernel - reference| = {max_err}"
    print("KERNEL_OK")
</pallas_src>

<mosaic_0001>
module attributes {stable_mosaic.version = 11 : i64} {
  func.func @_unet_block_kernel(%arg0: i32, %arg1: memref<4x768xf32, #tpu.memory_space<vmem>>, %arg2: memref<1x768xf32, #tpu.memory_space<vmem>>, %arg3: memref<9x8x4xf32, #tpu.memory_space<vmem>>, %arg4: memref<8x1xf32, #tpu.memory_space<vmem>>, %arg5: memref<8x1xf32, #tpu.memory_space<vmem>>, %arg6: memref<9x8x8xf32, #tpu.memory_space<vmem>>, %arg7: memref<8x1xf32, #tpu.memory_space<vmem>>, %arg8: memref<8x1xf32, #tpu.memory_space<vmem>>, %arg9: memref<8x768xf32, #tpu.memory_space<vmem>>) attributes {dimension_semantics = [#tpu.dimension_semantics<arbitrary>], iteration_bounds = array<i64: 1>, scalar_prefetch = 0 : i64, scratch_operands = 0 : i64, tpu.core_type = #tpu.core_type<tc>, window_params = [{pipeline_mode = #tpu.pipeline_mode<synchronous>, transform_indices = @transform_0, window_bounds = array<i64: 4, 768>}, {pipeline_mode = #tpu.pipeline_mode<synchronous>, transform_indices = @transform_1, window_bounds = array<i64: 1, 768>}, {pipeline_mode = #tpu.pipeline_mode<synchronous>, transform_indices = @transform_2, window_bounds = array<i64: 9, 8, 4>}, {pipeline_mode = #tpu.pipeline_mode<synchronous>, transform_indices = @transform_3, window_bounds = array<i64: 8, 1>}, {pipeline_mode = #tpu.pipeline_mode<synchronous>, transform_indices = @transform_4, window_bounds = array<i64: 8, 1>}, {pipeline_mode = #tpu.pipeline_mode<synchronous>, transform_indices = @transform_5, window_bounds = array<i64: 9, 8, 8>}, {pipeline_mode = #tpu.pipeline_mode<synchronous>, transform_indices = @transform_6, window_bounds = array<i64: 8, 1>}, {pipeline_mode = #tpu.pipeline_mode<synchronous>, transform_indices = @transform_7, window_bounds = array<i64: 8, 1>}, {pipeline_mode = #tpu.pipeline_mode<synchronous>, transform_indices = @transform_8, window_bounds = array<i64: 8, 768>}]} {
    %c0 = arith.constant 0 : index
    %c0_0 = arith.constant 0 : index
    %0 = vector.load %arg2[%c0, %c0_0] : memref<1x768xf32, #tpu.memory_space<vmem>>, vector<1x768xf32>
    %c0_1 = arith.constant 0 : index
    %c0_2 = arith.constant 0 : index
    %1 = vector.load %arg1[%c0_1, %c0_2] : memref<4x768xf32, #tpu.memory_space<vmem>>, vector<4x768xf32>
    %c19_i32 = arith.constant 19 : i32
    %2 = tpu.dynamic_rotate %1 by %c19_i32 dim 1 : vector<4x768xf32>, i32 -> vector<4x768xf32>
    %c0_3 = arith.constant 0 : index
    %c0_4 = arith.constant 0 : index
    %c0_5 = arith.constant 0 : index
    %3 = vector.load %arg3[%c0_3, %c0_4, %c0_5] : memref<9x8x4xf32, #tpu.memory_space<vmem>>, vector<1x8x4xf32>
    %4 = vector.shape_cast %3 : vector<1x8x4xf32> to vector<8x4xf32>
    %cst = arith.constant dense<0.000000e+00> : vector<8x768xf32>
    %5 = tpu.matmul %4, %2, %cst {dimension_numbers = #tpu.dot_dimension_numbers<[1], [0], [0], [1], [0, 0, 1, 1], [], []>} : vector<8x4xf32>, vector<4x768xf32>, vector<8x768xf32> -> vector<8x768xf32>
    %c18_i32 = arith.constant 18 : i32
    %6 = tpu.dynamic_rotate %1 by %c18_i32 dim 1 : vector<4x768xf32>, i32 -> vector<4x768xf32>
    %c1 = arith.constant 1 : index
    %c0_6 = arith.constant 0 : index
    %c0_7 = arith.constant 0 : index
    %7 = vector.load %arg3[%c1, %c0_6, %c0_7] : memref<9x8x4xf32, #tpu.memory_space<vmem>>, vector<1x8x4xf32>
    %8 = vector.shape_cast %7 : vector<1x8x4xf32> to vector<8x4xf32>
    %cst_8 = arith.constant dense<0.000000e+00> : vector<8x768xf32>
    %9 = tpu.matmul %8, %6, %cst_8 {dimension_numbers = #tpu.dot_dimension_numbers<[1], [0], [0], [1], [0, 0, 1, 1], [], []>} : vector<8x4xf32>, vector<4x768xf32>, vector<8x768xf32> -> vector<8x768xf32>
    %10 = arith.addf %5, %9 : vector<8x768xf32>
    %c17_i32 = arith.constant 17 : i32
    %11 = tpu.dynamic_rotate %1 by %c17_i32 dim 1 : vector<4x768xf32>, i32 -> vector<4x768xf32>
    %c2 = arith.constant 2 : index
    %c0_9 = arith.constant 0 : index
    %c0_10 = arith.constant 0 : index
    %12 = vector.load %arg3[%c2, %c0_9, %c0_10] : memref<9x8x4xf32, #tpu.memory_space<vmem>>, vector<1x8x4xf32>
    %13 = vector.shape_cast %12 : vector<1x8x4xf32> to vector<8x4xf32>
    %cst_11 = arith.constant dense<0.000000e+00> : vector<8x768xf32>
    %14 = tpu.matmul %13, %11, %cst_11 {dimension_numbers = #tpu.dot_dimension_numbers<[1], [0], [0], [1], [0, 0, 1, 1], [], []>} : vector<8x4xf32>, vector<4x768xf32>, vector<8x768xf32> -> vector<8x768xf32>
    %15 = arith.addf %10, %14 : vector<8x768xf32>
    %c1_i32 = arith.constant 1 : i32
    %16 = tpu.dynamic_rotate %1 by %c1_i32 dim 1 : vector<4x768xf32>, i32 -> vector<4x768xf32>
    %c3 = arith.constant 3 : index
    %c0_12 = arith.constant 0 : index
    %c0_13 = arith.constant 0 : index
    %17 = vector.load %arg3[%c3, %c0_12, %c0_13] : memref<9x8x4xf32, #tpu.memory_space<vmem>>, vector<1x8x4xf32>
    %18 = vector.shape_cast %17 : vector<1x8x4xf32> to vector<8x4xf32>
    %cst_14 = arith.constant dense<0.000000e+00> : vector<8x768xf32>
    %19 = tpu.matmul %18, %16, %cst_14 {dimension_numbers = #tpu.dot_dimension_numbers<[1], [0], [0], [1], [0, 0, 1, 1], [], []>} : vector<8x4xf32>, vector<4x768xf32>, vector<8x768xf32> -> vector<8x768xf32>
    %20 = arith.addf %15, %19 : vector<8x768xf32>
    %c4 = arith.constant 4 : index
    %c0_15 = arith.constant 0 : index
    %c0_16 = arith.constant 0 : index
    %21 = vector.load %arg3[%c4, %c0_15, %c0_16] : memref<9x8x4xf32, #tpu.memory_space<vmem>>, vector<1x8x4xf32>
    %22 = vector.shape_cast %21 : vector<1x8x4xf32> to vector<8x4xf32>
    %cst_17 = arith.constant dense<0.000000e+00> : vector<8x768xf32>
    %23 = tpu.matmul %22, %1, %cst_17 {dimension_numbers = #tpu.dot_dimension_numbers<[1], [0], [0], [1], [0, 0, 1, 1], [], []>} : vector<8x4xf32>, vector<4x768xf32>, vector<8x768xf32> -> vector<8x768xf32>
    %24 = arith.addf %20, %23 : vector<8x768xf32>
    %c767_i32 = arith.constant 767 : i32
    %25 = tpu.dynamic_rotate %1 by %c767_i32 dim 1 : vector<4x768xf32>, i32 -> vector<4x768xf32>
    %c5 = arith.constant 5 : index
    %c0_18 = arith.constant 0 : index
    %c0_19 = arith.constant 0 : index
    %26 = vector.load %arg3[%c5, %c0_18, %c0_19] : memref<9x8x4xf32, #tpu.memory_space<vmem>>, vector<1x8x4xf32>
    %27 = vector.shape_cast %26 : vector<1x8x4xf32> to vector<8x4xf32>
    %cst_20 = arith.constant dense<0.000000e+00> : vector<8x768xf32>
    %28 = tpu.matmul %27, %25, %cst_20 {dimension_numbers = #tpu.dot_dimension_numbers<[1], [0], [0], [1], [0, 0, 1, 1], [], []>} : vector<8x4xf32>, vector<4x768xf32>, vector<8x768xf32> -> vector<8x768xf32>
    %29 = arith.addf %24, %28 : vector<8x768xf32>
    %c751_i32 = arith.constant 751 : i32
    %30 = tpu.dynamic_rotate %1 by %c751_i32 dim 1 : vector<4x768xf32>, i32 -> vector<4x768xf32>
    %c6 = arith.constant 6 : index
    %c0_21 = arith.constant 0 : index
    %c0_22 = arith.constant 0 : index
    %31 = vector.load %arg3[%c6, %c0_21, %c0_22] : memref<9x8x4xf32, #tpu.memory_space<vmem>>, vector<1x8x4xf32>
    %32 = vector.shape_cast %31 : vector<1x8x4xf32> to vector<8x4xf32>
    %cst_23 = arith.constant dense<0.000000e+00> : vector<8x768xf32>
    %33 = tpu.matmul %32, %30, %cst_23 {dimension_numbers = #tpu.dot_dimension_numbers<[1], [0], [0], [1], [0, 0, 1, 1], [], []>} : vector<8x4xf32>, vector<4x768xf32>, vector<8x768xf32> -> vector<8x768xf32>
    %34 = arith.addf %29, %33 : vector<8x768xf32>
    %c750_i32 = arith.constant 750 : i32
    %35 = tpu.dynamic_rotate %1 by %c750_i32 dim 1 : vector<4x768xf32>, i32 -> vector<4x768xf32>
    %c7 = arith.constant 7 : index
    %c0_24 = arith.constant 0 : index
    %c0_25 = arith.constant 0 : index
    %36 = vector.load %arg3[%c7, %c0_24, %c0_25] : memref<9x8x4xf32, #tpu.memory_space<vmem>>, vector<1x8x4xf32>
    %37 = vector.shape_cast %36 : vector<1x8x4xf32> to vector<8x4xf32>
    %cst_26 = arith.constant dense<0.000000e+00> : vector<8x768xf32>
    %38 = tpu.matmul %37, %35, %cst_26 {dimension_numbers = #tpu.dot_dimension_numbers<[1], [0], [0], [1], [0, 0, 1, 1], [], []>} : vector<8x4xf32>, vector<4x768xf32>, vector<8x768xf32> -> vector<8x768xf32>
    %39 = arith.addf %34, %38 : vector<8x768xf32>
    %c749_i32 = arith.constant 749 : i32
    %40 = tpu.dynamic_rotate %1 by %c749_i32 dim 1 : vector<4x768xf32>, i32 -> vector<4x768xf32>
    %c8 = arith.constant 8 : index
    %c0_27 = arith.constant 0 : index
    %c0_28 = arith.constant 0 : index
    %41 = vector.load %arg3[%c8, %c0_27, %c0_28] : memref<9x8x4xf32, #tpu.memory_space<vmem>>, vector<1x8x4xf32>
    %42 = vector.shape_cast %41 : vector<1x8x4xf32> to vector<8x4xf32>
    %cst_29 = arith.constant dense<0.000000e+00> : vector<8x768xf32>
    %43 = tpu.matmul %42, %40, %cst_29 {dimension_numbers = #tpu.dot_dimension_numbers<[1], [0], [0], [1], [0, 0, 1, 1], [], []>} : vector<8x4xf32>, vector<4x768xf32>, vector<8x768xf32> -> vector<8x768xf32>
    %44 = arith.addf %39, %43 : vector<8x768xf32>
    %c0_30 = arith.constant 0 : index
    %c0_31 = arith.constant 0 : index
    %45 = vector.load %arg4[%c0_30, %c0_31] : memref<8x1xf32, #tpu.memory_space<vmem>>, vector<8x1xf32>
    %c0_32 = arith.constant 0 : index
    %c0_33 = arith.constant 0 : index
    %46 = vector.load %arg5[%c0_32, %c0_33] : memref<8x1xf32, #tpu.memory_space<vmem>>, vector<8x1xf32>
    %47 = vector.broadcast %0 : vector<1x768xf32> to vector<8x768xf32>
    %48 = arith.mulf %44, %47 : vector<8x768xf32>
    %cst_34 = arith.constant dense<0.000000e+00> : vector<8xf32>
    %49 = vector.multi_reduction <add>, %48, %cst_34 [1] : vector<8x768xf32> to vector<8xf32>
    %50 = vector.shape_cast %49 : vector<8xf32> to vector<8x1xf32>
    %cst_35 = arith.constant 0.001953125 : f32
    %51 = vector.broadcast %cst_35 : f32 to vector<8x1xf32>
    %52 = arith.mulf %50, %51 : vector<8x1xf32>
    %53 = vector.broadcast %52 : vector<8x1xf32> to vector<8x768xf32>
    %54 = arith.subf %44, %53 : vector<8x768xf32>
    %55 = vector.broadcast %0 : vector<1x768xf32> to vector<8x768xf32>
    %56 = arith.mulf %54, %55 : vector<8x768xf32>
    %57 = arith.mulf %56, %56 : vector<8x768xf32>
    %cst_36 = arith.constant dense<0.000000e+00> : vector<8xf32>
    %58 = vector.multi_reduction <add>, %57, %cst_36 [1] : vector<8x768xf32> to vector<8xf32>
    %59 = vector.shape_cast %58 : vector<8xf32> to vector<8x1xf32>
    %cst_37 = arith.constant 0.001953125 : f32
    %60 = vector.broadcast %cst_37 : f32 to vector<8x1xf32>
    %61 = arith.mulf %59, %60 : vector<8x1xf32>
    %62 = vector.broadcast %52 : vector<8x1xf32> to vector<8x768xf32>
    %63 = arith.subf %44, %62 : vector<8x768xf32>
    %cst_38 = arith.constant 9.99999974E-6 : f32
    %64 = vector.broadcast %cst_38 : f32 to vector<8x1xf32>
    %65 = arith.addf %61, %64 : vector<8x1xf32>
    %66 = math.rsqrt %65 : vector<8x1xf32>
    %67 = vector.broadcast %66 : vector<8x1xf32> to vector<8x768xf32>
    %68 = arith.mulf %63, %67 : vector<8x768xf32>
    %69 = vector.broadcast %45 : vector<8x1xf32> to vector<8x768xf32>
    %70 = arith.mulf %68, %69 : vector<8x768xf32>
    %71 = vector.broadcast %46 : vector<8x1xf32> to vector<8x768xf32>
    %72 = arith.addf %70, %71 : vector<8x768xf32>
    %cst_39 = arith.constant 0.000000e+00 : f32
    %73 = vector.broadcast %cst_39 : f32 to vector<8x768xf32>
    %74 = arith.maximumf %72, %73 : vector<8x768xf32>
    %75 = vector.broadcast %0 : vector<1x768xf32> to vector<8x768xf32>
    %76 = arith.mulf %74, %75 : vector<8x768xf32>
    %c19_i32_40 = arith.constant 19 : i32
    %77 = tpu.dynamic_rotate %76 by %c19_i32_40 dim 1 : vector<8x768xf32>, i32 -> vector<8x768xf32>
    %c0_41 = arith.constant 0 : index
    %c0_42 = arith.constant 0 : index
    %c0_43 = arith.constant 0 : index
    %78 = vector.load %arg6[%c0_41, %c0_42, %c0_43] : memref<9x8x8xf32, #tpu.memory_space<vmem>>, vector<1x8x8xf32>
    %79 = vector.shape_cast %78 : vector<1x8x8xf32> to vector<8x8xf32>
    %cst_44 = arith.constant dense<0.000000e+00> : vector<8x768xf32>
    %80 = tpu.matmul %79, %77, %cst_44 {dimension_numbers = #tpu.dot_dimension_numbers<[1], [0], [0], [1], [0, 0, 1, 1], [], []>} : vector<8x8xf32>, vector<8x768xf32>, vector<8x768xf32> -> vector<8x768xf32>
    %c18_i32_45 = arith.constant 18 : i32
    %81 = tpu.dynamic_rotate %76 by %c18_i32_45 dim 1 : vector<8x768xf32>, i32 -> vector<8x768xf32>
    %c1_46 = arith.constant 1 : index
    %c0_47 = arith.constant 0 : index
    %c0_48 = arith.constant 0 : index
    %82 = vector.load %arg6[%c1_46, %c0_47, %c0_48] : memref<9x8x8xf32, #tpu.memory_space<vmem>>, vector<1x8x8xf32>
    %83 = vector.shape_cast %82 : vector<1x8x8xf32> to vector<8x8xf32>
    %cst_49 = arith.constant dense<0.000000e+00> : vector<8x768xf32>
    %84 = tpu.matmul %83, %81, %cst_49 {dimension_numbers = #tpu.dot_dimension_numbers<[1], [0], [0], [1], [0, 0, 1, 1], [], []>} : vector<8x8xf32>, vector<8x768xf32>, vector<8x768xf32> -> vector<8x768xf32>
    %85 = arith.addf %80, %84 : vector<8x768xf32>
    %c17_i32_50 = arith.constant 17 : i32
    %86 = tpu.dynamic_rotate %76 by %c17_i32_50 dim 1 : vector<8x768xf32>, i32 -> vector<8x768xf32>
    %c2_51 = arith.constant 2 : index
    %c0_52 = arith.constant 0 : index
    %c0_53 = arith.constant 0 : index
    %87 = vector.load %arg6[%c2_51, %c0_52, %c0_53] : memref<9x8x8xf32, #tpu.memory_space<vmem>>, vector<1x8x8xf32>
    %88 = vector.shape_cast %87 : vector<1x8x8xf32> to vector<8x8xf32>
    %cst_54 = arith.constant dense<0.000000e+00> : vector<8x768xf32>
    %89 = tpu.matmul %88, %86, %cst_54 {dimension_numbers = #tpu.dot_dimension_numbers<[1], [0], [0], [1], [0, 0, 1, 1], [], []>} : vector<8x8xf32>, vector<8x768xf32>, vector<8x768xf32> -> vector<8x768xf32>
    %90 = arith.addf %85, %89 : vector<8x768xf32>
    %c1_i32_55 = arith.constant 1 : i32
    %91 = tpu.dynamic_rotate %76 by %c1_i32_55 dim 1 : vector<8x768xf32>, i32 -> vector<8x768xf32>
    %c3_56 = arith.constant 3 : index
    %c0_57 = arith.constant 0 : index
    %c0_58 = arith.constant 0 : index
    %92 = vector.load %arg6[%c3_56, %c0_57, %c0_58] : memref<9x8x8xf32, #tpu.memory_space<vmem>>, vector<1x8x8xf32>
    %93 = vector.shape_cast %92 : vector<1x8x8xf32> to vector<8x8xf32>
    %cst_59 = arith.constant dense<0.000000e+00> : vector<8x768xf32>
    %94 = tpu.matmul %93, %91, %cst_59 {dimension_numbers = #tpu.dot_dimension_numbers<[1], [0], [0], [1], [0, 0, 1, 1], [], []>} : vector<8x8xf32>, vector<8x768xf32>, vector<8x768xf32> -> vector<8x768xf32>
    %95 = arith.addf %90, %94 : vector<8x768xf32>
    %c4_60 = arith.constant 4 : index
    %c0_61 = arith.constant 0 : index
    %c0_62 = arith.constant 0 : index
    %96 = vector.load %arg6[%c4_60, %c0_61, %c0_62] : memref<9x8x8xf32, #tpu.memory_space<vmem>>, vector<1x8x8xf32>
    %97 = vector.shape_cast %96 : vector<1x8x8xf32> to vector<8x8xf32>
    %cst_63 = arith.constant dense<0.000000e+00> : vector<8x768xf32>
    %98 = tpu.matmul %97, %76, %cst_63 {dimension_numbers = #tpu.dot_dimension_numbers<[1], [0], [0], [1], [0, 0, 1, 1], [], []>} : vector<8x8xf32>, vector<8x768xf32>, vector<8x768xf32> -> vector<8x768xf32>
    %99 = arith.addf %95, %98 : vector<8x768xf32>
    %c767_i32_64 = arith.constant 767 : i32
    %100 = tpu.dynamic_rotate %76 by %c767_i32_64 dim 1 : vector<8x768xf32>, i32 -> vector<8x768xf32>
    %c5_65 = arith.constant 5 : index
    %c0_66 = arith.constant 0 : index
    %c0_67 = arith.constant 0 : index
    %101 = vector.load %arg6[%c5_65, %c0_66, %c0_67] : memref<9x8x8xf32, #tpu.memory_space<vmem>>, vector<1x8x8xf32>
    %102 = vector.shape_cast %101 : vector<1x8x8xf32> to vector<8x8xf32>
    %cst_68 = arith.constant dense<0.000000e+00> : vector<8x768xf32>
    %103 = tpu.matmul %102, %100, %cst_68 {dimension_numbers = #tpu.dot_dimension_numbers<[1], [0], [0], [1], [0, 0, 1, 1], [], []>} : vector<8x8xf32>, vector<8x768xf32>, vector<8x768xf32> -> vector<8x768xf32>
    %104 = arith.addf %99, %103 : vector<8x768xf32>
    %c751_i32_69 = arith.constant 751 : i32
    %105 = tpu.dynamic_rotate %76 by %c751_i32_69 dim 1 : vector<8x768xf32>, i32 -> vector<8x768xf32>
    %c6_70 = arith.constant 6 : index
    %c0_71 = arith.constant 0 : index
    %c0_72 = arith.constant 0 : index
    %106 = vector.load %arg6[%c6_70, %c0_71, %c0_72] : memref<9x8x8xf32, #tpu.memory_space<vmem>>, vector<1x8x8xf32>
    %107 = vector.shape_cast %106 : vector<1x8x8xf32> to vector<8x8xf32>
    %cst_73 = arith.constant dense<0.000000e+00> : vector<8x768xf32>
    %108 = tpu.matmul %107, %105, %cst_73 {dimension_numbers = #tpu.dot_dimension_numbers<[1], [0], [0], [1], [0, 0, 1, 1], [], []>} : vector<8x8xf32>, vector<8x768xf32>, vector<8x768xf32> -> vector<8x768xf32>
    %109 = arith.addf %104, %108 : vector<8x768xf32>
    %c750_i32_74 = arith.constant 750 : i32
    %110 = tpu.dynamic_rotate %76 by %c750_i32_74 dim 1 : vector<8x768xf32>, i32 -> vector<8x768xf32>
    %c7_75 = arith.constant 7 : index
    %c0_76 = arith.constant 0 : index
    %c0_77 = arith.constant 0 : index
    %111 = vector.load %arg6[%c7_75, %c0_76, %c0_77] : memref<9x8x8xf32, #tpu.memory_space<vmem>>, vector<1x8x8xf32>
    %112 = vector.shape_cast %111 : vector<1x8x8xf32> to vector<8x8xf32>
    %cst_78 = arith.constant dense<0.000000e+00> : vector<8x768xf32>
    %113 = tpu.matmul %112, %110, %cst_78 {dimension_numbers = #tpu.dot_dimension_numbers<[1], [0], [0], [1], [0, 0, 1, 1], [], []>} : vector<8x8xf32>, vector<8x768xf32>, vector<8x768xf32> -> vector<8x768xf32>
    %114 = arith.addf %109, %113 : vector<8x768xf32>
    %c749_i32_79 = arith.constant 749 : i32
    %115 = tpu.dynamic_rotate %76 by %c749_i32_79 dim 1 : vector<8x768xf32>, i32 -> vector<8x768xf32>
    %c8_80 = arith.constant 8 : index
    %c0_81 = arith.constant 0 : index
    %c0_82 = arith.constant 0 : index
    %116 = vector.load %arg6[%c8_80, %c0_81, %c0_82] : memref<9x8x8xf32, #tpu.memory_space<vmem>>, vector<1x8x8xf32>
    %117 = vector.shape_cast %116 : vector<1x8x8xf32> to vector<8x8xf32>
    %cst_83 = arith.constant dense<0.000000e+00> : vector<8x768xf32>
    %118 = tpu.matmul %117, %115, %cst_83 {dimension_numbers = #tpu.dot_dimension_numbers<[1], [0], [0], [1], [0, 0, 1, 1], [], []>} : vector<8x8xf32>, vector<8x768xf32>, vector<8x768xf32> -> vector<8x768xf32>
    %119 = arith.addf %114, %118 : vector<8x768xf32>
    %c0_84 = arith.constant 0 : index
    %c0_85 = arith.constant 0 : index
    %120 = vector.load %arg7[%c0_84, %c0_85] : memref<8x1xf32, #tpu.memory_space<vmem>>, vector<8x1xf32>
    %c0_86 = arith.constant 0 : index
    %c0_87 = arith.constant 0 : index
    %121 = vector.load %arg8[%c0_86, %c0_87] : memref<8x1xf32, #tpu.memory_space<vmem>>, vector<8x1xf32>
    %122 = vector.broadcast %0 : vector<1x768xf32> to vector<8x768xf32>
    %123 = arith.mulf %119, %122 : vector<8x768xf32>
    %cst_88 = arith.constant dense<0.000000e+00> : vector<8xf32>
    %124 = vector.multi_reduction <add>, %123, %cst_88 [1] : vector<8x768xf32> to vector<8xf32>
    %125 = vector.shape_cast %124 : vector<8xf32> to vector<8x1xf32>
    %cst_89 = arith.constant 0.001953125 : f32
    %126 = vector.broadcast %cst_89 : f32 to vector<8x1xf32>
    %127 = arith.mulf %125, %126 : vector<8x1xf32>
    %128 = vector.broadcast %127 : vector<8x1xf32> to vector<8x768xf32>
    %129 = arith.subf %119, %128 : vector<8x768xf32>
    %130 = vector.broadcast %0 : vector<1x768xf32> to vector<8x768xf32>
    %131 = arith.mulf %129, %130 : vector<8x768xf32>
    %132 = arith.mulf %131, %131 : vector<8x768xf32>
    %cst_90 = arith.constant dense<0.000000e+00> : vector<8xf32>
    %133 = vector.multi_reduction <add>, %132, %cst_90 [1] : vector<8x768xf32> to vector<8xf32>
    %134 = vector.shape_cast %133 : vector<8xf32> to vector<8x1xf32>
    %cst_91 = arith.constant 0.001953125 : f32
    %135 = vector.broadcast %cst_91 : f32 to vector<8x1xf32>
    %136 = arith.mulf %134, %135 : vector<8x1xf32>
    %137 = vector.broadcast %127 : vector<8x1xf32> to vector<8x768xf32>
    %138 = arith.subf %119, %137 : vector<8x768xf32>
    %cst_92 = arith.constant 9.99999974E-6 : f32
    %139 = vector.broadcast %cst_92 : f32 to vector<8x1xf32>
    %140 = arith.addf %136, %139 : vector<8x1xf32>
    %141 = math.rsqrt %140 : vector<8x1xf32>
    %142 = vector.broadcast %141 : vector<8x1xf32> to vector<8x768xf32>
    %143 = arith.mulf %138, %142 : vector<8x768xf32>
    %144 = vector.broadcast %120 : vector<8x1xf32> to vector<8x768xf32>
    %145 = arith.mulf %143, %144 : vector<8x768xf32>
    %146 = vector.broadcast %121 : vector<8x1xf32> to vector<8x768xf32>
    %147 = arith.addf %145, %146 : vector<8x768xf32>
    %cst_93 = arith.constant 0.000000e+00 : f32
    %148 = vector.broadcast %cst_93 : f32 to vector<8x768xf32>
    %149 = arith.maximumf %147, %148 : vector<8x768xf32>
    %150 = vector.broadcast %0 : vector<1x768xf32> to vector<8x768xf32>
    %151 = arith.mulf %149, %150 : vector<8x768xf32>
    %c0_94 = arith.constant 0 : index
    %c0_95 = arith.constant 0 : index
    %152 = vector.load %arg9[%c0_94, %c0_95] : memref<8x768xf32, #tpu.memory_space<vmem>>, vector<8x768xf32>
    tpu.vector_store %arg9[%c0_94, %c0_95], %151 {strides = array<i32>} : memref<8x768xf32, #tpu.memory_space<vmem>>, vector<8x768xf32>,
    return
  }
  func.func @transform_0(%arg0: i32) -> (i32, i32) {
    %c0_i32 = arith.constant 0 : i32
    %c0_i32_0 = arith.constant 0 : i32
    %c0_i32_1 = arith.constant 0 : i32
    return %c0_i32, %c0_i32_0 : i32, i32
  }
  func.func @transform_1(%arg0: i32) -> (i32, i32) {
    %c0_i32 = arith.constant 0 : i32
    %c0_i32_0 = arith.constant 0 : i32
    %c0_i32_1 = arith.constant 0 : i32
    return %c0_i32, %c0_i32_0 : i32, i32
  }
  func.func @transform_2(%arg0: i32) -> (i32, i32, i32) {
    %c0_i32 = arith.constant 0 : i32
    %c0_i32_0 = arith.constant 0 : i32
    %c0_i32_1 = arith.constant 0 : i32
    %c0_i32_2 = arith.constant 0 : i32
    return %c0_i32, %c0_i32_0, %c0_i32_1 : i32, i32, i32
  }
  func.func @transform_3(%arg0: i32) -> (i32, i32) {
    %c0_i32 = arith.constant 0 : i32
    %c0_i32_0 = arith.constant 0 : i32
    %c0_i32_1 = arith.constant 0 : i32
    return %c0_i32, %c0_i32_0 : i32, i32
  }
  func.func @transform_4(%arg0: i32) -> (i32, i32) {
    %c0_i32 = arith.constant 0 : i32
    %c0_i32_0 = arith.constant 0 : i32
    %c0_i32_1 = arith.constant 0 : i32
    return %c0_i32, %c0_i32_0 : i32, i32
  }
  func.func @transform_5(%arg0: i32) -> (i32, i32, i32) {
    %c0_i32 = arith.constant 0 : i32
    %c0_i32_0 = arith.constant 0 : i32
    %c0_i32_1 = arith.constant 0 : i32
    %c0_i32_2 = arith.constant 0 : i32
    return %c0_i32, %c0_i32_0, %c0_i32_1 : i32, i32, i32
  }
  func.func @transform_6(%arg0: i32) -> (i32, i32) {
    %c0_i32 = arith.constant 0 : i32
    %c0_i32_0 = arith.constant 0 : i32
    %c0_i32_1 = arith.constant 0 : i32
    return %c0_i32, %c0_i32_0 : i32, i32
  }
  func.func @transform_7(%arg0: i32) -> (i32, i32) {
    %c0_i32 = arith.constant 0 : i32
    %c0_i32_0 = arith.constant 0 : i32
    %c0_i32_1 = arith.constant 0 : i32
    return %c0_i32, %c0_i32_0 : i32, i32
  }
  func.func @transform_8(%arg0: i32) -> (i32, i32) {
    %c0_i32 = arith.constant 0 : i32
    %c0_i32_0 = arith.constant 0 : i32
    %c0_i32_1 = arith.constant 0 : i32
    return %c0_i32, %c0_i32_0 : i32, i32
  }
}

</mosaic_0001>

<llo_original>
// kernel: unet_block_forward.1
$region0: #{unet_block_forward.1}
  #allocation0 [shape = 'u32[]', space=smem, size = 0x4, offset = 0x4, fixed_abs, tag = 'smem constant byte address 0x4 - core index']
  #allocation1 [shape = 'u32[144,128]{1,0:T(1,128)}', space=vmem, size = 0x12000, scoped, tag = 'internal scratch']
  %s0 = inlined_call_operand.vmem [shape: f32[4,768], index: 0, kind: input, shape index: {}]
  %s1 = inlined_call_operand.vmem [shape: f32[1,768], index: 1, kind: input, shape index: {}]
  %s2 = inlined_call_operand.vmem [shape: f32[9,8,4], index: 2, kind: input, shape index: {}]
  %s3 = inlined_call_operand.vmem [shape: f32[8,1], index: 3, kind: input, shape index: {}]
  %s4 = inlined_call_operand.vmem [shape: f32[8,1], index: 4, kind: input, shape index: {}]
  %s5 = inlined_call_operand.vmem [shape: f32[9,8,8], index: 5, kind: input, shape index: {}]
  %s6 = inlined_call_operand.vmem [shape: f32[8,1], index: 6, kind: input, shape index: {}]
  %s7 = inlined_call_operand.vmem [shape: f32[8,1], index: 7, kind: input, shape index: {}]
  %s8 = inlined_call_operand.vmem [shape: f32[8,768], index: 8, kind: output, shape index: {}]
  %s9 = sld [smem:[#allocation0]]
  $region42: #{unet_block_forward.1} parent=0
    _
  %s11 = ssub.s32 1, %s9
  %s12 = scalar_select 0, %s11, %s9
  // Predicated region
  $region2: #{unet_block_forward.1} parent=0 // pred_check
    _
  $region3: #{unet_block_forward.1} parent=0 // pred_check_branch
    %14 = sbr.rel (0) target = $region5
  $region4: #{unet_block_forward.1} parent=0 // pred_region
    _
  $region5: #{unet_block_forward.1} parent=0 // pred_fallthru
    _
  // Predicated region
  $region6: #{unet_block_forward.1} parent=0 // pred_check
    _
  $region7: #{unet_block_forward.1} parent=0 // pred_check_branch
    %16 = sbr.rel (0) target = $region9
  $region8: #{unet_block_forward.1} parent=0 // pred_region
    _
  $region9: #{unet_block_forward.1} parent=0 // pred_fallthru
    _
  // Predicated region
  $region10: #{unet_block_forward.1} parent=0 // pred_check
    _
  $region11: #{unet_block_forward.1} parent=0 // pred_check_branch
    %18 = sbr.rel (0) target = $region13
  $region12: #{unet_block_forward.1} parent=0 // pred_region
    _
  $region13: #{unet_block_forward.1} parent=0 // pred_fallthru
    _
  // Predicated region
  $region14: #{unet_block_forward.1} parent=0 // pred_check
    _
  $region15: #{unet_block_forward.1} parent=0 // pred_check_branch
    %20 = sbr.rel (0) target = $region17
  $region16: #{unet_block_forward.1} parent=0 // pred_region
    _
  $region17: #{unet_block_forward.1} parent=0 // pred_fallthru
    _
  // Predicated region
  $region18: #{unet_block_forward.1} parent=0 // pred_check
    _
  $region19: #{unet_block_forward.1} parent=0 // pred_check_branch
    %22 = sbr.rel (0) target = $region21
  $region20: #{unet_block_forward.1} parent=0 // pred_region
    _
  $region21: #{unet_block_forward.1} parent=0 // pred_fallthru
    _
  // Predicated region
  $region22: #{unet_block_forward.1} parent=0 // pred_check
    _
  $region23: #{unet_block_forward.1} parent=0 // pred_check_branch
    %24 = sbr.rel (0) target = $region25
  $region24: #{unet_block_forward.1} parent=0 // pred_region
    _
  $region25: #{unet_block_forward.1} parent=0 // pred_fallthru
    _
  // Predicated region
  $region26: #{unet_block_forward.1} parent=0 // pred_check
    _
  $region27: #{unet_block_forward.1} parent=0 // pred_check_branch
    %26 = sbr.rel (0) target = $region29
  $region28: #{unet_block_forward.1} parent=0 // pred_region
    _
  $region29: #{unet_block_forward.1} parent=0 // pred_fallthru
    _
  // Predicated region
  $region30: #{unet_block_forward.1} parent=0 // pred_check
    _
  $region31: #{unet_block_forward.1} parent=0 // pred_check_branch
    %28 = sbr.rel (0) target = $region33
  $region32: #{unet_block_forward.1} parent=0 // pred_region
    _
  $region33: #{unet_block_forward.1} parent=0 // pred_fallthru
    _
  %v29 = vld [vmem:[%s1] sm:$0x3f]
  %v30 = vld [vmem:[%s0] sm:$0xff]
  %v31 = vld [vmem:[%s0 + $0x8] sm:$0xff]
  %v32 = vld [vmem:[%s0 + $0x10] sm:$0xff]
  %v36 = vcombine.high %v30, %v30
  %v37 = vcombine.high %v31, %v31
  %v38 = vcombine.high %v32, %v32
  %42 = vrot.lane.b32.xlu0 %v30, 19
  %v43 = vpop.permute.xlu0 %42
  %44 = vrot.lane.b32.xlu0 %v36, 19
  %v45 = vpop.permute.xlu0 %44
  %46 = vrot.lane.b32.xlu0 %v31, 19
  %v47 = vpop.permute.xlu0 %46
  %48 = vrot.lane.b32.xlu0 %v37, 19
  %v49 = vpop.permute.xlu0 %48
  %50 = vrot.lane.b32.xlu0 %v32, 19
  %v51 = vpop.permute.xlu0 %50
  %52 = vrot.lane.b32.xlu0 %v38, 19
  %v53 = vpop.permute.xlu0 %52
  %v54 = vlaneseq
  %v55 = vand.u32 %v54, 127
  %vm56 = vcmp.lt.s32.totalorder %v55, 19
  %v57 = vsel %vm56, %v51, %v53
  %v58 = vsel %vm56, %v49, %v51
  %v59 = vsel %vm56, %v47, %v49
  %v60 = vsel %vm56, %v45, %v47
  %v61 = vsel %vm56, %v43, %v45
  %v62 = vsel %vm56, %v53, %v43
  %v63 = vld [vmem:[%s2] sm:$0xff]
  %64 = vrot.lane.b32.xlu0 %v30, 18
  %v65 = vpop.permute.xlu0 %64
  %66 = vrot.lane.b32.xlu0 %v36, 18
  %v67 = vpop.permute.xlu0 %66
  %68 = vrot.lane.b32.xlu0 %v31, 18
  %v69 = vpop.permute.xlu0 %68
  %70 = vrot.lane.b32.xlu0 %v37, 18
  %v71 = vpop.permute.xlu0 %70
  %72 = vrot.lane.b32.xlu0 %v32, 18
  %v73 = vpop.permute.xlu0 %72
  %74 = vrot.lane.b32.xlu0 %v38, 18
  %v75 = vpop.permute.xlu0 %74
  %vm76 = vcmp.lt.s32.totalorder %v55, 18
  %v77 = vsel %vm76, %v73, %v75
  %v78 = vsel %vm76, %v71, %v73
  %v79 = vsel %vm76, %v69, %v71
  %v80 = vsel %vm76, %v67, %v69
  %v81 = vsel %vm76, %v65, %v67
  %v82 = vsel %vm76, %v75, %v65
  %s83 = scalar_lea.vmem %s2, 8
  %v84 = vld [vmem:[%s83] sm:$0xff]
  %vm85 = vcmask 31744
  %v87 = vsel %vm85, %v84, 0
  %vm89 = vcmask 1043456
  %v91 = vsel %vm89, %v82, 0
  %v94 = vsel %vm89, %v81, 0
  %v97 = vsel %vm89, %v80, 0
  %v100 = vsel %vm89, %v79, 0
  %v103 = vsel %vm89, %v78, 0
  %v106 = vsel %vm89, %v77, 0
  %108 = vmatprep.subr.mxu0 %v94
  %109 = vmatpush1.msra.mxu0 %v91
  %110 = vmatprep.subr.mxu0 0.0
  %111 = vmatpush1.msra.mxu0 0.0
  %112 = vmatprep.subr.mxu0 0.0
  %113 = vmatpush1.msra.mxu0 0.0
  %114 = vmatprep.subr.mxu0 0.0
  %115 = vmatpush1.msra.mxu0 0.0
  %116 = vmatprep.subr.mxu0 0.0
  %117 = vmatpush1.msra.mxu0 0.0
  %118 = vmatprep.subr.mxu0 0.0
  %119 = vmatpush1.msra.mxu0 0.0
  %120 = vmatprep.subr.mxu0 0.0
  %121 = vmatpush1.msra.mxu0 0.0
  %122 = vmatprep.subr.mxu0 0.0
  %123 = vmatpush1.msra.mxu0 0.0
  %124 = vmatprep.subr.mxu0 0.0
  %125 = vmatpush1.msra.mxu0 0.0
  %126 = vmatprep.subr.mxu0 0.0
  %127 = vmatpush1.msra.mxu0 0.0
  %128 = vmatprep.subr.mxu0 0.0
  %129 = vmatpush1.msra.mxu0 0.0
  %130 = vmatprep.subr.mxu0 0.0
  %131 = vmatpush1.msra.mxu0 0.0
  %132 = vmatprep.subr.mxu0 0.0
  %133 = vmatpush1.msra.mxu0 0.0
  %134 = vmatprep.subr.mxu0 0.0
  %135 = vmatpush1.msra.mxu0 0.0
  %136 = vmatprep.subr.mxu0 0.0
  %137 = vmatpush1.msra.mxu0 0.0
  %138 = vmatprep.subr.mxu0 0.0
  %139 = vmatpush1.msra.mxu0 0.0
  %140 = vmatprep.subr.mxu0 0.0
  %141 = vmatpush1.msra.mxu0 0.0
  %142 = vmatprep.subr.mxu0 0.0
  %143 = vmatpush1.msra.mxu0 0.0
  %144 = vmatprep.subr.mxu0 0.0
  %145 = vmatpush1.msra.mxu0 0.0
  %146 = vmatprep.subr.mxu0 0.0
  %147 = vmatpush1.msra.mxu0 0.0
  %148 = vmatprep.subr.mxu0 0.0
  %149 = vmatpush1.msra.mxu0 0.0
  %150 = vmatprep.subr.mxu0 0.0
  %151 = vmatpush1.msra.mxu0 0.0
  %152 = vmatprep.subr.mxu0 0.0
  %153 = vmatpush1.msra.mxu0 0.0
  %154 = vmatprep.subr.mxu0 0.0
  %155 = vmatpush1.msra.mxu0 0.0
  %156 = vmatprep.subr.mxu0 0.0
  %157 = vmatpush1.msra.mxu0 0.0
  %158 = vmatprep.subr.mxu0 0.0
  %159 = vmatpush1.msra.mxu0 0.0
  %160 = vmatprep.subr.mxu0 0.0
  %161 = vmatpush1.msra.mxu0 0.0
  %162 = vmatprep.subr.mxu0 0.0
  %163 = vmatpush1.msra.mxu0 0.0
  %164 = vmatprep.subr.mxu0 0.0
  %165 = vmatpush1.msra.mxu0 0.0
  %166 = vmatprep.subr.mxu0 0.0
  %167 = vmatpush1.msra.mxu0 0.0
  %168 = vmatprep.subr.mxu0 0.0
  %169 = vmatpush1.msra.mxu0 0.0
  %170 = vmatprep.subr.mxu0 0.0
  %171 = vmatpush1.msra.mxu0 0.0
  %172 = vmatprep.mubr.f32.mxu0 0.0
  %173 = vmatmul.mubr.f32.gmra.mrb[0].mxu0 %v87
  %v174 = vpop.f32.mrb[0].mxu0
  %v175 = vadd.f32 0.0, %v174
  %v176 = vpop.f32.mrb[0].mxu0
  %v177 = vadd.f32 0.0, %v176
  %178 = vdwg.mxu0
  %179 = vmatprep.subr.mxu0 %v100
  %180 = vmatpush1.msra.mxu0 %v97
  %181 = vmatprep.subr.mxu0 0.0
  %182 = vmatpush1.msra.mxu0 0.0
  %183 = vmatprep.subr.mxu0 0.0
  %184 = vmatpush1.msra.mxu0 0.0
  %185 = vmatprep.subr.mxu0 0.0
  %186 = vmatpush1.msra.mxu0 0.0
  %187 = vmatprep.subr.mxu0 0.0
  %188 = vmatpush1.msra.mxu0 0.0
  %189 = vmatprep.subr.mxu0 0.0
  %190 = vmatpush1.msra.mxu0 0.0
  %191 = vmatprep.subr.mxu0 0.0
  %192 = vmatpush1.msra.mxu0 0.0
  %193 = vmatprep.subr.mxu0 0.0
  %194 = vmatpush1.msra.mxu0 0.0
  %195 = vmatprep.subr.mxu0 0.0
  %196 = vmatpush1.msra.mxu0 0.0
  %197 = vmatprep.subr.mxu0 0.0
  %198 = vmatpush1.msra.mxu0 0.0
  %199 = vmatprep.subr.mxu0 0.0
  %200 = vmatpush1.msra.mxu0 0.0
  %201 = vmatprep.subr.mxu0 0.0
  %202 = vmatpush1.msra.mxu0 0.0
  %203 = vmatprep.subr.mxu0 0.0
  %204 = vmatpush1.msra.mxu0 0.0
  %205 = vmatprep.subr.mxu0 0.0
  %206 = vmatpush1.msra.mxu0 0.0
  %207 = vmatprep.subr.mxu0 0.0
  %208 = vmatpush1.msra.mxu0 0.0
  %209 = vmatprep.subr.mxu0 0.0
  %210 = vmatpush1.msra.mxu0 0.0
  %211 = vmatprep.subr.mxu0 0.0
  %212 = vmatpush1.msra.mxu0 0.0
  %213 = vmatprep.subr.mxu0 0.0
  %214 = vmatpush1.msra.mxu0 0.0
  %215 = vmatprep.subr.mxu0 0.0
  %216 = vmatpush1.msra.mxu0 0.0
  %217 = vmatprep.subr.mxu0 0.0
  %218 = vmatpush1.msra.mxu0 0.0
  %219 = vmatprep.subr.mxu0 0.0
  %220 = vmatpush1.msra.mxu0 0.0
  %221 = vmatprep.subr.mxu0 0.0
  %222 = vmatpush1.msra.mxu0 0.0
  %223 = vmatprep.subr.mxu0 0.0
  %224 = vmatpush1.msra.mxu0 0.0
  %225 = vmatprep.subr.mxu0 0.0
  %226 = vmatpush1.msra.mxu0 0.0
  %227 = vmatprep.subr.mxu0 0.0
  %228 = vmatpush1.msra.mxu0 0.0
  %229 = vmatprep.subr.mxu0 0.0
  %230 = vmatpush1.msra.mxu0 0.0
  %231 = vmatprep.subr.mxu0 0.0
  %232 = vmatpush1.msra.mxu0 0.0
  %233 = vmatprep.subr.mxu0 0.0
  %234 = vmatpush1.msra.mxu0 0.0
  %235 = vmatprep.subr.mxu0 0.0
  %236 = vmatpush1.msra.mxu0 0.0
  %237 = vmatprep.subr.mxu0 0.0
  %238 = vmatpush1.msra.mxu0 0.0
  %239 = vmatprep.subr.mxu0 0.0
  %240 = vmatpush1.msra.mxu0 0.0
  %241 = vmatprep.subr.mxu0 0.0
  %242 = vmatpush1.msra.mxu0 0.0
  %243 = vmatprep.mubr.f32.mxu0 0.0
  %244 = vmatmul.mubr.f32.gmra.mrb[0].mxu0 %v87
  %v245 = vpop.f32.mrb[0].mxu0
  %v246 = vadd.f32 0.0, %v245
  %v247 = vpop.f32.mrb[0].mxu0
  %v248 = vadd.f32 0.0, %v247
  %249 = vdwg.mxu0
  %250 = vmatprep.subr.mxu0 %v106
  %251 = vmatpush1.msra.mxu0 %v103
  %252 = vmatprep.subr.mxu0 0.0
  %253 = vmatpush1.msra.mxu0 0.0
  %254 = vmatprep.subr.mxu0 0.0
  %255 = vmatpush1.msra.mxu0 0.0
  %256 = vmatprep.subr.mxu0 0.0
  %257 = vmatpush1.msra.mxu0 0.0
  %258 = vmatprep.subr.mxu0 0.0
  %259 = vmatpush1.msra.mxu0 0.0
  %260 = vmatprep.subr.mxu0 0.0
  %261 = vmatpush1.msra.mxu0 0.0
  %262 = vmatprep.subr.mxu0 0.0
  %263 = vmatpush1.msra.mxu0 0.0
  %264 = vmatprep.subr.mxu0 0.0
  %265 = vmatpush1.msra.mxu0 0.0
  %266 = vmatprep.subr.mxu0 0.0
  %267 = vmatpush1.msra.mxu0 0.0
  %268 = vmatprep.subr.mxu0 0.0
  %269 = vmatpush1.msra.mxu0 0.0
  %270 = vmatprep.subr.mxu0 0.0
  %271 = vmatpush1.msra.mxu0 0.0
  %272 = vmatprep.subr.mxu0 0.0
  %273 = vmatpush1.msra.mxu0 0.0
  %274 = vmatprep.subr.mxu0 0.0
  %275 = vmatpush1.msra.mxu0 0.0
  %276 = vmatprep.subr.mxu0 0.0
  %277 = vmatpush1.msra.mxu0 0.0
  %278 = vmatprep.subr.mxu0 0.0
  %279 = vmatpush1.msra.mxu0 0.0
  %280 = vmatprep.subr.mxu0 0.0
  %281 = vmatpush1.msra.mxu0 0.0
  %282 = vmatprep.subr.mxu0 0.0
  %283 = vmatpush1.msra.mxu0 0.0
  %284 = vmatprep.subr.mxu0 0.0
  %285 = vmatpush1.msra.mxu0 0.0
  %286 = vmatprep.subr.mxu0 0.0
  %287 = vmatpush1.msra.mxu0 0.0
  %288 = vmatprep.subr.mxu0 0.0
  %289 = vmatpush1.msra.mxu0 0.0
  %290 = vmatprep.subr.mxu0 0.0
  %291 = vmatpush1.msra.mxu0 0.0
  %292 = vmatprep.subr.mxu0 0.0
  %293 = vmatpush1.msra.mxu0 0.0
  %294 = vmatprep.subr.mxu0 0.0
  %295 = vmatpush1.msra.mxu0 0.0
  %296 = vmatprep.subr.mxu0 0.0
  %297 = vmatpush1.msra.mxu0 0.0
  %298 = vmatprep.subr.mxu0 0.0
  %299 = vmatpush1.msra.mxu0 0.0
  %300 = vmatprep.subr.mxu0 0.0
  %301 = vmatpush1.msra.mxu0 0.0
  %302 = vmatprep.subr.mxu0 0.0
  %303 = vmatpush1.msra.mxu0 0.0
  %304 = vmatprep.subr.mxu0 0.0
  %305 = vmatpush1.msra.mxu0 0.0
  %306 = vmatprep.subr.mxu0 0.0
  %307 = vmatpush1.msra.mxu0 0.0
  %308 = vmatprep.subr.mxu0 0.0
  %309 = vmatpush1.msra.mxu0 0.0
  %310 = vmatprep.subr.mxu0 0.0
  %311 = vmatpush1.msra.mxu0 0.0
  %312 = vmatprep.subr.mxu0 0.0
  %313 = vmatpush1.msra.mxu0 0.0
  %314 = vmatprep.mubr.f32.mxu0 0.0
  %315 = vmatmul.mubr.f32.gmra.mrb[0].mxu0 %v87
  %v316 = vpop.f32.mrb[0].mxu0
  %v317 = vadd.f32 0.0, %v316
  %v318 = vpop.f32.mrb[0].mxu0
  %v319 = vadd.f32 0.0, %v318
  %320 = vdwg.mxu0
  %v322 = vsel %vm85, %v63, 0
  %v325 = vsel %vm89, %v62, 0
  %v328 = vsel %vm89, %v61, 0
  %v331 = vsel %vm89, %v60, 0
  %v334 = vsel %vm89, %v59, 0
  %v337 = vsel %vm89, %v58, 0
  %v340 = vsel %vm89, %v57, 0
  %342 = vmatprep.subr.mxu0 %v328
  %343 = vmatpush1.msra.mxu0 %v325
  %344 = vmatprep.subr.mxu0 0.0
  %345 = vmatpush1.msra.mxu0 0.0
  %346 = vmatprep.subr.mxu0 0.0
  %347 = vmatpush1.msra.mxu0 0.0
  %348 = vmatprep.subr.mxu0 0.0
  %349 = vmatpush1.msra.mxu0 0.0
  %350 = vmatprep.subr.mxu0 0.0
  %351 = vmatpush1.msra.mxu0 0.0
  %352 = vmatprep.subr.mxu0 0.0
  %353 = vmatpush1.msra.mxu0 0.0
  %354 = vmatprep.subr.mxu0 0.0
  %355 = vmatpush1.msra.mxu0 0.0
  %356 = vmatprep.subr.mxu0 0.0
  %357 = vmatpush1.msra.mxu0 0.0
  %358 = vmatprep.subr.mxu0 0.0
  %359 = vmatpush1.msra.mxu0 0.0
  %360 = vmatprep.subr.mxu0 0.0
  %361 = vmatpush1.msra.mxu0 0.0
  %362 = vmatprep.subr.mxu0 0.0
  %363 = vmatpush1.msra.mxu0 0.0
  %364 = vmatprep.subr.mxu0 0.0
  %365 = vmatpush1.msra.mxu0 0.0
  %366 = vmatprep.subr.mxu0 0.0
  %367 = vmatpush1.msra.mxu0 0.0
  %368 = vmatprep.subr.mxu0 0.0
  %369 = vmatpush1.msra.mxu0 0.0
  %370 = vmatprep.subr.mxu0 0.0
  %371 = vmatpush1.msra.mxu0 0.0
  %372 = vmatprep.subr.mxu0 0.0
  %373 = vmatpush1.msra.mxu0 0.0
  %374 = vmatprep.subr.mxu0 0.0
  %375 = vmatpush1.msra.mxu0 0.0
  %376 = vmatprep.subr.mxu0 0.0
  %377 = vmatpush1.msra.mxu0 0.0
  %378 = vmatprep.subr.mxu0 0.0
  %379 = vmatpush1.msra.mxu0 0.0
  %380 = vmatprep.subr.mxu0 0.0
  %381 = vmatpush1.msra.mxu0 0.0
  %382 = vmatprep.subr.mxu0 0.0
  %383 = vmatpush1.msra.mxu0 0.0
  %384 = vmatprep.subr.mxu0 0.0
  %385 = vmatpush1.msra.mxu0 0.0
  %386 = vmatprep.subr.mxu0 0.0
  %387 = vmatpush1.msra.mxu0 0.0
  %388 = vmatprep.subr.mxu0 0.0
  %389 = vmatpush1.msra.mxu0 0.0
  %390 = vmatprep.subr.mxu0 0.0
  %391 = vmatpush1.msra.mxu0 0.0
  %392 = vmatprep.subr.mxu0 0.0
  %393 = vmatpush1.msra.mxu0 0.0
  %394 = vmatprep.subr.mxu0 0.0
  %395 = vmatpush1.msra.mxu0 0.0
  %396 = vmatprep.subr.mxu0 0.0
  %397 = vmatpush1.msra.mxu0 0.0
  %398 = vmatprep.subr.mxu0 0.0
  %399 = vmatpush1.msra.mxu0 0.0
  %400 = vmatprep.subr.mxu0 0.0
  %401 = vmatpush1.msra.mxu0 0.0
  %402 = vmatprep.subr.mxu0 0.0
  %403 = vmatpush1.msra.mxu0 0.0
  %404 = vmatprep.subr.mxu0 0.0
  %405 = vmatpush1.msra.mxu0 0.0
  %406 = vmatprep.mubr.f32.mxu0 0.0
  %407 = vmatmul.mubr.f32.gmra.mrb[0].mxu0 %v322
  %v408 = vpop.f32.mrb[0].mxu0
  %v409 = vadd.f32 %v175, %v408
  %v410 = vpop.f32.mrb[0].mxu0
  %v411 = vadd.f32 %v177, %v410
  %412 = vdwg.mxu0
  %413 = vmatprep.subr.mxu0 %v334
  %414 = vmatpush1.msra.mxu0 %v331
  %415 = vmatprep.subr.mxu0 0.0
  %416 = vmatpush1.msra.mxu0 0.0
  %417 = vmatprep.subr.mxu0 0.0
  %418 = vmatpush1.msra.mxu0 0.0
  %419 = vmatprep.subr.mxu0 0.0
  %420 = vmatpush1.msra.mxu0 0.0
  %421 = vmatprep.subr.mxu0 0.0
  %422 = vmatpush1.msra.mxu0 0.0
  %423 = vmatprep.subr.mxu0 0.0
  %424 = vmatpush1.msra.mxu0 0.0
  %425 = vmatprep.subr.mxu0 0.0
  %426 = vmatpush1.msra.mxu0 0.0
  %427 = vmatprep.subr.mxu0 0.0
  %428 = vmatpush1.msra.mxu0 0.0
  %429 = vmatprep.subr.mxu0 0.0
  %430 = vmatpush1.msra.mxu0 0.0
  %431 = vmatprep.subr.mxu0 0.0
  %432 = vmatpush1.msra.mxu0 0.0
  %433 = vmatprep.subr.mxu0 0.0
  %434 = vmatpush1.msra.mxu0 0.0
  %435 = vmatprep.subr.mxu0 0.0
  %436 = vmatpush1.msra.mxu0 0.0
  %437 = vmatprep.subr.mxu0 0.0
  %438 = vmatpush1.msra.mxu0 0.0
  %439 = vmatprep.subr.mxu0 0.0
  %440 = vmatpush1.msra.mxu0 0.0
  %441 = vmatprep.subr.mxu0 0.0
  %442 = vmatpush1.msra.mxu0 0.0
  %443 = vmatprep.subr.mxu0 0.0
  %444 = vmatpush1.msra.mxu0 0.0
  %445 = vmatprep.subr.mxu0 0.0
  %446 = vmatpush1.msra.mxu0 0.0
  %447 = vmatprep.subr.mxu0 0.0
  %448 = vmatpush1.msra.mxu0 0.0
  %449 = vmatprep.subr.mxu0 0.0
  %450 = vmatpush1.msra.mxu0 0.0
  %451 = vmatprep.subr.mxu0 0.0
  %452 = vmatpush1.msra.mxu0 0.0
  %453 = vmatprep.subr.mxu0 0.0
  %454 = vmatpush1.msra.mxu0 0.0
  %455 = vmatprep.subr.mxu0 0.0
  %456 = vmatpush1.msra.mxu0 0.0
  %457 = vmatprep.subr.mxu0 0.0
  %458 = vmatpush1.msra.mxu0 0.0
  %459 = vmatprep.subr.mxu0 0.0
  %460 = vmatpush1.msra.mxu0 0.0
  %461 = vmatprep.subr.mxu0 0.0
  %462 = vmatpush1.msra.mxu0 0.0
  %463 = vmatprep.subr.mxu0 0.0
  %464 = vmatpush1.msra.mxu0 0.0
  %465 = vmatprep.subr.mxu0 0.0
  %466 = vmatpush1.msra.mxu0 0.0
  %467 = vmatprep.subr.mxu0 0.0
  %468 = vmatpush1.msra.mxu0 0.0
  %469 = vmatprep.subr.mxu0 0.0
  %470 = vmatpush1.msra.mxu0 0.0
  %471 = vmatprep.subr.mxu0 0.0
  %472 = vmatpush1.msra.mxu0 0.0
  %473 = vmatprep.subr.mxu0 0.0
  %474 = vmatpush1.msra.mxu0 0.0
  %475 = vmatprep.subr.mxu0 0.0
  %476 = vmatpush1.msra.mxu0 0.0
  %477 = vmatprep.mubr.f32.mxu0 0.0
  %478 = vmatmul.mubr.f32.gmra.mrb[0].mxu0 %v322
  %v479 = vpop.f32.mrb[0].mxu0
  %v480 = vadd.f32 %v246, %v479
  %v481 = vpop.f32.mrb[0].mxu0
  %v482 = vadd.f32 %v248, %v481
  %483 = vdwg.mxu0
  %484 = vmatprep.subr.mxu0 %v340
  %485 = vmatpush1.msra.mxu0 %v337
  %486 = vmatprep.subr.mxu0 0.0
  %487 = vmatpush1.msra.mxu0 0.0
  %488 = vmatprep.subr.mxu0 0.0
  %489 = vmatpush1.msra.mxu0 0.0
  %490 = vmatprep.subr.mxu0 0.0
  %491 = vmatpush1.msra.mxu0 0.0
  %492 = vmatprep.subr.mxu0 0.0
  %493 = vmatpush1.msra.mxu0 0.0
  %494 = vmatprep.subr.mxu0 0.0
  %495 = vmatpush1.msra.mxu0 0.0
  %496 = vmatprep.subr.mxu0 0.0
  %497 = vmatpush1.msra.mxu0 0.0
  %498 = vmatprep.subr.mxu0 0.0
  %499 = vmatpush1.msra.mxu0 0.0
  %500 = vmatprep.subr.mxu0 0.0
  %501 = vmatpush1.msra.mxu0 0.0
  %502 = vmatprep.subr.mxu0 0.0
  %503 = vmatpush1.msra.mxu0 0.0
  %504 = vmatprep.subr.mxu0 0.0
  %505 = vmatpush1.msra.mxu0 0.0
  %506 = vmatprep.subr.mxu0 0.0
  %507 = vmatpush1.msra.mxu0 0.0
  %508 = vmatprep.subr.mxu0 0.0
  %509 = vmatpush1.msra.mxu0 0.0
  %510 = vmatprep.subr.mxu0 0.0
  %511 = vmatpush1.msra.mxu0 0.0
  %512 = vmatprep.subr.mxu0 0.0
  %513 = vmatpush1.msra.mxu0 0.0
  %514 = vmatprep.subr.mxu0 0.0
  %515 = vmatpush1.msra.mxu0 0.0
  %516 = vmatprep.subr.mxu0 0.0
  %517 = vmatpush1.msra.mxu0 0.0
  %518 = vmatprep.subr.mxu0 0.0
  %519 = vmatpush1.msra.mxu0 0.0
  %520 = vmatprep.subr.mxu0 0.0
  %521 = vmatpush1.msra.mxu0 0.0
  %522 = vmatprep.subr.mxu0 0.0
  %523 = vmatpush1.msra.mxu0 0.0
  %524 = vmatprep.subr.mxu0 0.0
  %525 = vmatpush1.msra.mxu0 0.0
  %526 = vmatprep.subr.mxu0 0.0
  %527 = vmatpush1.msra.mxu0 0.0
  %528 = vmatprep.subr.mxu0 0.0
  %529 = vmatpush1.msra.mxu0 0.0
  %530 = vmatprep.subr.mxu0 0.0
  %531 = vmatpush1.msra.mxu0 0.0
  %532 = vmatprep.subr.mxu0 0.0
  %533 = vmatpush1.msra.mxu0 0.0
  %534 = vmatprep.subr.mxu0 0.0
  %535 = vmatpush1.msra.mxu0 0.0
  %536 = vmatprep.subr.mxu0 0.0
  %537 = vmatpush1.msra.mxu0 0.0
  %538 = vmatprep.subr.mxu0 0.0
  %539 = vmatpush1.msra.mxu0 0.0
  %540 = vmatprep.subr.mxu0 0.0
  %541 = vmatpush1.msra.mxu0 0.0
  %542 = vmatprep.subr.mxu0 0.0
  %543 = vmatpush1.msra.mxu0 0.0
  %544 = vmatprep.subr.mxu0 0.0
  %545 = vmatpush1.msra.mxu0 0.0
  %546 = vmatprep.subr.mxu0 0.0
  %547 = vmatpush1.msra.mxu0 0.0
  %548 = vmatprep.mubr.f32.mxu0 0.0
  %549 = vmatmul.mubr.f32.gmra.mrb[0].mxu0 %v322
  %v550 = vpop.f32.mrb[0].mxu0
  %v551 = vadd.f32 %v317, %v550
  %v552 = vpop.f32.mrb[0].mxu0
  %v553 = vadd.f32 %v319, %v552
  %554 = vdwg.mxu0
  %555 = vrot.lane.b32.xlu0 %v30, 17
  %v556 = vpop.permute.xlu0 %555
  %557 = vrot.lane.b32.xlu0 %v36, 17
  %v558 = vpop.permute.xlu0 %557
  %559 = vrot.lane.b32.xlu0 %v31, 17
  %v560 = vpop.permute.xlu0 %559
  %561 = vrot.lane.b32.xlu0 %v37, 17
  %v562 = vpop.permute.xlu0 %561
  %563 = vrot.lane.b32.xlu0 %v32, 17
  %v564 = vpop.permute.xlu0 %563
  %565 = vrot.lane.b32.xlu0 %v38, 17
  %v566 = vpop.permute.xlu0 %565
  %vm567 = vcmp.lt.s32.totalorder %v55, 17
  %v568 = vsel %vm567, %v564, %v566
  %v569 = vsel %vm567, %v562, %v564
  %v570 = vsel %vm567, %v560, %v562
  %v571 = vsel %vm567, %v558, %v560
  %v572 = vsel %vm567, %v556, %v558
  %v573 = vsel %vm567, %v566, %v556
  %s574 = scalar_lea.vmem %s2, 16
  %v575 = vld [vmem:[%s574] sm:$0xff]
  %v577 = vsel %vm85, %v575, 0
  %v580 = vsel %vm89, %v573, 0
  %v583 = vsel %vm89, %v572, 0
  %v586 = vsel %vm89, %v571, 0
  %v589 = vsel %vm89, %v570, 0
  %v592 = vsel %vm89, %v569, 0
  %v595 = vsel %vm89, %v568, 0
  %597 = vmatprep.subr.mxu0 %v583
  %598 = vmatpush1.msra.mxu0 %v580
  %599 = vmatprep.subr.mxu0 0.0
  %600 = vmatpush1.msra.mxu0 0.0
  %601 = vmatprep.subr.mxu0 0.0
  %602 = vmatpush1.msra.mxu0 0.0
  %603 = vmatprep.subr.mxu0 0.0
  %604 = vmatpush1.msra.mxu0 0.0
  %605 = vmatprep.subr.mxu0 0.0
  %606 = vmatpush1.msra.mxu0 0.0
  %607 = vmatprep.subr.mxu0 0.0
  %608 = vmatpush1.msra.mxu0 0.0
  %609 = vmatprep.subr.mxu0 0.0
  %610 = vmatpush1.msra.mxu0 0.0
  %611 = vmatprep.subr.mxu0 0.0
  %612 = vmatpush1.msra.mxu0 0.0
  %613 = vmatprep.subr.mxu0 0.0
  %614 = vmatpush1.msra.mxu0 0.0
  %615 = vmatprep.subr.mxu0 0.0
  %616 = vmatpush1.msra.mxu0 0.0
  %617 = vmatprep.subr.mxu0 0.0
  %618 = vmatpush1.msra.mxu0 0.0
  %619 = vmatprep.subr.mxu0 0.0
  %620 = vmatpush1.msra.mxu0 0.0
  %621 = vmatprep.subr.mxu0 0.0
  %622 = vmatpush1.msra.mxu0 0.0
  %623 = vmatprep.subr.mxu0 0.0
  %624 = vmatpush1.msra.mxu0 0.0
  %625 = vmatprep.subr.mxu0 0.0
  %626 = vmatpush1.msra.mxu0 0.0
  %627 = vmatprep.subr.mxu0 0.0
  %628 = vmatpush1.msra.mxu0 0.0
  %629 = vmatprep.subr.mxu0 0.0
  %630 = vmatpush1.msra.mxu0 0.0
  %631 = vmatprep.subr.mxu0 0.0
  %632 = vmatpush1.msra.mxu0 0.0
  %633 = vmatprep.subr.mxu0 0.0
  %634 = vmatpush1.msra.mxu0 0.0
  %635 = vmatprep.subr.mxu0 0.0
  %636 = vmatpush1.msra.mxu0 0.0
  %637 = vmatprep.subr.mxu0 0.0
  %638 = vmatpush1.msra.mxu0 0.0
  %639 = vmatprep.subr.mxu0 0.0
  %640 = vmatpush1.msra.mxu0 0.0
  %641 = vmatprep.subr.mxu0 0.0
  %642 = vmatpush1.msra.mxu0 0.0
  %643 = vmatprep.subr.mxu0 0.0
  %644 = vmatpush1.msra.mxu0 0.0
  %645 = vmatprep.subr.mxu0 0.0
  %646 = vmatpush1.msra.mxu0 0.0
  %647 = vmatprep.subr.mxu0 0.0
  %648 = vmatpush1.msra.mxu0 0.0
  %649 = vmatprep.subr.mxu0 0.0
  %650 = vmatpush1.msra.mxu0 0.0
  %651 = vmatprep.subr.mxu0 0.0
  %652 = vmatpush1.msra.mxu0 0.0
  %653 = vmatprep.subr.mxu0 0.0
  %654 = vmatpush1.msra.mxu0 0.0
  %655 = vmatprep.subr.mxu0 0.0
  %656 = vmatpush1.msra.mxu0 0.0
  %657 = vmatprep.subr.mxu0 0.0
  %658 = vmatpush1.msra.mxu0 0.0
  %659 = vmatprep.subr.mxu0 0.0
  %660 = vmatpush1.msra.mxu0 0.0
  %661 = vmatprep.mubr.f32.mxu0 0.0
  %662 = vmatmul.mubr.f32.gmra.mrb[0].mxu0 %v577
  %v663 = vpop.f32.mrb[0].mxu0
  %v664 = vadd.f32 0.0, %v663
  %v665 = vpop.f32.mrb[0].mxu0
  %v666 = vadd.f32 0.0, %v665
  %667 = vdwg.mxu0
  %668 = vmatprep.subr.mxu0 %v589
  %669 = vmatpush1.msra.mxu0 %v586
  %670 = vmatprep.subr.mxu0 0.0
  %671 = vmatpush1.msra.mxu0 0.0
  %672 = vmatprep.subr.mxu0 0.0
  %673 = vmatpush1.msra.mxu0 0.0
  %674 = vmatprep.subr.mxu0 0.0
  %675 = vmatpush1.msra.mxu0 0.0
  %676 = vmatprep.subr.mxu0 0.0
  %677 = vmatpush1.msra.mxu0 0.0
  %678 = vmatprep.subr.mxu0 0.0
  %679 = vmatpush1.msra.mxu0 0.0
  %680 = vmatprep.subr.mxu0 0.0
  %681 = vmatpush1.msra.mxu0 0.0
  %682 = vmatprep.subr.mxu0 0.0
  %683 = vmatpush1.msra.mxu0 0.0
  %684 = vmatprep.subr.mxu0 0.0
  %685 = vmatpush1.msra.mxu0 0.0
  %686 = vmatprep.subr.mxu0 0.0
  %687 = vmatpush1.msra.mxu0 0.0
  %688 = vmatprep.subr.mxu0 0.0
  %689 = vmatpush1.msra.mxu0 0.0
  %690 = vmatprep.subr.mxu0 0.0
  %691 = vmatpush1.msra.mxu0 0.0
  %692 = vmatprep.subr.mxu0 0.0
  %693 = vmatpush1.msra.mxu0 0.0
  %694 = vmatprep.subr.mxu0 0.0
  %695 = vmatpush1.msra.mxu0 0.0
  %696 = vmatprep.subr.mxu0 0.0
  %697 = vmatpush1.msra.mxu0 0.0
  %698 = vmatprep.subr.mxu0 0.0
  %699 = vmatpush1.msra.mxu0 0.0
  %700 = vmatprep.subr.mxu0 0.0
  %701 = vmatpush1.msra.mxu0 0.0
  %702 = vmatprep.subr.mxu0 0.0
  %703 = vmatpush1.msra.mxu0 0.0
  %704 = vmatprep.subr.mxu0 0.0
  %705 = vmatpush1.msra.mxu0 0.0
  %706 = vmatprep.subr.mxu0 0.0
  %707 = vmatpush1.msra.mxu0 0.0
  %708 = vmatprep.subr.mxu0 0.0
  %709 = vmatpush1.msra.mxu0 0.0
  %710 = vmatprep.subr.mxu0 0.0
  %711 = vmatpush1.msra.mxu0 0.0
  %712 = vmatprep.subr.mxu0 0.0
  %713 = vmatpush1.msra.mxu0 0.0
  %714 = vmatprep.subr.mxu0 0.0
  %715 = vmatpush1.msra.mxu0 0.0
  %716 = vmatprep.subr.mxu0 0.0
  %717 = vmatpush1.msra.mxu0 0.0
  %718 = vmatprep.subr.mxu0 0.0
  %719 = vmatpush1.msra.mxu0 0.0
  %720 = vmatprep.subr.mxu0 0.0
  %721 = vmatpush1.msra.mxu0 0.0
  %722 = vmatprep.subr.mxu0 0.0
  %723 = vmatpush1.msra.mxu0 0.0
  %724 = vmatprep.subr.mxu0 0.0
  %725 = vmatpush1.msra.mxu0 0.0
  %726 = vmatprep.subr.mxu0 0.0
  %727 = vmatpush1.msra.mxu0 0.0
  %728 = vmatprep.subr.mxu0 0.0
  %729 = vmatpush1.msra.mxu0 0.0
  %730 = vmatprep.subr.mxu0 0.0
  %731 = vmatpush1.msra.mxu0 0.0
  %732 = vmatprep.mubr.f32.mxu0 0.0
  %733 = vmatmul.mubr.f32.gmra.mrb[0].mxu0 %v577
  %v734 = vpop.f32.mrb[0].mxu0
  %v735 = vadd.f32 0.0, %v734
  %v736 = vpop.f32.mrb[0].mxu0
  %v737 = vadd.f32 0.0, %v736
  %738 = vdwg.mxu0
  %739 = vmatprep.subr.mxu0 %v595
  %740 = vmatpush1.msra.mxu0 %v592
  %741 = vmatprep.subr.mxu0 0.0
  %742 = vmatpush1.msra.mxu0 0.0
  %743 = vmatprep.subr.mxu0 0.0
  %744 = vmatpush1.msra.mxu0 0.0
  %745 = vmatprep.subr.mxu0 0.0
  %746 = vmatpush1.msra.mxu0 0.0
  %747 = vmatprep.subr.mxu0 0.0
  %748 = vmatpush1.msra.mxu0 0.0
  %749 = vmatprep.subr.mxu0 0.0
  %750 = vmatpush1.msra.mxu0 0.0
  %751 = vmatprep.subr.mxu0 0.0
  %752 = vmatpush1.msra.mxu0 0.0
  %753 = vmatprep.subr.mxu0 0.0
  %754 = vmatpush1.msra.mxu0 0.0
  %755 = vmatprep.subr.mxu0 0.0
  %756 = vmatpush1.msra.mxu0 0.0
  %757 = vmatprep.subr.mxu0 0.0
  %758 = vmatpush1.msra.mxu0 0.0
  %759 = vmatprep.subr.mxu0 0.0
  %760 = vmatpush1.msra.mxu0 0.0
  %761 = vmatprep.subr.mxu0 0.0
  %762 = vmatpush1.msra.mxu0 0.0
  %763 = vmatprep.subr.mxu0 0.0
  %764 = vmatpush1.msra.mxu0 0.0
  %765 = vmatprep.subr.mxu0 0.0
  %766 = vmatpush1.msra.mxu0 0.0
  %767 = vmatprep.subr.mxu0 0.0
  %768 = vmatpush1.msra.mxu0 0.0
  %769 = vmatprep.subr.mxu0 0.0
  %770 = vmatpush1.msra.mxu0 0.0
  %771 = vmatprep.subr.mxu0 0.0
  %772 = vmatpush1.msra.mxu0 0.0
  %773 = vmatprep.subr.mxu0 0.0
  %774 = vmatpush1.msra.mxu0 0.0
  %775 = vmatprep.subr.mxu0 0.0
  %776 = vmatpush1.msra.mxu0 0.0
  %777 = vmatprep.subr.mxu0 0.0
  %778 = vmatpush1.msra.mxu0 0.0
  %779 = vmatprep.subr.mxu0 0.0
  %780 = vmatpush1.msra.mxu0 0.0
  %781 = vmatprep.subr.mxu0 0.0
  %782 = vmatpush1.msra.mxu0 0.0
  %783 = vmatprep.subr.mxu0 0.0
  %784 = vmatpush1.msra.mxu0 0.0
  %785 = vmatprep.subr.mxu0 0.0
  %786 = vmatpush1.msra.mxu0 0.0
  %787 = vmatprep.subr.mxu0 0.0
  %788 = vmatpush1.msra.mxu0 0.0
  %789 = vmatprep.subr.mxu0 0.0
  %790 = vmatpush1.msra.mxu0 0.0
  %791 = vmatprep.subr.mxu0 0.0
  %792 = vmatpush1.msra.mxu0 0.0
  %793 = vmatprep.subr.mxu0 0.0
  %794 = vmatpush1.msra.mxu0 0.0
  %795 = vmatprep.subr.mxu0 0.0
  %796 = vmatpush1.msra.mxu0 0.0
  %797 = vmatprep.subr.mxu0 0.0
  %798 = vmatpush1.msra.mxu0 0.0
  %799 = vmatprep.subr.mxu0 0.0
  %800 = vmatpush1.msra.mxu0 0.0
  %801 = vmatprep.subr.mxu0 0.0
  %802 = vmatpush1.msra.mxu0 0.0
  %803 = vmatprep.mubr.f32.mxu0 0.0
  %804 = vmatmul.mubr.f32.gmra.mrb[0].mxu0 %v577
  %v805 = vpop.f32.mrb[0].mxu0
  %v806 = vadd.f32 0.0, %v805
  %v807 = vpop.f32.mrb[0].mxu0
  %v808 = vadd.f32 0.0, %v807
  %809 = vdwg.mxu0
  %v810 = vadd.f32 %v409, %v664
  %v811 = vadd.f32 %v411, %v666
  %v812 = vadd.f32 %v480, %v735
  %v813 = vadd.f32 %v482, %v737
  %v814 = vadd.f32 %v551, %v806
  %v815 = vadd.f32 %v553, %v808
  %816 = vrot.lane.b32.xlu0 %v30, 1
  %v817 = vpop.permute.xlu0 %816
  %818 = vrot.lane.b32.xlu0 %v36, 1
  %v819 = vpop.permute.xlu0 %818
  %820 = vrot.lane.b32.xlu0 %v31, 1
  %v821 = vpop.permute.xlu0 %820
  %822 = vrot.lane.b32.xlu0 %v37, 1
  %v823 = vpop.permute.xlu0 %822
  %824 = vrot.lane.b32.xlu0 %v32, 1
  %v825 = vpop.permute.xlu0 %824
  %826 = vrot.lane.b32.xlu0 %v38, 1
  %v827 = vpop.permute.xlu0 %826
  %vm828 = vcmp.lt.s32.totalorder %v55, 1
  %v829 = vsel %vm828, %v825, %v827
  %v830 = vsel %vm828, %v823, %v825
  %v831 = vsel %vm828, %v821, %v823
  %v832 = vsel %vm828, %v819, %v821
  %v833 = vsel %vm828, %v817, %v819
  %v834 = vsel %vm828, %v827, %v817
  %s835 = scalar_lea.vmem %s2, 24
  %v836 = vld [vmem:[%s835] sm:$0xff]
  %v838 = vsel %vm85, %v836, 0
  %v841 = vsel %vm89, %v834, 0
  %v844 = vsel %vm89, %v833, 0
  %v847 = vsel %vm89, %v832, 0
  %v850 = vsel %vm89, %v831, 0
  %v853 = vsel %vm89, %v830, 0
  %v856 = vsel %vm89, %v829, 0
  %858 = vmatprep.subr.mxu0 %v844
  %859 = vmatpush1.msra.mxu0 %v841
  %860 = vmatprep.subr.mxu0 0.0
  %861 = vmatpush1.msra.mxu0 0.0
  %862 = vmatprep.subr.mxu0 0.0
  %863 = vmatpush1.msra.mxu0 0.0
  %864 = vmatprep.subr.mxu0 0.0
  %865 = vmatpush1.msra.mxu0 0.0
  %866 = vmatprep.subr.mxu0 0.0
  %867 = vmatpush1.msra.mxu0 0.0
  %868 = vmatprep.subr.mxu0 0.0
  %869 = vmatpush1.msra.mxu0 0.0
  %870 = vmatprep.subr.mxu0 0.0
  %871 = vmatpush1.msra.mxu0 0.0
  %872 = vmatprep.subr.mxu0 0.0
  %873 = vmatpush1.msra.mxu0 0.0
  %874 = vmatprep.subr.mxu0 0.0
  %875 = vmatpush1.msra.mxu0 0.0
  %876 = vmatprep.subr.mxu0 0.0
  %877 = vmatpush1.msra.mxu0 0.0
  %878 = vmatprep.subr.mxu0 0.0
  %879 = vmatpush1.msra.mxu0 0.0
  %880 = vmatprep.subr.mxu0 0.0
  %881 = vmatpush1.msra.mxu0 0.0
  %882 = vmatprep.subr.mxu0 0.0
  %883 = vmatpush1.msra.mxu0 0.0
  %884 = vmatprep.subr.mxu0 0.0
  %885 = vmatpush1.msra.mxu0 0.0
  %886 = vmatprep.subr.mxu0 0.0
  %887 = vmatpush1.msra.mxu0 0.0
  %888 = vmatprep.subr.mxu0 0.0
  %889 = vmatpush1.msra.mxu0 0.0
  %890 = vmatprep.subr.mxu0 0.0
  %891 = vmatpush1.msra.mxu0 0.0
  %892 = vmatprep.subr.mxu0 0.0
  %893 = vmatpush1.msra.mxu0 0.0
  %894 = vmatprep.subr.mxu0 0.0
  %895 = vmatpush1.msra.mxu0 0.0
  %896 = vmatprep.subr.mxu0 0.0
  %897 = vmatpush1.msra.mxu0 0.0
  %898 = vmatprep.subr.mxu0 0.0
  %899 = vmatpush1.msra.mxu0 0.0
  %900 = vmatprep.subr.mxu0 0.0
  %901 = vmatpush1.msra.mxu0 0.0
  %902 = vmatprep.subr.mxu0 0.0
  %903 = vmatpush1.msra.mxu0 0.0
  %904 = vmatprep.subr.mxu0 0.0
  %905 = vmatpush1.msra.mxu0 0.0
  %906 = vmatprep.subr.mxu0 0.0
  %907 = vmatpush1.msra.mxu0 0.0
  %908 = vmatprep.subr.mxu0 0.0
  %909 = vmatpush1.msra.mxu0 0.0
  %910 = vmatprep.subr.mxu0 0.0
  %911 = vmatpush1.msra.mxu0 0.0
  %912 = vmatprep.subr.mxu0 0.0
  %913 = vmatpush1.msra.mxu0 0.0
  %914 = vmatprep.subr.mxu0 0.0
  %915 = vmatpush1.msra.mxu0 0.0
  %916 = vmatprep.subr.mxu0 0.0
  %917 = vmatpush1.msra.mxu0 0.0
  %918 = vmatprep.subr.mxu0 0.0
  %919 = vmatpush1.msra.mxu0 0.0
  %920 = vmatprep.subr.mxu0 0.0
  %921 = vmatpush1.msra.mxu0 0.0
  %922 = vmatprep.mubr.f32.mxu0 0.0
  %923 = vmatmul.mubr.f32.gmra.mrb[0].mxu0 %v838
  %v924 = vpop.f32.mrb[0].mxu0
  %v925 = vadd.f32 0.0, %v924
  %v926 = vpop.f32.mrb[0].mxu0
  %v927 = vadd.f32 0.0, %v926
  %928 = vdwg.mxu0
  %929 = vmatprep.subr.mxu0 %v850
  %930 = vmatpush1.msra.mxu0 %v847
  %931 = vmatprep.subr.mxu0 0.0
  %932 = vmatpush1.msra.mxu0 0.0
  %933 = vmatprep.subr.mxu0 0.0
  %934 = vmatpush1.msra.mxu0 0.0
  %935 = vmatprep.subr.mxu0 0.0
  %936 = vmatpush1.msra.mxu0 0.0
  %937 = vmatprep.subr.mxu0 0.0
  %938 = vmatpush1.msra.mxu0 0.0
  %939 = vmatprep.subr.mxu0 0.0
  %940 = vmatpush1.msra.mxu0 0.0
  %941 = vmatprep.subr.mxu0 0.0
  %942 = vmatpush1.msra.mxu0 0.0
  %943 = vmatprep.subr.mxu0 0.0
  %944 = vmatpush1.msra.mxu0 0.0
  %945 = vmatprep.subr.mxu0 0.0
  %946 = vmatpush1.msra.mxu0 0.0
  %947 = vmatprep.subr.mxu0 0.0
  %948 = vmatpush1.msra.mxu0 0.0
  %949 = vmatprep.subr.mxu0 0.0
  %950 = vmatpush1.msra.mxu0 0.0
  %951 = vmatprep.subr.mxu0 0.0
  %952 = vmatpush1.msra.mxu0 0.0
  %953 = vmatprep.subr.mxu0 0.0
  %954 = vmatpush1.msra.mxu0 0.0
  %955 = vmatprep.subr.mxu0 0.0
  %956 = vmatpush1.msra.mxu0 0.0
  %957 = vmatprep.subr.mxu0 0.0
  %958 = vmatpush1.msra.mxu0 0.0
  %959 = vmatprep.subr.mxu0 0.0
  %960 = vmatpush1.msra.mxu0 0.0
  %961 = vmatprep.subr.mxu0 0.0
  %962 = vmatpush1.msra.mxu0 0.0
  %963 = vmatprep.subr.mxu0 0.0
  %964 = vmatpush1.msra.mxu0 0.0
  %965 = vmatprep.subr.mxu0 0.0
  %966 = vmatpush1.msra.mxu0 0.0
  %967 = vmatprep.subr.mxu0 0.0
  %968 = vmatpush1.msra.mxu0 0.0
  %969 = vmatprep.subr.mxu0 0.0
  %970 = vmatpush1.msra.mxu0 0.0
  %971 = vmatprep.subr.mxu0 0.0
  %972 = vmatpush1.msra.mxu0 0.0
  %973 = vmatprep.subr.mxu0 0.0
  %974 = vmatpush1.msra.mxu0 0.0
  %975 = vmatprep.subr.mxu0 0.0
  %976 = vmatpush1.msra.mxu0 0.0
  %977 = vmatprep.subr.mxu0 0.0
  %978 = vmatpush1.msra.mxu0 0.0
  %979 = vmatprep.subr.mxu0 0.0
  %980 = vmatpush1.msra.mxu0 0.0
  %981 = vmatprep.subr.mxu0 0.0
  %982 = vmatpush1.msra.mxu0 0.0
  %983 = vmatprep.subr.mxu0 0.0
  %984 = vmatpush1.msra.mxu0 0.0
  %985 = vmatprep.subr.mxu0 0.0
  %986 = vmatpush1.msra.mxu0 0.0
  %987 = vmatprep.subr.mxu0 0.0
  %988 = vmatpush1.msra.mxu0 0.0
  %989 = vmatprep.subr.mxu0 0.0
  %990 = vmatpush1.msra.mxu0 0.0
  %991 = vmatprep.subr.mxu0 0.0
  %992 = vmatpush1.msra.mxu0 0.0
  %993 = vmatprep.mubr.f32.mxu0 0.0
  %994 = vmatmul.mubr.f32.gmra.mrb[0].mxu0 %v838
  %v995 = vpop.f32.mrb[0].mxu0
  %v996 = vadd.f32 0.0, %v995
  %v997 = vpop.f32.mrb[0].mxu0
  %v998 = vadd.f32 0.0, %v997
  %999 = vdwg.mxu0
  %1000 = vmatprep.subr.mxu0 %v856
  %1001 = vmatpush1.msra.mxu0 %v853
  %1002 = vmatprep.subr.mxu0 0.0
  %1003 = vmatpush1.msra.mxu0 0.0
  %1004 = vmatprep.subr.mxu0 0.0
  %1005 = vmatpush1.msra.mxu0 0.0
  %1006 = vmatprep.subr.mxu0 0.0
  %1007 = vmatpush1.msra.mxu0 0.0
  %1008 = vmatprep.subr.mxu0 0.0
  %1009 = vmatpush1.msra.mxu0 0.0
  %1010 = vmatprep.subr.mxu0 0.0
  %1011 = vmatpush1.msra.mxu0 0.0
  %1012 = vmatprep.subr.mxu0 0.0
  %1013 = vmatpush1.msra.mxu0 0.0
  %1014 = vmatprep.subr.mxu0 0.0
  %1015 = vmatpush1.msra.mxu0 0.0
  %1016 = vmatprep.subr.mxu0 0.0
  %1017 = vmatpush1.msra.mxu0 0.0
  %1018 = vmatprep.subr.mxu0 0.0
  %1019 = vmatpush1.msra.mxu0 0.0
  %1020 = vmatprep.subr.mxu0 0.0
  %1021 = vmatpush1.msra.mxu0 0.0
  %1022 = vmatprep.subr.mxu0 0.0
  %1023 = vmatpush1.msra.mxu0 0.0
  %1024 = vmatprep.subr.mxu0 0.0
  %1025 = vmatpush1.msra.mxu0 0.0
  %1026 = vmatprep.subr.mxu0 0.0
  %1027 = vmatpush1.msra.mxu0 0.0
  %1028 = vmatprep.subr.mxu0 0.0
  %1029 = vmatpush1.msra.mxu0 0.0
  %1030 = vmatprep.subr.mxu0 0.0
  %1031 = vmatpush1.msra.mxu0 0.0
  %1032 = vmatprep.subr.mxu0 0.0
  %1033 = vmatpush1.msra.mxu0 0.0
  %1034 = vmatprep.subr.mxu0 0.0
  %1035 = vmatpush1.msra.mxu0 0.0
  %1036 = vmatprep.subr.mxu0 0.0
  %1037 = vmatpush1.msra.mxu0 0.0
  %1038 = vmatprep.subr.mxu0 0.0
  %1039 = vmatpush1.msra.mxu0 0.0
  %1040 = vmatprep.subr.mxu0 0.0
  %1041 = vmatpush1.msra.mxu0 0.0
  %1042 = vmatprep.subr.mxu0 0.0
  %1043 = vmatpush1.msra.mxu0 0.0
  %1044 = vmatprep.subr.mxu0 0.0
  %1045 = vmatpush1.msra.mxu0 0.0
  %1046 = vmatprep.subr.mxu0 0.0
  %1047 = vmatpush1.msra.mxu0 0.0
  %1048 = vmatprep.subr.mxu0 0.0
  %1049 = vmatpush1.msra.mxu0 0.0
  %1050 = vmatprep.subr.mxu0 0.0
  %1051 = vmatpush1.msra.mxu0 0.0
  %1052 = vmatprep.subr.mxu0 0.0
  %1053 = vmatpush1.msra.mxu0 0.0
  %1054 = vmatprep.subr.mxu0 0.0
  %1055 = vmatpush1.msra.mxu0 0.0
  %1056 = vmatprep.subr.mxu0 0.0
  %1057 = vmatpush1.msra.mxu0 0.0
  %1058 = vmatprep.subr.mxu0 0.0
  %1059 = vmatpush1.msra.mxu0 0.0
  %1060 = vmatprep.subr.mxu0 0.0
  %1061 = vmatpush1.msra.mxu0 0.0
  %1062 = vmatprep.subr.mxu0 0.0
  %1063 = vmatpush1.msra.mxu0 0.0
  %1064 = vmatprep.mubr.f32.mxu0 0.0
  %1065 = vmatmul.mubr.f32.gmra.mrb[0].mxu0 %v838
  %v1066 = vpop.f32.mrb[0].mxu0
  %v1067 = vadd.f32 0.0, %v1066
  %v1068 = vpop.f32.mrb[0].mxu0
  %v1069 = vadd.f32 0.0, %v1068
  %1070 = vdwg.mxu0
  %v1071 = vadd.f32 %v810, %v925
  %v1072 = vadd.f32 %v811, %v927
  %v1073 = vadd.f32 %v812, %v996
  %v1074 = vadd.f32 %v813, %v998
  %v1075 = vadd.f32 %v814, %v1067
  %v1076 = vadd.f32 %v815, %v1069
  %s1077 = scalar_lea.vmem %s2, 32
  %v1078 = vld [vmem:[%s1077] sm:$0xff]
  %v1080 = vsel %vm85, %v1078, 0
  %v1082 = vsel %vm89, %v30, 0
  %v1084 = vsel %vm89, %v36, 0
  %v1086 = vsel %vm89, %v31, 0
  %v1088 = vsel %vm89, %v37, 0
  %v1090 = vsel %vm89, %v32, 0
  %v1092 = vsel %vm89, %v38, 0
  %1094 = vmatprep.subr.mxu0 %v1084
  %1095 = vmatpush1.msra.mxu0 %v1082
  %1096 = vmatprep.subr.mxu0 0.0
  %1097 = vmatpush1.msra.mxu0 0.0
  %1098 = vmatprep.subr.mxu0 0.0
  %1099 = vmatpush1.msra.mxu0 0.0
  %1100 = vmatprep.subr.mxu0 0.0
  %1101 = vmatpush1.msra.mxu0 0.0
  %1102 = vmatprep.subr.mxu0 0.0
  %1103 = vmatpush1.msra.mxu0 0.0
  %1104 = vmatprep.subr.mxu0 0.0
  %1105 = vmatpush1.msra.mxu0 0.0
  %1106 = vmatprep.subr.mxu0 0.0
  %1107 = vmatpush1.msra.mxu0 0.0
  %1108 = vmatprep.subr.mxu0 0.0
  %1109 = vmatpush1.msra.mxu0 0.0
  %1110 = vmatprep.subr.mxu0 0.0
  %1111 = vmatpush1.msra.mxu0 0.0
  %1112 = vmatprep.subr.mxu0 0.0
  %1113 = vmatpush1.msra.mxu0 0.0
  %1114 = vmatprep.subr.mxu0 0.0
  %1115 = vmatpush1.msra.mxu0 0.0
  %1116 = vmatprep.subr.mxu0 0.0
  %1117 = vmatpush1.msra.mxu0 0.0
  %1118 = vmatprep.subr.mxu0 0.0
  %1119 = vmatpush1.msra.mxu0 0.0
  %1120 = vmatprep.subr.mxu0 0.0
  %1121 = vmatpush1.msra.mxu0 0.0
  %1122 = vmatprep.subr.mxu0 0.0
  %1123 = vmatpush1.msra.mxu0 0.0
  %1124 = vmatprep.subr.mxu0 0.0
  %1125 = vmatpush1.msra.mxu0 0.0
  %1126 = vmatprep.subr.mxu0 0.0
  %1127 = vmatpush1.msra.mxu0 0.0
  %1128 = vmatprep.subr.mxu0 0.0
  %1129 = vmatpush1.msra.mxu0 0.0
  %1130 = vmatprep.subr.mxu0 0.0
  %1131 = vmatpush1.msra.mxu0 0.0
  %1132 = vmatprep.subr.mxu0 0.0
  %1133 = vmatpush1.msra.mxu0 0.0
  %1134 = vmatprep.subr.mxu0 0.0
  %1135 = vmatpush1.msra.mxu0 0.0
  %1136 = vmatprep.subr.mxu0 0.0
  %1137 = vmatpush1.msra.mxu0 0.0
  %1138 = vmatprep.subr.mxu0 0.0
  %1139 = vmatpush1.msra.mxu0 0.0
  %1140 = vmatprep.subr.mxu0 0.0
  %1141 = vmatpush1.msra.mxu0 0.0
  %1142 = vmatprep.subr.mxu0 0.0
  %1143 = vmatpush1.msra.mxu0 0.0
  %1144 = vmatprep.subr.mxu0 0.0
  %1145 = vmatpush1.msra.mxu0 0.0
  %1146 = vmatprep.subr.mxu0 0.0
  %1147 = vmatpush1.msra.mxu0 0.0
  %1148 = vmatprep.subr.mxu0 0.0
  %1149 = vmatpush1.msra.mxu0 0.0
  %1150 = vmatprep.subr.mxu0 0.0
  %1151 = vmatpush1.msra.mxu0 0.0
  %1152 = vmatprep.subr.mxu0 0.0
  %1153 = vmatpush1.msra.mxu0 0.0
  %1154 = vmatprep.subr.mxu0 0.0
  %1155 = vmatpush1.msra.mxu0 0.0
  %1156 = vmatprep.subr.mxu0 0.0
  %1157 = vmatpush1.msra.mxu0 0.0
  %1158 = vmatprep.mubr.f32.mxu0 0.0
  %1159 = vmatmul.mubr.f32.gmra.mrb[0].mxu0 %v1080
  %v1160 = vpop.f32.mrb[0].mxu0
  %v1161 = vadd.f32 0.0, %v1160
  %v1162 = vpop.f32.mrb[0].mxu0
  %v1163 = vadd.f32 0.0, %v1162
  %1164 = vdwg.mxu0
  %1165 = vmatprep.subr.mxu0 %v1088
  %1166 = vmatpush1.msra.mxu0 %v1086
  %1167 = vmatprep.subr.mxu0 0.0
  %1168 = vmatpush1.msra.mxu0 0.0
  %1169 = vmatprep.subr.mxu0 0.0
  %1170 = vmatpush1.msra.mxu0 0.0
  %1171 = vmatprep.subr.mxu0 0.0
  %1172 = vmatpush1.msra.mxu0 0.0
  %1173 = vmatprep.subr.mxu0 0.0
  %1174 = vmatpush1.msra.mxu0 0.0
  %1175 = vmatprep.subr.mxu0 0.0
  %1176 = vmatpush1.msra.mxu0 0.0
  %1177 = vmatprep.subr.mxu0 0.0
  %1178 = vmatpush1.msra.mxu0 0.0
  %1179 = vmatprep.subr.mxu0 0.0
  %1180 = vmatpush1.msra.mxu0 0.0
  %1181 = vmatprep.subr.mxu0 0.0
  %1182 = vmatpush1.msra.mxu0 0.0
  %1183 = vmatprep.subr.mxu0 0.0
  %1184 = vmatpush1.msra.mxu0 0.0
  %1185 = vmatprep.subr.mxu0 0.0
  %1186 = vmatpush1.msra.mxu0 0.0
  %1187 = vmatprep.subr.mxu0 0.0
  %1188 = vmatpush1.msra.mxu0 0.0
  %1189 = vmatprep.subr.mxu0 0.0
  %1190 = vmatpush1.msra.mxu0 0.0
  %1191 = vmatprep.subr.mxu0 0.0
  %1192 = vmatpush1.msra.mxu0 0.0
  %1193 = vmatprep.subr.mxu0 0.0
  %1194 = vmatpush1.msra.mxu0 0.0
  %1195 = vmatprep.subr.mxu0 0.0
  %1196 = vmatpush1.msra.mxu0 0.0
  %1197 = vmatprep.subr.mxu0 0.0
  %1198 = vmatpush1.msra.mxu0 0.0
  %1199 = vmatprep.subr.mxu0 0.0
  %1200 = vmatpush1.msra.mxu0 0.0
  %1201 = vmatprep.subr.mxu0 0.0
  %1202 = vmatpush1.msra.mxu0 0.0
  %1203 = vmatprep.subr.mxu0 0.0
  %1204 = vmatpush1.msra.mxu0 0.0
  %1205 = vmatprep.subr.mxu0 0.0
  %1206 = vmatpush1.msra.mxu0 0.0
  %1207 = vmatprep.subr.mxu0 0.0
  %1208 = vmatpush1.msra.mxu0 0.0
  %1209 = vmatprep.subr.mxu0 0.0
  %1210 = vmatpush1.msra.mxu0 0.0
  %1211 = vmatprep.subr.mxu0 0.0
  %1212 = vmatpush1.msra.mxu0 0.0
  %1213 = vmatprep.subr.mxu0 0.0
  %1214 = vmatpush1.msra.mxu0 0.0
  %1215 = vmatprep.subr.mxu0 0.0
  %1216 = vmatpush1.msra.mxu0 0.0
  %1217 = vmatprep.subr.mxu0 0.0
  %1218 = vmatpush1.msra.mxu0 0.0
  %1219 = vmatprep.subr.mxu0 0.0
  %1220 = vmatpush1.msra.mxu0 0.0
  %1221 = vmatprep.subr.mxu0 0.0
  %1222 = vmatpush1.msra.mxu0 0.0
  %1223 = vmatprep.subr.mxu0 0.0
  %1224 = vmatpush1.msra.mxu0 0.0
  %1225 = vmatprep.subr.mxu0 0.0
  %1226 = vmatpush1.msra.mxu0 0.0
  %1227 = vmatprep.subr.mxu0 0.0
  %1228 = vmatpush1.msra.mxu0 0.0
  %1229 = vmatprep.mubr.f32.mxu0 0.0
  %1230 = vmatmul.mubr.f32.gmra.mrb[0].mxu0 %v1080
  %v1231 = vpop.f32.mrb[0].mxu0
  %v1232 = vadd.f32 0.0, %v1231
  %v1233 = vpop.f32.mrb[0].mxu0
  %v1234 = vadd.f32 0.0, %v1233
  %1235 = vdwg.mxu0
  %1236 = vmatprep.subr.mxu0 %v1092
  %1237 = vmatpush1.msra.mxu0 %v1090
  %1238 = vmatprep.subr.mxu0 0.0
  %1239 = vmatpush1.msra.mxu0 0.0
  %1240 = vmatprep.subr.mxu0 0.0
  %1241 = vmatpush1.msra.mxu0 0.0
  %1242 = vmatprep.subr.mxu0 0.0
  %1243 = vmatpush1.msra.mxu0 0.0
  %1244 = vmatprep.subr.mxu0 0.0
  %1245 = vmatpush1.msra.mxu0 0.0
  %1246 = vmatprep.subr.mxu0 0.0
  %1247 = vmatpush1.msra.mxu0 0.0
  %1248 = vmatprep.subr.mxu0 0.0
  %1249 = vmatpush1.msra.mxu0 0.0
  %1250 = vmatprep.subr.mxu0 0.0
  %1251 = vmatpush1.msra.mxu0 0.0
  %1252 = vmatprep.subr.mxu0 0.0
  %1253 = vmatpush1.msra.mxu0 0.0
  %1254 = vmatprep.subr.mxu0 0.0
  %1255 = vmatpush1.msra.mxu0 0.0
  %1256 = vmatprep.subr.mxu0 0.0
  %1257 = vmatpush1.msra.mxu0 0.0
  %1258 = vmatprep.subr.mxu0 0.0
  %1259 = vmatpush1.msra.mxu0 0.0
  %1260 = vmatprep.subr.mxu0 0.0
  %1261 = vmatpush1.msra.mxu0 0.0
  %1262 = vmatprep.subr.mxu0 0.0
  %1263 = vmatpush1.msra.mxu0 0.0
  %1264 = vmatprep.subr.mxu0 0.0
  %1265 = vmatpush1.msra.mxu0 0.0
  %1266 = vmatprep.subr.mxu0 0.0
  %1267 = vmatpush1.msra.mxu0 0.0
  %1268 = vmatprep.subr.mxu0 0.0
  %1269 = vmatpush1.msra.mxu0 0.0
  %1270 = vmatprep.subr.mxu0 0.0
  %1271 = vmatpush1.msra.mxu0 0.0
  %1272 = vmatprep.subr.mxu0 0.0
  %1273 = vmatpush1.msra.mxu0 0.0
  %1274 = vmatprep.subr.mxu0 0.0
  %1275 = vmatpush1.msra.mxu0 0.0
  %1276 = vmatprep.subr.mxu0 0.0
  %1277 = vmatpush1.msra.mxu0 0.0
  %1278 = vmatprep.subr.mxu0 0.0
  %1279 = vmatpush1.msra.mxu0 0.0
  %1280 = vmatprep.subr.mxu0 0.0
  %1281 = vmatpush1.msra.mxu0 0.0
  %1282 = vmatprep.subr.mxu0 0.0
  %1283 = vmatpush1.msra.mxu0 0.0
  %1284 = vmatprep.subr.mxu0 0.0
  %1285 = vmatpush1.msra.mxu0 0.0
  %1286 = vmatprep.subr.mxu0 0.0
  %1287 = vmatpush1.msra.mxu0 0.0
  %1288 = vmatprep.subr.mxu0 0.0
  %1289 = vmatpush1.msra.mxu0 0.0
  %1290 = vmatprep.subr.mxu0 0.0
  %1291 = vmatpush1.msra.mxu0 0.0
  %1292 = vmatprep.subr.mxu0 0.0
  %1293 = vmatpush1.msra.mxu0 0.0
  %1294 = vmatprep.subr.mxu0 0.0
  %1295 = vmatpush1.msra.mxu0 0.0
  %1296 = vmatprep.subr.mxu0 0.0
  %1297 = vmatpush1.msra.mxu0 0.0
  %1298 = vmatprep.subr.mxu0 0.0
  %1299 = vmatpush1.msra.mxu0 0.0
  %1300 = vmatprep.mubr.f32.mxu0 0.0
  %1301 = vmatmul.mubr.f32.gmra.mrb[0].mxu0 %v1080
  %v1302 = vpop.f32.mrb[0].mxu0
  %v1303 = vadd.f32 0.0, %v1302
  %v1304 = vpop.f32.mrb[0].mxu0
  %v1305 = vadd.f32 0.0, %v1304
  %1306 = vdwg.mxu0
  %v1307 = vadd.f32 %v1071, %v1161
  %v1308 = vadd.f32 %v1072, %v1163
  %v1309 = vadd.f32 %v1073, %v1232
  %v1310 = vadd.f32 %v1074, %v1234
  %v1311 = vadd.f32 %v1075, %v1303
  %v1312 = vadd.f32 %v1076, %v1305
  %1313 = vrot.lane.b32.xlu0 %v30, 127
  %v1314 = vpop.permute.xlu0 %1313
  %1315 = vrot.lane.b32.xlu0 %v36, 127
  %v1316 = vpop.permute.xlu0 %1315
  %1317 = vrot.lane.b32.xlu0 %v31, 127
  %v1318 = vpop.permute.xlu0 %1317
  %1319 = vrot.lane.b32.xlu0 %v37, 127
  %v1320 = vpop.permute.xlu0 %1319
  %1321 = vrot.lane.b32.xlu0 %v32, 127
  %v1322 = vpop.permute.xlu0 %1321
  %1323 = vrot.lane.b32.xlu0 %v38, 127
  %v1324 = vpop.permute.xlu0 %1323
  %vm1325 = vcmp.lt.s32.totalorder %v55, 127
  %v1326 = vsel %vm1325, %v1322, %v1324
  %v1327 = vsel %vm1325, %v1320, %v1322
  %v1328 = vsel %vm1325, %v1318, %v1320
  %v1329 = vsel %vm1325, %v1316, %v1318
  %v1330 = vsel %vm1325, %v1314, %v1316
  %v1331 = vsel %vm1325, %v1324, %v1314
  %s1332 = scalar_lea.vmem %s2, 40
  %v1333 = vld [vmem:[%s1332] sm:$0xff]
  %v1335 = vsel %vm85, %v1333, 0
  %v1338 = vsel %vm89, %v1330, 0
  %v1341 = vsel %vm89, %v1329, 0
  %v1344 = vsel %vm89, %v1328, 0
  %v1347 = vsel %vm89, %v1327, 0
  %v1350 = vsel %vm89, %v1326, 0
  %v1353 = vsel %vm89, %v1331, 0
  %1355 = vmatprep.subr.mxu0 %v1341
  %1356 = vmatpush1.msra.mxu0 %v1338
  %1357 = vmatprep.subr.mxu0 0.0
  %1358 = vmatpush1.msra.mxu0 0.0
  %1359 = vmatprep.subr.mxu0 0.0
  %1360 = vmatpush1.msra.mxu0 0.0
  %1361 = vmatprep.subr.mxu0 0.0
  %1362 = vmatpush1.msra.mxu0 0.0
  %1363 = vmatprep.subr.mxu0 0.0
  %1364 = vmatpush1.msra.mxu0 0.0
  %1365 = vmatprep.subr.mxu0 0.0
  %1366 = vmatpush1.msra.mxu0 0.0
  %1367 = vmatprep.subr.mxu0 0.0
  %1368 = vmatpush1.msra.mxu0 0.0
  %1369 = vmatprep.subr.mxu0 0.0
  %1370 = vmatpush1.msra.mxu0 0.0
  %1371 = vmatprep.subr.mxu0 0.0
  %1372 = vmatpush1.msra.mxu0 0.0
  %1373 = vmatprep.subr.mxu0 0.0
  %1374 = vmatpush1.msra.mxu0 0.0
  %1375 = vmatprep.subr.mxu0 0.0
  %1376 = vmatpush1.msra.mxu0 0.0
  %1377 = vmatprep.subr.mxu0 0.0
  %1378 = vmatpush1.msra.mxu0 0.0
  %1379 = vmatprep.subr.mxu0 0.0
  %1380 = vmatpush1.msra.mxu0 0.0
  %1381 = vmatprep.subr.mxu0 0.0
  %1382 = vmatpush1.msra.mxu0 0.0
  %1383 = vmatprep.subr.mxu0 0.0
  %1384 = vmatpush1.msra.mxu0 0.0
  %1385 = vmatprep.subr.mxu0 0.0
  %1386 = vmatpush1.msra.mxu0 0.0
  %1387 = vmatprep.subr.mxu0 0.0
  %1388 = vmatpush1.msra.mxu0 0.0
  %1389 = vmatprep.subr.mxu0 0.0
  %1390 = vmatpush1.msra.mxu0 0.0
  %1391 = vmatprep.subr.mxu0 0.0
  %1392 = vmatpush1.msra.mxu0 0.0
  %1393 = vmatprep.subr.mxu0 0.0
  %1394 = vmatpush1.msra.mxu0 0.0
  %1395 = vmatprep.subr.mxu0 0.0
  %1396 = vmatpush1.msra.mxu0 0.0
  %1397 = vmatprep.subr.mxu0 0.0
  %1398 = vmatpush1.msra.mxu0 0.0
  %1399 = vmatprep.subr.mxu0 0.0
  %1400 = vmatpush1.msra.mxu0 0.0
  %1401 = vmatprep.subr.mxu0 0.0
  %1402 = vmatpush1.msra.mxu0 0.0
  %1403 = vmatprep.subr.mxu0 0.0
  %1404 = vmatpush1.msra.mxu0 0.0
  %1405 = vmatprep.subr.mxu0 0.0
  %1406 = vmatpush1.msra.mxu0 0.0
  %1407 = vmatprep.subr.mxu0 0.0
  %1408 = vmatpush1.msra.mxu0 0.0
  %1409 = vmatprep.subr.mxu0 0.0
  %1410 = vmatpush1.msra.mxu0 0.0
  %1411 = vmatprep.subr.mxu0 0.0
  %1412 = vmatpush1.msra.mxu0 0.0
  %1413 = vmatprep.subr.mxu0 0.0
  %1414 = vmatpush1.msra.mxu0 0.0
  %1415 = vmatprep.subr.mxu0 0.0
  %1416 = vmatpush1.msra.mxu0 0.0
  %1417 = vmatprep.subr.mxu0 0.0
  %1418 = vmatpush1.msra.mxu0 0.0
  %1419 = vmatprep.mubr.f32.mxu0 0.0
  %1420 = vmatmul.mubr.f32.gmra.mrb[0].mxu0 %v1335
  %v1421 = vpop.f32.mrb[0].mxu0
  %v1422 = vadd.f32 0.0, %v1421
  %v1423 = vpop.f32.mrb[0].mxu0
  %v1424 = vadd.f32 0.0, %v1423
  %1425 = vdwg.mxu0
  %1426 = vmatprep.subr.mxu0 %v1347
  %1427 = vmatpush1.msra.mxu0 %v1344
  %1428 = vmatprep.subr.mxu0 0.0
  %1429 = vmatpush1.msra.mxu0 0.0
  %1430 = vmatprep.subr.mxu0 0.0
  %1431 = vmatpush1.msra.mxu0 0.0
  %1432 = vmatprep.subr.mxu0 0.0
  %1433 = vmatpush1.msra.mxu0 0.0
  %1434 = vmatprep.subr.mxu0 0.0
  %1435 = vmatpush1.msra.mxu0 0.0
  %1436 = vmatprep.subr.mxu0 0.0
  %1437 = vmatpush1.msra.mxu0 0.0
  %1438 = vmatprep.subr.mxu0 0.0
  %1439 = vmatpush1.msra.mxu0 0.0
  %1440 = vmatprep.subr.mxu0 0.0
  %1441 = vmatpush1.msra.mxu0 0.0
  %1442 = vmatprep.subr.mxu0 0.0
  %1443 = vmatpush1.msra.mxu0 0.0
  %1444 = vmatprep.subr.mxu0 0.0
  %1445 = vmatpush1.msra.mxu0 0.0
  %1446 = vmatprep.subr.mxu0 0.0
  %1447 = vmatpush1.msra.mxu0 0.0
  %1448 = vmatprep.subr.mxu0 0.0
  %1449 = vmatpush1.msra.mxu0 0.0
  %1450 = vmatprep.subr.mxu0 0.0
  %1451 = vmatpush1.msra.mxu0 0.0
  %1452 = vmatprep.subr.mxu0 0.0
  %1453 = vmatpush1.msra.mxu0 0.0
  %1454 = vmatprep.subr.mxu0 0.0
  %1455 = vmatpush1.msra.mxu0 0.0
  %1456 = vmatprep.subr.mxu0 0.0
  %1457 = vmatpush1.msra.mxu0 0.0
  %1458 = vmatprep.subr.mxu0 0.0
  %1459 = vmatpush1.msra.mxu0 0.0
  %1460 = vmatprep.subr.mxu0 0.0
  %1461 = vmatpush1.msra.mxu0 0.0
  %1462 = vmatprep.subr.mxu0 0.0
  %1463 = vmatpush1.msra.mxu0 0.0
  %1464 = vmatprep.subr.mxu0 0.0
  %1465 = vmatpush1.msra.mxu0 0.0
  %1466 = vmatprep.subr.mxu0 0.0
  %1467 = vmatpush1.msra.mxu0 0.0
  %1468 = vmatprep.subr.mxu0 0.0
  %1469 = vmatpush1.msra.mxu0 0.0
  %1470 = vmatprep.subr.mxu0 0.0
  %1471 = vmatpush1.msra.mxu0 0.0
  %1472 = vmatprep.subr.mxu0 0.0
  %1473 = vmatpush1.msra.mxu0 0.0
  %1474 = vmatprep.subr.mxu0 0.0
  %1475 = vmatpush1.msra.mxu0 0.0
  %1476 = vmatprep.subr.mxu0 0.0
  %1477 = vmatpush1.msra.mxu0 0.0
  %1478 = vmatprep.subr.mxu0 0.0
  %1479 = vmatpush1.msra.mxu0 0.0
  %1480 = vmatprep.subr.mxu0 0.0
  %1481 = vmatpush1.msra.mxu0 0.0
  %1482 = vmatprep.subr.mxu0 0.0
  %1483 = vmatpush1.msra.mxu0 0.0
  %1484 = vmatprep.subr.mxu0 0.0
  %1485 = vmatpush1.msra.mxu0 0.0
  %1486 = vmatprep.subr.mxu0 0.0
  %1487 = vmatpush1.msra.mxu0 0.0
  %1488 = vmatprep.subr.mxu0 0.0
  %1489 = vmatpush1.msra.mxu0 0.0
  %1490 = vmatprep.mubr.f32.mxu0 0.0
  %1491 = vmatmul.mubr.f32.gmra.mrb[0].mxu0 %v1335
  %v1492 = vpop.f32.mrb[0].mxu0
  %v1493 = vadd.f32 0.0, %v1492
  %v1494 = vpop.f32.mrb[0].mxu0
  %v1495 = vadd.f32 0.0, %v1494
  %1496 = vdwg.mxu0
  %1497 = vmatprep.subr.mxu0 %v1353
  %1498 = vmatpush1.msra.mxu0 %v1350
  %1499 = vmatprep.subr.mxu0 0.0
  %1500 = vmatpush1.msra.mxu0 0.0
  %1501 = vmatprep.subr.mxu0 0.0
  %1502 = vmatpush1.msra.mxu0 0.0
  %1503 = vmatprep.subr.mxu0 0.0
  %1504 = vmatpush1.msra.mxu0 0.0
  %1505 = vmatprep.subr.mxu0 0.0
  %1506 = vmatpush1.msra.mxu0 0.0
  %1507 = vmatprep.subr.mxu0 0.0
  %1508 = vmatpush1.msra.mxu0 0.0
  %1509 = vmatprep.subr.mxu0 0.0
  %1510 = vmatpush1.msra.mxu0 0.0
  %1511 = vmatprep.subr.mxu0 0.0
  %1512 = vmatpush1.msra.mxu0 0.0
  %1513 = vmatprep.subr.mxu0 0.0
  %1514 = vmatpush1.msra.mxu0 0.0
  %1515 = vmatprep.subr.mxu0 0.0
  %1516 = vmatpush1.msra.mxu0 0.0
  %1517 = vmatprep.subr.mxu0 0.0
  %1518 = vmatpush1.msra.mxu0 0.0
  %1519 = vmatprep.subr.mxu0 0.0
  %1520 = vmatpush1.msra.mxu0 0.0
  %1521 = vmatprep.subr.mxu0 0.0
  %1522 = vmatpush1.msra.mxu0 0.0
  %1523 = vmatprep.subr.mxu0 0.0
  %1524 = vmatpush1.msra.mxu0 0.0
  %1525 = vmatprep.subr.mxu0 0.0
  %1526 = vmatpush1.msra.mxu0 0.0
  %1527 = vmatprep.subr.mxu0 0.0
  %1528 = vmatpush1.msra.mxu0 0.0
  %1529 = vmatprep.subr.mxu0 0.0
  %1530 = vmatpush1.msra.mxu0 0.0
  %1531 = vmatprep.subr.mxu0 0.0
  %1532 = vmatpush1.msra.mxu0 0.0
  %1533 = vmatprep.subr.mxu0 0.0
  %1534 = vmatpush1.msra.mxu0 0.0
  %1535 = vmatprep.subr.mxu0 0.0
  %1536 = vmatpush1.msra.mxu0 0.0
  %1537 = vmatprep.subr.mxu0 0.0
  %1538 = vmatpush1.msra.mxu0 0.0
  %1539 = vmatprep.subr.mxu0 0.0
  %1540 = vmatpush1.msra.mxu0 0.0
  %1541 = vmatprep.subr.mxu0 0.0
  %1542 = vmatpush1.msra.mxu0 0.0
  %1543 = vmatprep.subr.mxu0 0.0
  %1544 = vmatpush1.msra.mxu0 0.0
  %1545 = vmatprep.subr.mxu0 0.0
  %1546 = vmatpush1.msra.mxu0 0.0
  %1547 = vmatprep.subr.mxu0 0.0
  %1548 = vmatpush1.msra.mxu0 0.0
  %1549 = vmatprep.subr.mxu0 0.0
  %1550 = vmatpush1.msra.mxu0 0.0
  %1551 = vmatprep.subr.mxu0 0.0
  %1552 = vmatpush1.msra.mxu0 0.0
  %1553 = vmatprep.subr.mxu0 0.0
  %1554 = vmatpush1.msra.mxu0 0.0
  %1555 = vmatprep.subr.mxu0 0.0
  %1556 = vmatpush1.msra.mxu0 0.0
  %1557 = vmatprep.subr.mxu0 0.0
  %1558 = vmatpush1.msra.mxu0 0.0
  %1559 = vmatprep.subr.mxu0 0.0
  %1560 = vmatpush1.msra.mxu0 0.0
  %1561 = vmatprep.mubr.f32.mxu0 0.0
  %1562 = vmatmul.mubr.f32.gmra.mrb[0].mxu0 %v1335
  %v1563 = vpop.f32.mrb[0].mxu0
  %v1564 = vadd.f32 0.0, %v1563
  %v1565 = vpop.f32.mrb[0].mxu0
  %v1566 = vadd.f32 0.0, %v1565
  %1567 = vdwg.mxu0
  %v1568 = vadd.f32 %v1307, %v1422
  %v1569 = vadd.f32 %v1308, %v1424
  %v1570 = vadd.f32 %v1309, %v1493
  %v1571 = vadd.f32 %v1310, %v1495
  %v1572 = vadd.f32 %v1311, %v1564
  %v1573 = vadd.f32 %v1312, %v1566
  %1574 = vrot.lane.b32.xlu0 %v30, 111
  %v1575 = vpop.permute.xlu0 %1574
  %1576 = vrot.lane.b32.xlu0 %v36, 111
  %v1577 = vpop.permute.xlu0 %1576
  %1578 = vrot.lane.b32.xlu0 %v31, 111
  %v1579 = vpop.permute.xlu0 %1578
  %1580 = vrot.lane.b32.xlu0 %v37, 111
  %v1581 = vpop.permute.xlu0 %1580
  %1582 = vrot.lane.b32.xlu0 %v32, 111
  %v1583 = vpop.permute.xlu0 %1582
  %1584 = vrot.lane.b32.xlu0 %v38, 111
  %v1585 = vpop.permute.xlu0 %1584
  %vm1586 = vcmp.lt.s32.totalorder %v55, 111
  %v1587 = vsel %vm1586, %v1583, %v1585
  %v1588 = vsel %vm1586, %v1581, %v1583
  %v1589 = vsel %vm1586, %v1579, %v1581
  %v1590 = vsel %vm1586, %v1577, %v1579
  %v1591 = vsel %vm1586, %v1575, %v1577
  %v1592 = vsel %vm1586, %v1585, %v1575
  %s1593 = scalar_lea.vmem %s2, 48
  %v1594 = vld [vmem:[%s1593] sm:$0xff]
  %v1596 = vsel %vm85, %v1594, 0
  %v1599 = vsel %vm89, %v1591, 0
  %v1602 = vsel %vm89, %v1590, 0
  %v1605 = vsel %vm89, %v1589, 0
  %v1608 = vsel %vm89, %v1588, 0
  %v1611 = vsel %vm89, %v1587, 0
  %v1614 = vsel %vm89, %v1592, 0
  %1616 = vmatprep.subr.mxu0 %v1602
  %1617 = vmatpush1.msra.mxu0 %v1599
  %1618 = vmatprep.subr.mxu0 0.0
  %1619 = vmatpush1.msra.mxu0 0.0
  %1620 = vmatprep.subr.mxu0 0.0
  %1621 = vmatpush1.msra.mxu0 0.0
  %1622 = vmatprep.subr.mxu0 0.0
  %1623 = vmatpush1.msra.mxu0 0.0
  %1624 = vmatprep.subr.mxu0 0.0
  %1625 = vmatpush1.msra.mxu0 0.0
  %1626 = vmatprep.subr.mxu0 0.0
  %1627 = vmatpush1.msra.mxu0 0.0
  %1628 = vmatprep.subr.mxu0 0.0
  %1629 = vmatpush1.msra.mxu0 0.0
  %1630 = vmatprep.subr.mxu0 0.0
  %1631 = vmatpush1.msra.mxu0 0.0
  %1632 = vmatprep.subr.mxu0 0.0
  %1633 = vmatpush1.msra.mxu0 0.0
  %1634 = vmatprep.subr.mxu0 0.0
  %1635 = vmatpush1.msra.mxu0 0.0
  %1636 = vmatprep.subr.mxu0 0.0
  %1637 = vmatpush1.msra.mxu0 0.0
  %1638 = vmatprep.subr.mxu0 0.0
  %1639 = vmatpush1.msra.mxu0 0.0
  %1640 = vmatprep.subr.mxu0 0.0
  %1641 = vmatpush1.msra.mxu0 0.0
  %1642 = vmatprep.subr.mxu0 0.0
  %1643 = vmatpush1.msra.mxu0 0.0
  %1644 = vmatprep.subr.mxu0 0.0
  %1645 = vmatpush1.msra.mxu0 0.0
  %1646 = vmatprep.subr.mxu0 0.0
  %1647 = vmatpush1.msra.mxu0 0.0
  %1648 = vmatprep.subr.mxu0 0.0
  %1649 = vmatpush1.msra.mxu0 0.0
  %1650 = vmatprep.subr.mxu0 0.0
  %1651 = vmatpush1.msra.mxu0 0.0
  %1652 = vmatprep.subr.mxu0 0.0
  %1653 = vmatpush1.msra.mxu0 0.0
  %1654 = vmatprep.subr.mxu0 0.0
  %1655 = vmatpush1.msra.mxu0 0.0
  %1656 = vmatprep.subr.mxu0 0.0
  %1657 = vmatpush1.msra.mxu0 0.0
  %1658 = vmatprep.subr.mxu0 0.0
  %1659 = vmatpush1.msra.mxu0 0.0
  %1660 = vmatprep.subr.mxu0 0.0
  %1661 = vmatpush1.msra.mxu0 0.0
  %1662 = vmatprep.subr.mxu0 0.0
  %1663 = vmatpush1.msra.mxu0 0.0
  %1664 = vmatprep.subr.mxu0 0.0
  %1665 = vmatpush1.msra.mxu0 0.0
  %1666 = vmatprep.subr.mxu0 0.0
  %1667 = vmatpush1.msra.mxu0 0.0
  %1668 = vmatprep.subr.mxu0 0.0
  %1669 = vmatpush1.msra.mxu0 0.0
  %1670 = vmatprep.subr.mxu0 0.0
  %1671 = vmatpush1.msra.mxu0 0.0
  %1672 = vmatprep.subr.mxu0 0.0
  %1673 = vmatpush1.msra.mxu0 0.0
  %1674 = vmatprep.subr.mxu0 0.0
  %1675 = vmatpush1.msra.mxu0 0.0
  %1676 = vmatprep.subr.mxu0 0.0
  %1677 = vmatpush1.msra.mxu0 0.0
  %1678 = vmatprep.subr.mxu0 0.0
  %1679 = vmatpush1.msra.mxu0 0.0
  %1680 = vmatprep.mubr.f32.mxu0 0.0
  %1681 = vmatmul.mubr.f32.gmra.mrb[0].mxu0 %v1596
  %v1682 = vpop.f32.mrb[0].mxu0
  %v1683 = vadd.f32 0.0, %v1682
  %v1684 = vpop.f32.mrb[0].mxu0
  %v1685 = vadd.f32 0.0, %v1684
  %1686 = vdwg.mxu0
  %1687 = vmatprep.subr.mxu0 %v1608
  %1688 = vmatpush1.msra.mxu0 %v1605
  %1689 = vmatprep.subr.mxu0 0.0
  %1690 = vmatpush1.msra.mxu0 0.0
  %1691 = vmatprep.subr.mxu0 0.0
  %1692 = vmatpush1.msra.mxu0 0.0
  %1693 = vmatprep.subr.mxu0 0.0
  %1694 = vmatpush1.msra.mxu0 0.0
  %1695 = vmatprep.subr.mxu0 0.0
  %1696 = vmatpush1.msra.mxu0 0.0
  %1697 = vmatprep.subr.mxu0 0.0
  %1698 = vmatpush1.msra.mxu0 0.0
  %1699 = vmatprep.subr.mxu0 0.0
  %1700 = vmatpush1.msra.mxu0 0.0
  %1701 = vmatprep.subr.mxu0 0.0
  %1702 = vmatpush1.msra.mxu0 0.0
  %1703 = vmatprep.subr.mxu0 0.0
  %1704 = vmatpush1.msra.mxu0 0.0
  %1705 = vmatprep.subr.mxu0 0.0
  %1706 = vmatpush1.msra.mxu0 0.0
  %1707 = vmatprep.subr.mxu0 0.0
  %1708 = vmatpush1.msra.mxu0 0.0
  %1709 = vmatprep.subr.mxu0 0.0
  %1710 = vmatpush1.msra.mxu0 0.0
  %1711 = vmatprep.subr.mxu0 0.0
  %1712 = vmatpush1.msra.mxu0 0.0
  %1713 = vmatprep.subr.mxu0 0.0
  %1714 = vmatpush1.msra.mxu0 0.0
  %1715 = vmatprep.subr.mxu0 0.0
  %1716 = vmatpush1.msra.mxu0 0.0
  %1717 = vmatprep.subr.mxu0 0.0
  %1718 = vmatpush1.msra.mxu0 0.0
  %1719 = vmatprep.subr.mxu0 0.0
  %1720 = vmatpush1.msra.mxu0 0.0
  %1721 = vmatprep.subr.mxu0 0.0
  %1722 = vmatpush1.msra.mxu0 0.0
  %1723 = vmatprep.subr.mxu0 0.0
  %1724 = vmatpush1.msra.mxu0 0.0
  %1725 = vmatprep.subr.mxu0 0.0
  %1726 = vmatpush1.msra.mxu0 0.0
  %1727 = vmatprep.subr.mxu0 0.0
  %1728 = vmatpush1.msra.mxu0 0.0
  %1729 = vmatprep.subr.mxu0 0.0
  %1730 = vmatpush1.msra.mxu0 0.0
  %1731 = vmatprep.subr.mxu0 0.0
  %1732 = vmatpush1.msra.mxu0 0.0
  %1733 = vmatprep.subr.mxu0 0.0
  %1734 = vmatpush1.msra.mxu0 0.0
  %1735 = vmatprep.subr.mxu0 0.0
  %1736 = vmatpush1.msra.mxu0 0.0
  %1737 = vmatprep.subr.mxu0 0.0
  %1738 = vmatpush1.msra.mxu0 0.0
  %1739 = vmatprep.subr.mxu0 0.0
  %1740 = vmatpush1.msra.mxu0 0.0
  %1741 = vmatprep.subr.mxu0 0.0
  %1742 = vmatpush1.msra.mxu0 0.0
  %1743 = vmatprep.subr.mxu0 0.0
  %1744 = vmatpush1.msra.mxu0 0.0
  %1745 = vmatprep.subr.mxu0 0.0
  %1746 = vmatpush1.msra.mxu0 0.0
  %1747 = vmatprep.subr.mxu0 0.0
  %1748 = vmatpush1.msra.mxu0 0.0
  %1749 = vmatprep.subr.mxu0 0.0
  %1750 = vmatpush1.msra.mxu0 0.0
  %1751 = vmatprep.mubr.f32.mxu0 0.0
  %1752 = vmatmul.mubr.f32.gmra.mrb[0].mxu0 %v1596
  %v1753 = vpop.f32.mrb[0].mxu0
  %v1754 = vadd.f32 0.0, %v1753
  %v1755 = vpop.f32.mrb[0].mxu0
  %v1756 = vadd.f32 0.0, %v1755
  %1757 = vdwg.mxu0
  %1758 = vmatprep.subr.mxu0 %v1614
  %1759 = vmatpush1.msra.mxu0 %v1611
  %1760 = vmatprep.subr.mxu0 0.0
  %1761 = vmatpush1.msra.mxu0 0.0
  %1762 = vmatprep.subr.mxu0 0.0
  %1763 = vmatpush1.msra.mxu0 0.0
  %1764 = vmatprep.subr.mxu0 0.0
  %1765 = vmatpush1.msra.mxu0 0.0
  %1766 = vmatprep.subr.mxu0 0.0
  %1767 = vmatpush1.msra.mxu0 0.0
  %1768 = vmatprep.subr.mxu0 0.0
  %1769 = vmatpush1.msra.mxu0 0.0
  %1770 = vmatprep.subr.mxu0 0.0
  %1771 = vmatpush1.msra.mxu0 0.0
  %1772 = vmatprep.subr.mxu0 0.0
  %1773 = vmatpush1.msra.mxu0 0.0
  %1774 = vmatprep.subr.mxu0 0.0
  %1775 = vmatpush1.msra.mxu0 0.0
  %1776 = vmatprep.subr.mxu0 0.0
  %1777 = vmatpush1.msra.mxu0 0.0
  %1778 = vmatprep.subr.mxu0 0.0
  %1779 = vmatpush1.msra.mxu0 0.0
  %1780 = vmatprep.subr.mxu0 0.0
  %1781 = vmatpush1.msra.mxu0 0.0
  %1782 = vmatprep.subr.mxu0 0.0
  %1783 = vmatpush1.msra.mxu0 0.0
  %1784 = vmatprep.subr.mxu0 0.0
  %1785 = vmatpush1.msra.mxu0 0.0
  %1786 = vmatprep.subr.mxu0 0.0
  %1787 = vmatpush1.msra.mxu0 0.0
  %1788 = vmatprep.subr.mxu0 0.0
  %1789 = vmatpush1.msra.mxu0 0.0
  %1790 = vmatprep.subr.mxu0 0.0
  %1791 = vmatpush1.msra.mxu0 0.0
  %1792 = vmatprep.subr.mxu0 0.0
  %1793 = vmatpush1.msra.mxu0 0.0
  %1794 = vmatprep.subr.mxu0 0.0
  %1795 = vmatpush1.msra.mxu0 0.0
  %1796 = vmatprep.subr.mxu0 0.0
  %1797 = vmatpush1.msra.mxu0 0.0
  %1798 = vmatprep.subr.mxu0 0.0
  %1799 = vmatpush1.msra.mxu0 0.0
  %1800 = vmatprep.subr.mxu0 0.0
  %1801 = vmatpush1.msra.mxu0 0.0
  %1802 = vmatprep.subr.mxu0 0.0
  %1803 = vmatpush1.msra.mxu0 0.0
  %1804 = vmatprep.subr.mxu0 0.0
  %1805 = vmatpush1.msra.mxu0 0.0
  %1806 = vmatprep.subr.mxu0 0.0
  %1807 = vmatpush1.msra.mxu0 0.0
  %1808 = vmatprep.subr.mxu0 0.0
  %1809 = vmatpush1.msra.mxu0 0.0
  %1810 = vmatprep.subr.mxu0 0.0
  %1811 = vmatpush1.msra.mxu0 0.0
  %1812 = vmatprep.subr.mxu0 0.0
  %1813 = vmatpush1.msra.mxu0 0.0
  %1814 = vmatprep.subr.mxu0 0.0
  %1815 = vmatpush1.msra.mxu0 0.0
  %1816 = vmatprep.subr.mxu0 0.0
  %1817 = vmatpush1.msra.mxu0 0.0
  %1818 = vmatprep.subr.mxu0 0.0
  %1819 = vmatpush1.msra.mxu0 0.0
  %1820 = vmatprep.subr.mxu0 0.0
  %1821 = vmatpush1.msra.mxu0 0.0
  %1822 = vmatprep.mubr.f32.mxu0 0.0
  %1823 = vmatmul.mubr.f32.gmra.mrb[0].mxu0 %v1596
  %v1824 = vpop.f32.mrb[0].mxu0
  %v1825 = vadd.f32 0.0, %v1824
  %v1826 = vpop.f32.mrb[0].mxu0
  %v1827 = vadd.f32 0.0, %v1826
  %1828 = vdwg.mxu0
  %v1829 = vadd.f32 %v1568, %v1683
  %v1830 = vadd.f32 %v1569, %v1685
  %v1831 = vadd.f32 %v1570, %v1754
  %v1832 = vadd.f32 %v1571, %v1756
  %v1833 = vadd.f32 %v1572, %v1825
  %v1834 = vadd.f32 %v1573, %v1827
  %1835 = vrot.lane.b32.xlu0 %v30, 110
  %v1836 = vpop.permute.xlu0 %1835
  %1837 = vrot.lane.b32.xlu0 %v36, 110
  %v1838 = vpop.permute.xlu0 %1837
  %1839 = vrot.lane.b32.xlu0 %v31, 110
  %v1840 = vpop.permute.xlu0 %1839
  %1841 = vrot.lane.b32.xlu0 %v37, 110
  %v1842 = vpop.permute.xlu0 %1841
  %1843 = vrot.lane.b32.xlu0 %v32, 110
  %v1844 = vpop.permute.xlu0 %1843
  %1845 = vrot.lane.b32.xlu0 %v38, 110
  %v1846 = vpop.permute.xlu0 %1845
  %vm1847 = vcmp.lt.s32.totalorder %v55, 110
  %v1848 = vsel %vm1847, %v1844, %v1846
  %v1849 = vsel %vm1847, %v1842, %v1844
  %v1850 = vsel %vm1847, %v1840, %v1842
  %v1851 = vsel %vm1847, %v1838, %v1840
  %v1852 = vsel %vm1847, %v1836, %v1838
  %v1853 = vsel %vm1847, %v1846, %v1836
  %s1854 = scalar_lea.vmem %s2, 56
  %v1855 = vld [vmem:[%s1854] sm:$0xff]
  %v1857 = vsel %vm85, %v1855, 0
  %v1860 = vsel %vm89, %v1852, 0
  %v1863 = vsel %vm89, %v1851, 0
  %v1866 = vsel %vm89, %v1850, 0
  %v1869 = vsel %vm89, %v1849, 0
  %v1872 = vsel %vm89, %v1848, 0
  %v1875 = vsel %vm89, %v1853, 0
  %1877 = vmatprep.subr.mxu0 %v1863
  %1878 = vmatpush1.msra.mxu0 %v1860
  %1879 = vmatprep.subr.mxu0 0.0
  %1880 = vmatpush1.msra.mxu0 0.0
  %1881 = vmatprep.subr.mxu0 0.0
  %1882 = vmatpush1.msra.mxu0 0.0
  %1883 = vmatprep.subr.mxu0 0.0
  %1884 = vmatpush1.msra.mxu0 0.0
  %1885 = vmatprep.subr.mxu0 0.0
  %1886 = vmatpush1.msra.mxu0 0.0
  %1887 = vmatprep.subr.mxu0 0.0
  %1888 = vmatpush1.msra.mxu0 0.0
  %1889 = vmatprep.subr.mxu0 0.0
  %1890 = vmatpush1.msra.mxu0 0.0
  %1891 = vmatprep.subr.mxu0 0.0
  %1892 = vmatpush1.msra.mxu0 0.0
  %1893 = vmatprep.subr.mxu0 0.0
  %1894 = vmatpush1.msra.mxu0 0.0
  %1895 = vmatprep.subr.mxu0 0.0
  %1896 = vmatpush1.msra.mxu0 0.0
  %1897 = vmatprep.subr.mxu0 0.0
  %1898 = vmatpush1.msra.mxu0 0.0
  %1899 = vmatprep.subr.mxu0 0.0
  %1900 = vmatpush1.msra.mxu0 0.0
  %1901 = vmatprep.subr.mxu0 0.0
  %1902 = vmatpush1.msra.mxu0 0.0
  %1903 = vmatprep.subr.mxu0 0.0
  %1904 = vmatpush1.msra.mxu0 0.0
  %1905 = vmatprep.subr.mxu0 0.0
  %1906 = vmatpush1.msra.mxu0 0.0
  %1907 = vmatprep.subr.mxu0 0.0
  %1908 = vmatpush1.msra.mxu0 0.0
  %1909 = vmatprep.subr.mxu0 0.0
  %1910 = vmatpush1.msra.mxu0 0.0
  %1911 = vmatprep.subr.mxu0 0.0
  %1912 = vmatpush1.msra.mxu0 0.0
  %1913 = vmatprep.subr.mxu0 0.0
  %1914 = vmatpush1.msra.mxu0 0.0
  %1915 = vmatprep.subr.mxu0 0.0
  %1916 = vmatpush1.msra.mxu0 0.0
  %1917 = vmatprep.subr.mxu0 0.0
  %1918 = vmatpush1.msra.mxu0 0.0
  %1919 = vmatprep.subr.mxu0 0.0
  %1920 = vmatpush1.msra.mxu0 0.0
  %1921 = vmatprep.subr.mxu0 0.0
  %1922 = vmatpush1.msra.mxu0 0.0
  %1923 = vmatprep.subr.mxu0 0.0
  %1924 = vmatpush1.msra.mxu0 0.0
  %1925 = vmatprep.subr.mxu0 0.0
  %1926 = vmatpush1.msra.mxu0 0.0
  %1927 = vmatprep.subr.mxu0 0.0
  %1928 = vmatpush1.msra.mxu0 0.0
  %1929 = vmatprep.subr.mxu0 0.0
  %1930 = vmatpush1.msra.mxu0 0.0
  %1931 = vmatprep.subr.mxu0 0.0
  %1932 = vmatpush1.msra.mxu0 0.0
  %1933 = vmatprep.subr.mxu0 0.0
  %1934 = vmatpush1.msra.mxu0 0.0
  %1935 = vmatprep.subr.mxu0 0.0
  %1936 = vmatpush1.msra.mxu0 0.0
  %1937 = vmatprep.subr.mxu0 0.0
  %1938 = vmatpush1.msra.mxu0 0.0
  %1939 = vmatprep.subr.mxu0 0.0
  %1940 = vmatpush1.msra.mxu0 0.0
  %1941 = vmatprep.mubr.f32.mxu0 0.0
  %1942 = vmatmul.mubr.f32.gmra.mrb[0].mxu0 %v1857
  %v1943 = vpop.f32.mrb[0].mxu0
  %v1944 = vadd.f32 0.0, %v1943
  %v1945 = vpop.f32.mrb[0].mxu0
  %v1946 = vadd.f32 0.0, %v1945
  %1947 = vdwg.mxu0
  %1948 = vmatprep.subr.mxu0 %v1869
  %1949 = vmatpush1.msra.mxu0 %v1866
  %1950 = vmatprep.subr.mxu0 0.0
  %1951 = vmatpush1.msra.mxu0 0.0
  %1952 = vmatprep.subr.mxu0 0.0
  %1953 = vmatpush1.msra.mxu0 0.0
  %1954 = vmatprep.subr.mxu0 0.0
  %1955 = vmatpush1.msra.mxu0 0.0
  %1956 = vmatprep.subr.mxu0 0.0
  %1957 = vmatpush1.msra.mxu0 0.0
  %1958 = vmatprep.subr.mxu0 0.0
  %1959 = vmatpush1.msra.mxu0 0.0
  %1960 = vmatprep.subr.mxu0 0.0
  %1961 = vmatpush1.msra.mxu0 0.0
  %1962 = vmatprep.subr.mxu0 0.0
  %1963 = vmatpush1.msra.mxu0 0.0
  %1964 = vmatprep.subr.mxu0 0.0
  %1965 = vmatpush1.msra.mxu0 0.0
  %1966 = vmatprep.subr.mxu0 0.0
  %1967 = vmatpush1.msra.mxu0 0.0
  %1968 = vmatprep.subr.mxu0 0.0
  %1969 = vmatpush1.msra.mxu0 0.0
  %1970 = vmatprep.subr.mxu0 0.0
  %1971 = vmatpush1.msra.mxu0 0.0
  %1972 = vmatprep.subr.mxu0 0.0
  %1973 = vmatpush1.msra.mxu0 0.0
  %1974 = vmatprep.subr.mxu0 0.0
  %1975 = vmatpush1.msra.mxu0 0.0
  %1976 = vmatprep.subr.mxu0 0.0
  %1977 = vmatpush1.msra.mxu0 0.0
  %1978 = vmatprep.subr.mxu0 0.0
  %1979 = vmatpush1.msra.mxu0 0.0
  %1980 = vmatprep.subr.mxu0 0.0
  %1981 = vmatpush1.msra.mxu0 0.0
  %1982 = vmatprep.subr.mxu0 0.0
  %1983 = vmatpush1.msra.mxu0 0.0
  %1984 = vmatprep.subr.mxu0 0.0
  %1985 = vmatpush1.msra.mxu0 0.0
  %1986 = vmatprep.subr.mxu0 0.0
  %1987 = vmatpush1.msra.mxu0 0.0
  %1988 = vmatprep.subr.mxu0 0.0
  %1989 = vmatpush1.msra.mxu0 0.0
  %1990 = vmatprep.subr.mxu0 0.0
  %1991 = vmatpush1.msra.mxu0 0.0
  %1992 = vmatprep.subr.mxu0 0.0
  %1993 = vmatpush1.msra.mxu0 0.0
  %1994 = vmatprep.subr.mxu0 0.0
  %1995 = vmatpush1.msra.mxu0 0.0
  %1996 = vmatprep.subr.mxu0 0.0
  %1997 = vmatpush1.msra.mxu0 0.0
  %1998 = vmatprep.subr.mxu0 0.0
  %1999 = vmatpush1.msra.mxu0 0.0
  %2000 = vmatprep.subr.mxu0 0.0
  %2001 = vmatpush1.msra.mxu0 0.0
  %2002 = vmatprep.subr.mxu0 0.0
  %2003 = vmatpush1.msra.mxu0 0.0
  %2004 = vmatprep.subr.mxu0 0.0
  %2005 = vmatpush1.msra.mxu0 0.0
  %2006 = vmatprep.subr.mxu0 0.0
  %2007 = vmatpush1.msra.mxu0 0.0
  %2008 = vmatprep.subr.mxu0 0.0
  %2009 = vmatpush1.msra.mxu0 0.0
  %2010 = vmatprep.subr.mxu0 0.0
  %2011 = vmatpush1.msra.mxu0 0.0
  %2012 = vmatprep.mubr.f32.mxu0 0.0
  %2013 = vmatmul.mubr.f32.gmra.mrb[0].mxu0 %v1857
  %v2014 = vpop.f32.mrb[0].mxu0
  %v2015 = vadd.f32 0.0, %v2014
  %v2016 = vpop.f32.mrb[0].mxu0
  %v2017 = vadd.f32 0.0, %v2016
  %2018 = vdwg.mxu0
  %2019 = vmatprep.subr.mxu0 %v1875
  %2020 = vmatpush1.msra.mxu0 %v1872
  %2021 = vmatprep.subr.mxu0 0.0
  %2022 = vmatpush1.msra.mxu0 0.0
  %2023 = vmatprep.subr.mxu0 0.0
  %2024 = vmatpush1.msra.mxu0 0.0
  %2025 = vmatprep.subr.mxu0 0.0
  %2026 = vmatpush1.msra.mxu0 0.0
  %2027 = vmatprep.subr.mxu0 0.0
  %2028 = vmatpush1.msra.mxu0 0.0
  %2029 = vmatprep.subr.mxu0 0.0
  %2030 = vmatpush1.msra.mxu0 0.0
  %2031 = vmatprep.subr.mxu0 0.0
  %2032 = vmatpush1.msra.mxu0 0.0
  %2033 = vmatprep.subr.mxu0 0.0
  %2034 = vmatpush1.msra.mxu0 0.0
  %2035 = vmatprep.subr.mxu0 0.0
  %2036 = vmatpush1.msra.mxu0 0.0
  %2037 = vmatprep.subr.mxu0 0.0
  %2038 = vmatpush1.msra.mxu0 0.0
  %2039 = vmatprep.subr.mxu0 0.0
  %2040 = vmatpush1.msra.mxu0 0.0
  %2041 = vmatprep.subr.mxu0 0.0
  %2042 = vmatpush1.msra.mxu0 0.0
  %2043 = vmatprep.subr.mxu0 0.0
  %2044 = vmatpush1.msra.mxu0 0.0
  %2045 = vmatprep.subr.mxu0 0.0
  %2046 = vmatpush1.msra.mxu0 0.0
  %2047 = vmatprep.subr.mxu0 0.0
  %2048 = vmatpush1.msra.mxu0 0.0
  %2049 = vmatprep.subr.mxu0 0.0
  %2050 = vmatpush1.msra.mxu0 0.0
  %2051 = vmatprep.subr.mxu0 0.0
  %2052 = vmatpush1.msra.mxu0 0.0
  %2053 = vmatprep.subr.mxu0 0.0
  %2054 = vmatpush1.msra.mxu0 0.0
  %2055 = vmatprep.subr.mxu0 0.0
  %2056 = vmatpush1.msra.mxu0 0.0
  %2057 = vmatprep.subr.mxu0 0.0
  %2058 = vmatpush1.msra.mxu0 0.0
  %2059 = vmatprep.subr.mxu0 0.0
  %2060 = vmatpush1.msra.mxu0 0.0
  %2061 = vmatprep.subr.mxu0 0.0
  %2062 = vmatpush1.msra.mxu0 0.0
  %2063 = vmatprep.subr.mxu0 0.0
  %2064 = vmatpush1.msra.mxu0 0.0
  %2065 = vmatprep.subr.mxu0 0.0
  %2066 = vmatpush1.msra.mxu0 0.0
  %2067 = vmatprep.subr.mxu0 0.0
  %2068 = vmatpush1.msra.mxu0 0.0
  %2069 = vmatprep.subr.mxu0 0.0
  %2070 = vmatpush1.msra.mxu0 0.0
  %2071 = vmatprep.subr.mxu0 0.0
  %2072 = vmatpush1.msra.mxu0 0.0
  %2073 = vmatprep.subr.mxu0 0.0
  %2074 = vmatpush1.msra.mxu0 0.0
  %2075 = vmatprep.subr.mxu0 0.0
  %2076 = vmatpush1.msra.mxu0 0.0
  %2077 = vmatprep.subr.mxu0 0.0
  %2078 = vmatpush1.msra.mxu0 0.0
  %2079 = vmatprep.subr.mxu0 0.0
  %2080 = vmatpush1.msra.mxu0 0.0
  %2081 = vmatprep.subr.mxu0 0.0
  %2082 = vmatpush1.msra.mxu0 0.0
  %2083 = vmatprep.mubr.f32.mxu0 0.0
  %2084 = vmatmul.mubr.f32.gmra.mrb[0].mxu0 %v1857
  %v2085 = vpop.f32.mrb[0].mxu0
  %v2086 = vadd.f32 0.0, %v2085
  %v2087 = vpop.f32.mrb[0].mxu0
  %v2088 = vadd.f32 0.0, %v2087
  %2089 = vdwg.mxu0
  %v2090 = vadd.f32 %v1829, %v1944
  %v2091 = vadd.f32 %v1830, %v1946
  %v2092 = vadd.f32 %v1831, %v2015
  %v2093 = vadd.f32 %v1832, %v2017
  %v2094 = vadd.f32 %v1833, %v2086
  %v2095 = vadd.f32 %v1834, %v2088
  %2096 = vrot.lane.b32.xlu0 %v30, 109
  %v2097 = vpop.permute.xlu0 %2096
  %2098 = vrot.lane.b32.xlu0 %v36, 109
  %v2099 = vpop.permute.xlu0 %2098
  %2100 = vrot.lane.b32.xlu0 %v31, 109
  %v2101 = vpop.permute.xlu0 %2100
  %2102 = vrot.lane.b32.xlu0 %v37, 109
  %v2103 = vpop.permute.xlu0 %2102
  %2104 = vrot.lane.b32.xlu0 %v32, 109
  %v2105 = vpop.permute.xlu0 %2104
  %2106 = vrot.lane.b32.xlu0 %v38, 109
  %v2107 = vpop.permute.xlu0 %2106
  %vm2108 = vcmp.lt.s32.totalorder %v55, 109
  %v2109 = vsel %vm2108, %v2105, %v2107
  %v2110 = vsel %vm2108, %v2103, %v2105
  %v2111 = vsel %vm2108, %v2101, %v2103
  %v2112 = vsel %vm2108, %v2099, %v2101
  %v2113 = vsel %vm2108, %v2097, %v2099
  %v2114 = vsel %vm2108, %v2107, %v2097
  %s2115 = scalar_lea.vmem %s2, 64
  %v2116 = vld [vmem:[%s2115] sm:$0xff]
  %v2118 = vsel %vm85, %v2116, 0
  %v2121 = vsel %vm89, %v2113, 0
  %v2124 = vsel %vm89, %v2112, 0
  %v2127 = vsel %vm89, %v2111, 0
  %v2130 = vsel %vm89, %v2110, 0
  %v2133 = vsel %vm89, %v2109, 0
  %v2136 = vsel %vm89, %v2114, 0
  %2138 = vmatprep.subr.mxu0 %v2124
  %2139 = vmatpush1.msra.mxu0 %v2121
  %2140 = vmatprep.subr.mxu0 0.0
  %2141 = vmatpush1.msra.mxu0 0.0
  %2142 = vmatprep.subr.mxu0 0.0
  %2143 = vmatpush1.msra.mxu0 0.0
  %2144 = vmatprep.subr.mxu0 0.0
  %2145 = vmatpush1.msra.mxu0 0.0
  %2146 = vmatprep.subr.mxu0 0.0
  %2147 = vmatpush1.msra.mxu0 0.0
  %2148 = vmatprep.subr.mxu0 0.0
  %2149 = vmatpush1.msra.mxu0 0.0
  %2150 = vmatprep.subr.mxu0 0.0
  %2151 = vmatpush1.msra.mxu0 0.0
  %2152 = vmatprep.subr.mxu0 0.0
  %2153 = vmatpush1.msra.mxu0 0.0
  %2154 = vmatprep.subr.mxu0 0.0
  %2155 = vmatpush1.msra.mxu0 0.0
  %2156 = vmatprep.subr.mxu0 0.0
  %2157 = vmatpush1.msra.mxu0 0.0
  %2158 = vmatprep.subr.mxu0 0.0
  %2159 = vmatpush1.msra.mxu0 0.0
  %2160 = vmatprep.subr.mxu0 0.0
  %2161 = vmatpush1.msra.mxu0 0.0
  %2162 = vmatprep.subr.mxu0 0.0
  %2163 = vmatpush1.msra.mxu0 0.0
  %2164 = vmatprep.subr.mxu0 0.0
  %2165 = vmatpush1.msra.mxu0 0.0
  %2166 = vmatprep.subr.mxu0 0.0
  %2167 = vmatpush1.msra.mxu0 0.0
  %2168 = vmatprep.subr.mxu0 0.0
  %2169 = vmatpush1.msra.mxu0 0.0
  %2170 = vmatprep.subr.mxu0 0.0
  %2171 = vmatpush1.msra.mxu0 0.0
  %2172 = vmatprep.subr.mxu0 0.0
  %2173 = vmatpush1.msra.mxu0 0.0
  %2174 = vmatprep.subr.mxu0 0.0
  %2175 = vmatpush1.msra.mxu0 0.0
  %2176 = vmatprep.subr.mxu0 0.0
  %2177 = vmatpush1.msra.mxu0 0.0
  %2178 = vmatprep.subr.mxu0 0.0
  %2179 = vmatpush1.msra.mxu0 0.0
  %2180 = vmatprep.subr.mxu0 0.0
  %2181 = vmatpush1.msra.mxu0 0.0
  %2182 = vmatprep.subr.mxu0 0.0
  %2183 = vmatpush1.msra.mxu0 0.0
  %2184 = vmatprep.subr.mxu0 0.0
  %2185 = vmatpush1.msra.mxu0 0.0
  %2186 = vmatprep.subr.mxu0 0.0
  %2187 = vmatpush1.msra.mxu0 0.0
  %2188 = vmatprep.subr.mxu0 0.0
  %2189 = vmatpush1.msra.mxu0 0.0
  %2190 = vmatprep.subr.mxu0 0.0
  %2191 = vmatpush1.msra.mxu0 0.0
  %2192 = vmatprep.subr.mxu0 0.0
  %2193 = vmatpush1.msra.mxu0 0.0
  %2194 = vmatprep.subr.mxu0 0.0
  %2195 = vmatpush1.msra.mxu0 0.0
  %2196 = vmatprep.subr.mxu0 0.0
  %2197 = vmatpush1.msra.mxu0 0.0
  %2198 = vmatprep.subr.mxu0 0.0
  %2199 = vmatpush1.msra.mxu0 0.0
  %2200 = vmatprep.subr.mxu0 0.0
  %2201 = vmatpush1.msra.mxu0 0.0
  %2202 = vmatprep.mubr.f32.mxu0 0.0
  %2203 = vmatmul.mubr.f32.gmra.mrb[0].mxu0 %v2118
  %v2204 = vpop.f32.mrb[0].mxu0
  %v2205 = vadd.f32 0.0, %v2204
  %v2206 = vpop.f32.mrb[0].mxu0
  %v2207 = vadd.f32 0.0, %v2206
  %2208 = vdwg.mxu0
  %2209 = vmatprep.subr.mxu0 %v2130
  %2210 = vmatpush1.msra.mxu0 %v2127
  %2211 = vmatprep.subr.mxu0 0.0
  %2212 = vmatpush1.msra.mxu0 0.0
  %2213 = vmatprep.subr.mxu0 0.0
  %2214 = vmatpush1.msra.mxu0 0.0
  %2215 = vmatprep.subr.mxu0 0.0
  %2216 = vmatpush1.msra.mxu0 0.0
  %2217 = vmatprep.subr.mxu0 0.0
  %2218 = vmatpush1.msra.mxu0 0.0
  %2219 = vmatprep.subr.mxu0 0.0
  %2220 = vmatpush1.msra.mxu0 0.0
  %2221 = vmatprep.subr.mxu0 0.0
  %2222 = vmatpush1.msra.mxu0 0.0
  %2223 = vmatprep.subr.mxu0 0.0
  %2224 = vmatpush1.msra.mxu0 0.0
  %2225 = vmatprep.subr.mxu0 0.0
  %2226 = vmatpush1.msra.mxu0 0.0
  %2227 = vmatprep.subr.mxu0 0.0
  %2228 = vmatpush1.msra.mxu0 0.0
  %2229 = vmatprep.subr.mxu0 0.0
  %2230 = vmatpush1.msra.mxu0 0.0
  %2231 = vmatprep.subr.mxu0 0.0
  %2232 = vmatpush1.msra.mxu0 0.0
  %2233 = vmatprep.subr.mxu0 0.0
  %2234 = vmatpush1.msra.mxu0 0.0
  %2235 = vmatprep.subr.mxu0 0.0
  %2236 = vmatpush1.msra.mxu0 0.0
  %2237 = vmatprep.subr.mxu0 0.0
  %2238 = vmatpush1.msra.mxu0 0.0
  %2239 = vmatprep.subr.mxu0 0.0
  %2240 = vmatpush1.msra.mxu0 0.0
  %2241 = vmatprep.subr.mxu0 0.0
  %2242 = vmatpush1.msra.mxu0 0.0
  %2243 = vmatprep.subr.mxu0 0.0
  %2244 = vmatpush1.msra.mxu0 0.0
  %2245 = vmatprep.subr.mxu0 0.0
  %2246 = vmatpush1.msra.mxu0 0.0
  %2247 = vmatprep.subr.mxu0 0.0
  %2248 = vmatpush1.msra.mxu0 0.0
  %2249 = vmatprep.subr.mxu0 0.0
  %2250 = vmatpush1.msra.mxu0 0.0
  %2251 = vmatprep.subr.mxu0 0.0
  %2252 = vmatpush1.msra.mxu0 0.0
  %2253 = vmatprep.subr.mxu0 0.0
  %2254 = vmatpush1.msra.mxu0 0.0
  %2255 = vmatprep.subr.mxu0 0.0
  %2256 = vmatpush1.msra.mxu0 0.0
  %2257 = vmatprep.subr.mxu0 0.0
  %2258 = vmatpush1.msra.mxu0 0.0
  %2259 = vmatprep.subr.mxu0 0.0
  %2260 = vmatpush1.msra.mxu0 0.0
  %2261 = vmatprep.subr.mxu0 0.0
  %2262 = vmatpush1.msra.mxu0 0.0
  %2263 = vmatprep.subr.mxu0 0.0
  %2264 = vmatpush1.msra.mxu0 0.0
  %2265 = vmatprep.subr.mxu0 0.0
  %2266 = vmatpush1.msra.mxu0 0.0
  %2267 = vmatprep.subr.mxu0 0.0
  %2268 = vmatpush1.msra.mxu0 0.0
  %2269 = vmatprep.subr.mxu0 0.0
  %2270 = vmatpush1.msra.mxu0 0.0
  %2271 = vmatprep.subr.mxu0 0.0
  %2272 = vmatpush1.msra.mxu0 0.0
  %2273 = vmatprep.mubr.f32.mxu0 0.0
  %2274 = vmatmul.mubr.f32.gmra.mrb[0].mxu0 %v2118
  %v2275 = vpop.f32.mrb[0].mxu0
  %v2276 = vadd.f32 0.0, %v2275
  %v2277 = vpop.f32.mrb[0].mxu0
  %v2278 = vadd.f32 0.0, %v2277
  %2279 = vdwg.mxu0
  %2280 = vmatprep.subr.mxu0 %v2136
  %2281 = vmatpush1.msra.mxu0 %v2133
  %2282 = vmatprep.subr.mxu0 0.0
  %2283 = vmatpush1.msra.mxu0 0.0
  %2284 = vmatprep.subr.mxu0 0.0
  %2285 = vmatpush1.msra.mxu0 0.0
  %2286 = vmatprep.subr.mxu0 0.0
  %2287 = vmatpush1.msra.mxu0 0.0
  %2288 = vmatprep.subr.mxu0 0.0
  %2289 = vmatpush1.msra.mxu0 0.0
  %2290 = vmatprep.subr.mxu0 0.0
  %2291 = vmatpush1.msra.mxu0 0.0
  %2292 = vmatprep.subr.mxu0 0.0
  %2293 = vmatpush1.msra.mxu0 0.0
  %2294 = vmatprep.subr.mxu0 0.0
  %2295 = vmatpush1.msra.mxu0 0.0
  %2296 = vmatprep.subr.mxu0 0.0
  %2297 = vmatpush1.msra.mxu0 0.0
  %2298 = vmatprep.subr.mxu0 0.0
  %2299 = vmatpush1.msra.mxu0 0.0
  %2300 = vmatprep.subr.mxu0 0.0
  %2301 = vmatpush1.msra.mxu0 0.0
  %2302 = vmatprep.subr.mxu0 0.0
  %2303 = vmatpush1.msra.mxu0 0.0
  %2304 = vmatprep.subr.mxu0 0.0
  %2305 = vmatpush1.msra.mxu0 0.0
  %2306 = vmatprep.subr.mxu0 0.0
  %2307 = vmatpush1.msra.mxu0 0.0
  %2308 = vmatprep.subr.mxu0 0.0
  %2309 = vmatpush1.msra.mxu0 0.0
  %2310 = vmatprep.subr.mxu0 0.0
  %2311 = vmatpush1.msra.mxu0 0.0
  %2312 = vmatprep.subr.mxu0 0.0
  %2313 = vmatpush1.msra.mxu0 0.0
  %2314 = vmatprep.subr.mxu0 0.0
  %2315 = vmatpush1.msra.mxu0 0.0
  %2316 = vmatprep.subr.mxu0 0.0
  %2317 = vmatpush1.msra.mxu0 0.0
  %2318 = vmatprep.subr.mxu0 0.0
  %2319 = vmatpush1.msra.mxu0 0.0
  %2320 = vmatprep.subr.mxu0 0.0
  %2321 = vmatpush1.msra.mxu0 0.0
  %2322 = vmatprep.subr.mxu0 0.0
  %2323 = vmatpush1.msra.mxu0 0.0
  %2324 = vmatprep.subr.mxu0 0.0
  %2325 = vmatpush1.msra.mxu0 0.0
  %2326 = vmatprep.subr.mxu0 0.0
  %2327 = vmatpush1.msra.mxu0 0.0
  %2328 = vmatprep.subr.mxu0 0.0
  %2329 = vmatpush1.msra.mxu0 0.0
  %2330 = vmatprep.subr.mxu0 0.0
  %2331 = vmatpush1.msra.mxu0 0.0
  %2332 = vmatprep.subr.mxu0 0.0
  %2333 = vmatpush1.msra.mxu0 0.0
  %2334 = vmatprep.subr.mxu0 0.0
  %2335 = vmatpush1.msra.mxu0 0.0
  %2336 = vmatprep.subr.mxu0 0.0
  %2337 = vmatpush1.msra.mxu0 0.0
  %2338 = vmatprep.subr.mxu0 0.0
  %2339 = vmatpush1.msra.mxu0 0.0
  %2340 = vmatprep.subr.mxu0 0.0
  %2341 = vmatpush1.msra.mxu0 0.0
  %2342 = vmatprep.subr.mxu0 0.0
  %2343 = vmatpush1.msra.mxu0 0.0
  %2344 = vmatprep.mubr.f32.mxu0 0.0
  %2345 = vmatmul.mubr.f32.gmra.mrb[0].mxu0 %v2118
  %v2346 = vpop.f32.mrb[0].mxu0
  %v2347 = vadd.f32 0.0, %v2346
  %v2348 = vpop.f32.mrb[0].mxu0
  %v2349 = vadd.f32 0.0, %v2348
  %2350 = vdwg.mxu0
  %v2351 = vadd.f32 %v2090, %v2205
  %v2352 = vadd.f32 %v2091, %v2207
  %v2353 = vadd.f32 %v2092, %v2276
  %v2354 = vadd.f32 %v2093, %v2278
  %v2355 = vadd.f32 %v2094, %v2347
  %v2356 = vadd.f32 %v2095, %v2349
  %v2357 = vld [vmem:[%s3] sm:$0xff]
  %v2358 = vld [vmem:[%s4] sm:$0xff]
  %v2360 = vlaneseq
  %v2361 = vshrl.u32 %v2360, 7
  %v2362 = vsub.s32 0, %v2361
  %v2363 = vrot.slane %v29, %v2362
  %v2364 = vlaneseq
  %v2365 = vshrl.u32 %v2364, 7
  %v2366 = vsub.s32 1, %v2365
  %v2367 = vrot.slane %v29, %v2366
  %v2368 = vlaneseq
  %v2369 = vshrl.u32 %v2368, 7
  %v2370 = vsub.s32 2, %v2369
  %v2371 = vrot.slane %v29, %v2370
  %v2372 = vlaneseq
  %v2373 = vshrl.u32 %v2372, 7
  %v2374 = vsub.s32 3, %v2373
  %v2375 = vrot.slane %v29, %v2374
  %v2376 = vlaneseq
  %v2377 = vshrl.u32 %v2376, 7
  %v2378 = vsub.s32 4, %v2377
  %v2379 = vrot.slane %v29, %v2378
  %v2380 = vlaneseq
  %v2381 = vshrl.u32 %v2380, 7
  %v2382 = vsub.s32 5, %v2381
  %v2383 = vrot.slane %v29, %v2382
  %v2390 = vmul.f32 %v2351, %v2363
  %v2391 = vmul.f32 %v2352, %v2367
  %v2392 = vmul.f32 %v2353, %v2371
  %v2393 = vmul.f32 %v2354, %v2375
  %v2394 = vmul.f32 %v2355, %v2379
  %v2395 = vmul.f32 %v2356, %v2383
  %v2396 = vadd.f32 %v2390, %v2391
  %v2397 = vadd.f32 %v2396, %v2392
  %v2398 = vadd.f32 %v2397, %v2393
  %v2399 = vadd.f32 %v2398, %v2394
  %v2400 = vadd.f32 %v2399, %v2395
  %2401 = vadd.xlane.f32.xlu0 %v2400
  %v2402 = vpop.xlane.xlu0 %2401
  %v2403 = vmul.f32 %v2402, 0.001953125
  %v2404 = vsub.f32 %v2351, %v2403
  %v2405 = vsub.f32 %v2352, %v2403
  %v2406 = vsub.f32 %v2353, %v2403
  %v2407 = vsub.f32 %v2354, %v2403
  %v2408 = vsub.f32 %v2355, %v2403
  %v2409 = vsub.f32 %v2356, %v2403
  %v2410 = vmul.f32 %v2404, %v2363
  %v2411 = vmul.f32 %v2405, %v2367
  %v2412 = vmul.f32 %v2406, %v2371
  %v2413 = vmul.f32 %v2407, %v2375
  %v2414 = vmul.f32 %v2408, %v2379
  %v2415 = vmul.f32 %v2409, %v2383
  %v2416 = vmul.f32 %v2410, %v2410
  %v2417 = vmul.f32 %v2411, %v2411
  %v2418 = vmul.f32 %v2412, %v2412
  %v2419 = vmul.f32 %v2413, %v2413
  %v2420 = vmul.f32 %v2414, %v2414
  %v2421 = vmul.f32 %v2415, %v2415
  %v2422 = vadd.f32 %v2416, %v2417
  %v2423 = vadd.f32 %v2422, %v2418
  %v2424 = vadd.f32 %v2423, %v2419
  %v2425 = vadd.f32 %v2424, %v2420
  %v2426 = vadd.f32 %v2425, %v2421
  %2427 = vadd.xlane.f32.xlu0 %v2426
  %v2428 = vpop.xlane.xlu0 %2427
  %v2429 = vmul.f32 %v2428, 0.001953125
  %v2430 = vadd.f32 %v2429, 1e-05
  %v2431 = vrsqrt.pop %v2430
  %v2432 = vmul.f32 %v2404, %v2431
  %v2433 = vmul.f32 %v2405, %v2431
  %v2434 = vmul.f32 %v2406, %v2431
  %v2435 = vmul.f32 %v2407, %v2431
  %v2436 = vmul.f32 %v2408, %v2431
  %v2437 = vmul.f32 %v2409, %v2431
  %2439 = vset.pattern.permute.xlu0 0
  %2440 = vperm.xlu0 %2439, %v2357
  %v2441 = vpop.permute.xlu0 %2440
  %v2443 = vmul.f32 %v2432, %v2441
  %v2444 = vmul.f32 %v2433, %v2441
  %v2445 = vmul.f32 %v2434, %v2441
  %v2446 = vmul.f32 %v2435, %v2441
  %v2447 = vmul.f32 %v2436, %v2441
  %v2448 = vmul.f32 %v2437, %v2441
  %2450 = vset.pattern.permute.xlu0 0
  %2451 = vperm.xlu0 %2450, %v2358
  %v2452 = vpop.permute.xlu0 %2451
  %v2454 = vadd.f32 %v2443, %v2452
  %v2455 = vadd.f32 %v2444, %v2452
  %v2456 = vadd.f32 %v2445, %v2452
  %v2457 = vadd.f32 %v2446, %v2452
  %v2458 = vadd.f32 %v2447, %v2452
  %v2459 = vadd.f32 %v2448, %v2452
  %v2460 = vmax.f32 %v2454, 0.0
  %v2461 = vmax.f32 %v2455, 0.0
  %v2462 = vmax.f32 %v2456, 0.0
  %v2463 = vmax.f32 %v2457, 0.0
  %v2464 = vmax.f32 %v2458, 0.0
  %v2465 = vmax.f32 %v2459, 0.0
  %v2466 = vmul.f32 %v2460, %v2363
  %v2467 = vmul.f32 %v2461, %v2367
  %v2468 = vmul.f32 %v2462, %v2371
  %v2469 = vmul.f32 %v2463, %v2375
  %v2470 = vmul.f32 %v2464, %v2379
  %v2471 = vmul.f32 %v2465, %v2383
  %2472 = vrot.lane.b32.xlu0 %v2466, 19
  %v2473 = vpop.permute.xlu0 %2472
  %2474 = vrot.lane.b32.xlu0 %v2467, 19
  %v2475 = vpop.permute.xlu0 %2474
  %2476 = vrot.lane.b32.xlu0 %v2468, 19
  %v2477 = vpop.permute.xlu0 %2476
  %2478 = vrot.lane.b32.xlu0 %v2469, 19
  %v2479 = vpop.permute.xlu0 %2478
  %2480 = vrot.lane.b32.xlu0 %v2470, 19
  %v2481 = vpop.permute.xlu0 %2480
  %2482 = vrot.lane.b32.xlu0 %v2471, 19
  %v2483 = vpop.permute.xlu0 %2482
  %v2484 = vsel %vm56, %v2481, %v2483
  %v2485 = vsel %vm56, %v2479, %v2481
  %v2486 = vsel %vm56, %v2477, %v2479
  %v2487 = vsel %vm56, %v2475, %v2477
  %v2488 = vsel %vm56, %v2473, %v2475
  %v2489 = vsel %vm56, %v2483, %v2473
  %v2490 = vld [vmem:[%s5] sm:$0xff]
  %2491 = vrot.lane.b32.xlu0 %v2466, 18
  %v2492 = vpop.permute.xlu0 %2491
  %2493 = vrot.lane.b32.xlu0 %v2467, 18
  %v2494 = vpop.permute.xlu0 %2493
  %2495 = vrot.lane.b32.xlu0 %v2468, 18
  %v2496 = vpop.permute.xlu0 %2495
  %2497 = vrot.lane.b32.xlu0 %v2469, 18
  %v2498 = vpop.permute.xlu0 %2497
  %2499 = vrot.lane.b32.xlu0 %v2470, 18
  %v2500 = vpop.permute.xlu0 %2499
  %2501 = vrot.lane.b32.xlu0 %v2471, 18
  %v2502 = vpop.permute.xlu0 %2501
  %v2503 = vsel %vm76, %v2500, %v2502
  %v2504 = vsel %vm76, %v2498, %v2500
  %v2505 = vsel %vm76, %v2496, %v2498
  %v2506 = vsel %vm76, %v2494, %v2496
  %v2507 = vsel %vm76, %v2492, %v2494
  %v2508 = vsel %vm76, %v2502, %v2492
  %s2509 = scalar_lea.vmem %s5, 8
  %v2510 = vld [vmem:[%s2509] sm:$0xff]
  %vm2511 = vcmask 64512
  %v2513 = vsel %vm2511, %v2510, 0
  %2515 = vmatprep.subr.mxu0 %v2507
  %2516 = vmatpush1.msra.mxu0 %v2508
  %2517 = vmatprep.subr.mxu0 0.0
  %2518 = vmatpush1.msra.mxu0 0.0
  %2519 = vmatprep.subr.mxu0 0.0
  %2520 = vmatpush1.msra.mxu0 0.0
  %2521 = vmatprep.subr.mxu0 0.0
  %2522 = vmatpush1.msra.mxu0 0.0
  %2523 = vmatprep.subr.mxu0 0.0
  %2524 = vmatpush1.msra.mxu0 0.0
  %2525 = vmatprep.subr.mxu0 0.0
  %2526 = vmatpush1.msra.mxu0 0.0
  %2527 = vmatprep.subr.mxu0 0.0
  %2528 = vmatpush1.msra.mxu0 0.0
  %2529 = vmatprep.subr.mxu0 0.0
  %2530 = vmatpush1.msra.mxu0 0.0
  %2531 = vmatprep.subr.mxu0 0.0
  %2532 = vmatpush1.msra.mxu0 0.0
  %2533 = vmatprep.subr.mxu0 0.0
  %2534 = vmatpush1.msra.mxu0 0.0
  %2535 = vmatprep.subr.mxu0 0.0
  %2536 = vmatpush1.msra.mxu0 0.0
  %2537 = vmatprep.subr.mxu0 0.0
  %2538 = vmatpush1.msra.mxu0 0.0
  %2539 = vmatprep.subr.mxu0 0.0
  %2540 = vmatpush1.msra.mxu0 0.0
  %2541 = vmatprep.subr.mxu0 0.0
  %2542 = vmatpush1.msra.mxu0 0.0
  %2543 = vmatprep.subr.mxu0 0.0
  %2544 = vmatpush1.msra.mxu0 0.0
  %2545 = vmatprep.subr.mxu0 0.0
  %2546 = vmatpush1.msra.mxu0 0.0
  %2547 = vmatprep.subr.mxu0 0.0
  %2548 = vmatpush1.msra.mxu0 0.0
  %2549 = vmatprep.subr.mxu0 0.0
  %2550 = vmatpush1.msra.mxu0 0.0
  %2551 = vmatprep.subr.mxu0 0.0
  %2552 = vmatpush1.msra.mxu0 0.0
  %2553 = vmatprep.subr.mxu0 0.0
  %2554 = vmatpush1.msra.mxu0 0.0
  %2555 = vmatprep.subr.mxu0 0.0
  %2556 = vmatpush1.msra.mxu0 0.0
  %2557 = vmatprep.subr.mxu0 0.0
  %2558 = vmatpush1.msra.mxu0 0.0
  %2559 = vmatprep.subr.mxu0 0.0
  %2560 = vmatpush1.msra.mxu0 0.0
  %2561 = vmatprep.subr.mxu0 0.0
  %2562 = vmatpush1.msra.mxu0 0.0
  %2563 = vmatprep.subr.mxu0 0.0
  %2564 = vmatpush1.msra.mxu0 0.0
  %2565 = vmatprep.subr.mxu0 0.0
  %2566 = vmatpush1.msra.mxu0 0.0
  %2567 = vmatprep.subr.mxu0 0.0
  %2568 = vmatpush1.msra.mxu0 0.0
  %2569 = vmatprep.subr.mxu0 0.0
  %2570 = vmatpush1.msra.mxu0 0.0
  %2571 = vmatprep.subr.mxu0 0.0
  %2572 = vmatpush1.msra.mxu0 0.0
  %2573 = vmatprep.subr.mxu0 0.0
  %2574 = vmatpush1.msra.mxu0 0.0
  %2575 = vmatprep.subr.mxu0 0.0
  %2576 = vmatpush1.msra.mxu0 0.0
  %2577 = vmatprep.subr.mxu0 0.0
  %2578 = vmatpush1.msra.mxu0 0.0
  %2579 = vmatprep.mubr.f32.mxu0 0.0
  %2580 = vmatmul.mubr.f32.gmra.mrb[0].mxu0 %v2513
  %v2581 = vpop.f32.mrb[0].mxu0
  %v2582 = vadd.f32 0.0, %v2581
  %v2583 = vpop.f32.mrb[0].mxu0
  %v2584 = vadd.f32 0.0, %v2583
  %2585 = vdwg.mxu0
  %2586 = vmatprep.subr.mxu0 %v2505
  %2587 = vmatpush1.msra.mxu0 %v2506
  %2588 = vmatprep.subr.mxu0 0.0
  %2589 = vmatpush1.msra.mxu0 0.0
  %2590 = vmatprep.subr.mxu0 0.0
  %2591 = vmatpush1.msra.mxu0 0.0
  %2592 = vmatprep.subr.mxu0 0.0
  %2593 = vmatpush1.msra.mxu0 0.0
  %2594 = vmatprep.subr.mxu0 0.0
  %2595 = vmatpush1.msra.mxu0 0.0
  %2596 = vmatprep.subr.mxu0 0.0
  %2597 = vmatpush1.msra.mxu0 0.0
  %2598 = vmatprep.subr.mxu0 0.0
  %2599 = vmatpush1.msra.mxu0 0.0
  %2600 = vmatprep.subr.mxu0 0.0
  %2601 = vmatpush1.msra.mxu0 0.0
  %2602 = vmatprep.subr.mxu0 0.0
  %2603 = vmatpush1.msra.mxu0 0.0
  %2604 = vmatprep.subr.mxu0 0.0
  %2605 = vmatpush1.msra.mxu0 0.0
  %2606 = vmatprep.subr.mxu0 0.0
  %2607 = vmatpush1.msra.mxu0 0.0
  %2608 = vmatprep.subr.mxu0 0.0
  %2609 = vmatpush1.msra.mxu0 0.0
  %2610 = vmatprep.subr.mxu0 0.0
  %2611 = vmatpush1.msra.mxu0 0.0
  %2612 = vmatprep.subr.mxu0 0.0
  %2613 = vmatpush1.msra.mxu0 0.0
  %2614 = vmatprep.subr.mxu0 0.0
  %2615 = vmatpush1.msra.mxu0 0.0
  %2616 = vmatprep.subr.mxu0 0.0
  %2617 = vmatpush1.msra.mxu0 0.0
  %2618 = vmatprep.subr.mxu0 0.0
  %2619 = vmatpush1.msra.mxu0 0.0
  %2620 = vmatprep.subr.mxu0 0.0
  %2621 = vmatpush1.msra.mxu0 0.0
  %2622 = vmatprep.subr.mxu0 0.0
  %2623 = vmatpush1.msra.mxu0 0.0
  %2624 = vmatprep.subr.mxu0 0.0
  %2625 = vmatpush1.msra.mxu0 0.0
  %2626 = vmatprep.subr.mxu0 0.0
  %2627 = vmatpush1.msra.mxu0 0.0
  %2628 = vmatprep.subr.mxu0 0.0
  %2629 = vmatpush1.msra.mxu0 0.0
  %2630 = vmatprep.subr.mxu0 0.0
  %2631 = vmatpush1.msra.mxu0 0.0
  %2632 = vmatprep.subr.mxu0 0.0
  %2633 = vmatpush1.msra.mxu0 0.0
  %2634 = vmatprep.subr.mxu0 0.0
  %2635 = vmatpush1.msra.mxu0 0.0
  %2636 = vmatprep.subr.mxu0 0.0
  %2637 = vmatpush1.msra.mxu0 0.0
  %2638 = vmatprep.subr.mxu0 0.0
  %2639 = vmatpush1.msra.mxu0 0.0
  %2640 = vmatprep.subr.mxu0 0.0
  %2641 = vmatpush1.msra.mxu0 0.0
  %2642 = vmatprep.subr.mxu0 0.0
  %2643 = vmatpush1.msra.mxu0 0.0
  %2644 = vmatprep.subr.mxu0 0.0
  %2645 = vmatpush1.msra.mxu0 0.0
  %2646 = vmatprep.subr.mxu0 0.0
  %2647 = vmatpush1.msra.mxu0 0.0
  %2648 = vmatprep.subr.mxu0 0.0
  %2649 = vmatpush1.msra.mxu0 0.0
  %2650 = vmatprep.mubr.f32.mxu0 0.0
  %2651 = vmatmul.mubr.f32.gmra.mrb[0].mxu0 %v2513
  %v2652 = vpop.f32.mrb[0].mxu0
  %v2653 = vadd.f32 0.0, %v2652
  %v2654 = vpop.f32.mrb[0].mxu0
  %v2655 = vadd.f32 0.0, %v2654
  %2656 = vdwg.mxu0
  %2657 = vmatprep.subr.mxu0 %v2503
  %2658 = vmatpush1.msra.mxu0 %v2504
  %2659 = vmatprep.subr.mxu0 0.0
  %2660 = vmatpush1.msra.mxu0 0.0
  %2661 = vmatprep.subr.mxu0 0.0
  %2662 = vmatpush1.msra.mxu0 0.0
  %2663 = vmatprep.subr.mxu0 0.0
  %2664 = vmatpush1.msra.mxu0 0.0
  %2665 = vmatprep.subr.mxu0 0.0
  %2666 = vmatpush1.msra.mxu0 0.0
  %2667 = vmatprep.subr.mxu0 0.0
  %2668 = vmatpush1.msra.mxu0 0.0
  %2669 = vmatprep.subr.mxu0 0.0
  %2670 = vmatpush1.msra.mxu0 0.0
  %2671 = vmatprep.subr.mxu0 0.0
  %2672 = vmatpush1.msra.mxu0 0.0
  %2673 = vmatprep.subr.mxu0 0.0
  %2674 = vmatpush1.msra.mxu0 0.0
  %2675 = vmatprep.subr.mxu0 0.0
  %2676 = vmatpush1.msra.mxu0 0.0
  %2677 = vmatprep.subr.mxu0 0.0
  %2678 = vmatpush1.msra.mxu0 0.0
  %2679 = vmatprep.subr.mxu0 0.0
  %2680 = vmatpush1.msra.mxu0 0.0
  %2681 = vmatprep.subr.mxu0 0.0
  %2682 = vmatpush1.msra.mxu0 0.0
  %2683 = vmatprep.subr.mxu0 0.0
  %2684 = vmatpush1.msra.mxu0 0.0
  %2685 = vmatprep.subr.mxu0 0.0
  %2686 = vmatpush1.msra.mxu0 0.0
  %2687 = vmatprep.subr.mxu0 0.0
  %2688 = vmatpush1.msra.mxu0 0.0
  %2689 = vmatprep.subr.mxu0 0.0
  %2690 = vmatpush1.msra.mxu0 0.0
  %2691 = vmatprep.subr.mxu0 0.0
  %2692 = vmatpush1.msra.mxu0 0.0
  %2693 = vmatprep.subr.mxu0 0.0
  %2694 = vmatpush1.msra.mxu0 0.0
  %2695 = vmatprep.subr.mxu0 0.0
  %2696 = vmatpush1.msra.mxu0 0.0
  %2697 = vmatprep.subr.mxu0 0.0
  %2698 = vmatpush1.msra.mxu0 0.0
  %2699 = vmatprep.subr.mxu0 0.0
  %2700 = vmatpush1.msra.mxu0 0.0
  %2701 = vmatprep.subr.mxu0 0.0
  %2702 = vmatpush1.msra.mxu0 0.0
  %2703 = vmatprep.subr.mxu0 0.0
  %2704 = vmatpush1.msra.mxu0 0.0
  %2705 = vmatprep.subr.mxu0 0.0
  %2706 = vmatpush1.msra.mxu0 0.0
  %2707 = vmatprep.subr.mxu0 0.0
  %2708 = vmatpush1.msra.mxu0 0.0
  %2709 = vmatprep.subr.mxu0 0.0
  %2710 = vmatpush1.msra.mxu0 0.0
  %2711 = vmatprep.subr.mxu0 0.0
  %2712 = vmatpush1.msra.mxu0 0.0
  %2713 = vmatprep.subr.mxu0 0.0
  %2714 = vmatpush1.msra.mxu0 0.0
  %2715 = vmatprep.subr.mxu0 0.0
  %2716 = vmatpush1.msra.mxu0 0.0
  %2717 = vmatprep.subr.mxu0 0.0
  %2718 = vmatpush1.msra.mxu0 0.0
  %2719 = vmatprep.subr.mxu0 0.0
  %2720 = vmatpush1.msra.mxu0 0.0
  %2721 = vmatprep.mubr.f32.mxu0 0.0
  %2722 = vmatmul.mubr.f32.gmra.mrb[0].mxu0 %v2513
  %v2723 = vpop.f32.mrb[0].mxu0
  %v2724 = vadd.f32 0.0, %v2723
  %v2725 = vpop.f32.mrb[0].mxu0
  %v2726 = vadd.f32 0.0, %v2725
  %2727 = vdwg.mxu0
  %v2729 = vsel %vm2511, %v2490, 0
  %2731 = vmatprep.subr.mxu0 %v2488
  %2732 = vmatpush1.msra.mxu0 %v2489
  %2733 = vmatprep.subr.mxu0 0.0
  %2734 = vmatpush1.msra.mxu0 0.0
  %2735 = vmatprep.subr.mxu0 0.0
  %2736 = vmatpush1.msra.mxu0 0.0
  %2737 = vmatprep.subr.mxu0 0.0
  %2738 = vmatpush1.msra.mxu0 0.0
  %2739 = vmatprep.subr.mxu0 0.0
  %2740 = vmatpush1.msra.mxu0 0.0
  %2741 = vmatprep.subr.mxu0 0.0
  %2742 = vmatpush1.msra.mxu0 0.0
  %2743 = vmatprep.subr.mxu0 0.0
  %2744 = vmatpush1.msra.mxu0 0.0
  %2745 = vmatprep.subr.mxu0 0.0
  %2746 = vmatpush1.msra.mxu0 0.0
  %2747 = vmatprep.subr.mxu0 0.0
  %2748 = vmatpush1.msra.mxu0 0.0
  %2749 = vmatprep.subr.mxu0 0.0
  %2750 = vmatpush1.msra.mxu0 0.0
  %2751 = vmatprep.subr.mxu0 0.0
  %2752 = vmatpush1.msra.mxu0 0.0
  %2753 = vmatprep.subr.mxu0 0.0
  %2754 = vmatpush1.msra.mxu0 0.0
  %2755 = vmatprep.subr.mxu0 0.0
  %2756 = vmatpush1.msra.mxu0 0.0
  %2757 = vmatprep.subr.mxu0 0.0
  %2758 = vmatpush1.msra.mxu0 0.0
  %2759 = vmatprep.subr.mxu0 0.0
  %2760 = vmatpush1.msra.mxu0 0.0
  %2761 = vmatprep.subr.mxu0 0.0
  %2762 = vmatpush1.msra.mxu0 0.0
  %2763 = vmatprep.subr.mxu0 0.0
  %2764 = vmatpush1.msra.mxu0 0.0
  %2765 = vmatprep.subr.mxu0 0.0
  %2766 = vmatpush1.msra.mxu0 0.0
  %2767 = vmatprep.subr.mxu0 0.0
  %2768 = vmatpush1.msra.mxu0 0.0
  %2769 = vmatprep.subr.mxu0 0.0
  %2770 = vmatpush1.msra.mxu0 0.0
  %2771 = vmatprep.subr.mxu0 0.0
  %2772 = vmatpush1.msra.mxu0 0.0
  %2773 = vmatprep.subr.mxu0 0.0
  %2774 = vmatpush1.msra.mxu0 0.0
  %2775 = vmatprep.subr.mxu0 0.0
  %2776 = vmatpush1.msra.mxu0 0.0
  %2777 = vmatprep.subr.mxu0 0.0
  %2778 = vmatpush1.msra.mxu0 0.0
  %2779 = vmatprep.subr.mxu0 0.0
  %2780 = vmatpush1.msra.mxu0 0.0
  %2781 = vmatprep.subr.mxu0 0.0
  %2782 = vmatpush1.msra.mxu0 0.0
  %2783 = vmatprep.subr.mxu0 0.0
  %2784 = vmatpush1.msra.mxu0 0.0
  %2785 = vmatprep.subr.mxu0 0.0
  %2786 = vmatpush1.msra.mxu0 0.0
  %2787 = vmatprep.subr.mxu0 0.0
  %2788 = vmatpush1.msra.mxu0 0.0
  %2789 = vmatprep.subr.mxu0 0.0
  %2790 = vmatpush1.msra.mxu0 0.0
  %2791 = vmatprep.subr.mxu0 0.0
  %2792 = vmatpush1.msra.mxu0 0.0
  %2793 = vmatprep.subr.mxu0 0.0
  %2794 = vmatpush1.msra.mxu0 0.0
  %2795 = vmatprep.mubr.f32.mxu0 0.0
  %2796 = vmatmul.mubr.f32.gmra.mrb[0].mxu0 %v2729
  %v2797 = vpop.f32.mrb[0].mxu0
  %v2798 = vadd.f32 %v2582, %v2797
  %v2799 = vpop.f32.mrb[0].mxu0
  %v2800 = vadd.f32 %v2584, %v2799
  %2801 = vdwg.mxu0
  %2802 = vmatprep.subr.mxu0 %v2486
  %2803 = vmatpush1.msra.mxu0 %v2487
  %2804 = vmatprep.subr.mxu0 0.0
  %2805 = vmatpush1.msra.mxu0 0.0
  %2806 = vmatprep.subr.mxu0 0.0
  %2807 = vmatpush1.msra.mxu0 0.0
  %2808 = vmatprep.subr.mxu0 0.0
  %2809 = vmatpush1.msra.mxu0 0.0
  %2810 = vmatprep.subr.mxu0 0.0
  %2811 = vmatpush1.msra.mxu0 0.0
  %2812 = vmatprep.subr.mxu0 0.0
  %2813 = vmatpush1.msra.mxu0 0.0
  %2814 = vmatprep.subr.mxu0 0.0
  %2815 = vmatpush1.msra.mxu0 0.0
  %2816 = vmatprep.subr.mxu0 0.0
  %2817 = vmatpush1.msra.mxu0 0.0
  %2818 = vmatprep.subr.mxu0 0.0
  %2819 = vmatpush1.msra.mxu0 0.0
  %2820 = vmatprep.subr.mxu0 0.0
  %2821 = vmatpush1.msra.mxu0 0.0
  %2822 = vmatprep.subr.mxu0 0.0
  %2823 = vmatpush1.msra.mxu0 0.0
  %2824 = vmatprep.subr.mxu0 0.0
  %2825 = vmatpush1.msra.mxu0 0.0
  %2826 = vmatprep.subr.mxu0 0.0
  %2827 = vmatpush1.msra.mxu0 0.0
  %2828 = vmatprep.subr.mxu0 0.0
  %2829 = vmatpush1.msra.mxu0 0.0
  %2830 = vmatprep.subr.mxu0 0.0
  %2831 = vmatpush1.msra.mxu0 0.0
  %2832 = vmatprep.subr.mxu0 0.0
  %2833 = vmatpush1.msra.mxu0 0.0
  %2834 = vmatprep.subr.mxu0 0.0
  %2835 = vmatpush1.msra.mxu0 0.0
  %2836 = vmatprep.subr.mxu0 0.0
  %2837 = vmatpush1.msra.mxu0 0.0
  %2838 = vmatprep.subr.mxu0 0.0
  %2839 = vmatpush1.msra.mxu0 0.0
  %2840 = vmatprep.subr.mxu0 0.0
  %2841 = vmatpush1.msra.mxu0 0.0
  %2842 = vmatprep.subr.mxu0 0.0
  %2843 = vmatpush1.msra.mxu0 0.0
  %2844 = vmatprep.subr.mxu0 0.0
  %2845 = vmatpush1.msra.mxu0 0.0
  %2846 = vmatprep.subr.mxu0 0.0
  %2847 = vmatpush1.msra.mxu0 0.0
  %2848 = vmatprep.subr.mxu0 0.0
  %2849 = vmatpush1.msra.mxu0 0.0
  %2850 = vmatprep.subr.mxu0 0.0
  %2851 = vmatpush1.msra.mxu0 0.0
  %2852 = vmatprep.subr.mxu0 0.0
  %2853 = vmatpush1.msra.mxu0 0.0
  %2854 = vmatprep.subr.mxu0 0.0
  %2855 = vmatpush1.msra.mxu0 0.0
  %2856 = vmatprep.subr.mxu0 0.0
  %2857 = vmatpush1.msra.mxu0 0.0
  %2858 = vmatprep.subr.mxu0 0.0
  %2859 = vmatpush1.msra.mxu0 0.0
  %2860 = vmatprep.subr.mxu0 0.0
  %2861 = vmatpush1.msra.mxu0 0.0
  %2862 = vmatprep.subr.mxu0 0.0
  %2863 = vmatpush1.msra.mxu0 0.0
  %2864 = vmatprep.subr.mxu0 0.0
  %2865 = vmatpush1.msra.mxu0 0.0
  %2866 = vmatprep.mubr.f32.mxu0 0.0
  %2867 = vmatmul.mubr.f32.gmra.mrb[0].mxu0 %v2729
  %v2868 = vpop.f32.mrb[0].mxu0
  %v2869 = vadd.f32 %v2653, %v2868
  %v2870 = vpop.f32.mrb[0].mxu0
  %v2871 = vadd.f32 %v2655, %v2870
  %2872 = vdwg.mxu0
  %2873 = vmatprep.subr.mxu0 %v2484
  %2874 = vmatpush1.msra.mxu0 %v2485
  %2875 = vmatprep.subr.mxu0 0.0
  %2876 = vmatpush1.msra.mxu0 0.0
  %2877 = vmatprep.subr.mxu0 0.0
  %2878 = vmatpush1.msra.mxu0 0.0
  %2879 = vmatprep.subr.mxu0 0.0
  %2880 = vmatpush1.msra.mxu0 0.0
  %2881 = vmatprep.subr.mxu0 0.0
  %2882 = vmatpush1.msra.mxu0 0.0
  %2883 = vmatprep.subr.mxu0 0.0
  %2884 = vmatpush1.msra.mxu0 0.0
  %2885 = vmatprep.subr.mxu0 0.0
  %2886 = vmatpush1.msra.mxu0 0.0
  %2887 = vmatprep.subr.mxu0 0.0
  %2888 = vmatpush1.msra.mxu0 0.0
  %2889 = vmatprep.subr.mxu0 0.0
  %2890 = vmatpush1.msra.mxu0 0.0
  %2891 = vmatprep.subr.mxu0 0.0
  %2892 = vmatpush1.msra.mxu0 0.0
  %2893 = vmatprep.subr.mxu0 0.0
  %2894 = vmatpush1.msra.mxu0 0.0
  %2895 = vmatprep.subr.mxu0 0.0
  %2896 = vmatpush1.msra.mxu0 0.0
  %2897 = vmatprep.subr.mxu0 0.0
  %2898 = vmatpush1.msra.mxu0 0.0
  %2899 = vmatprep.subr.mxu0 0.0
  %2900 = vmatpush1.msra.mxu0 0.0
  %2901 = vmatprep.subr.mxu0 0.0
  %2902 = vmatpush1.msra.mxu0 0.0
  %2903 = vmatprep.subr.mxu0 0.0
  %2904 = vmatpush1.msra.mxu0 0.0
  %2905 = vmatprep.subr.mxu0 0.0
  %2906 = vmatpush1.msra.mxu0 0.0
  %2907 = vmatprep.subr.mxu0 0.0
  %2908 = vmatpush1.msra.mxu0 0.0
  %2909 = vmatprep.subr.mxu0 0.0
  %2910 = vmatpush1.msra.mxu0 0.0
  %2911 = vmatprep.subr.mxu0 0.0
  %2912 = vmatpush1.msra.mxu0 0.0
  %2913 = vmatprep.subr.mxu0 0.0
  %2914 = vmatpush1.msra.mxu0 0.0
  %2915 = vmatprep.subr.mxu0 0.0
  %2916 = vmatpush1.msra.mxu0 0.0
  %2917 = vmatprep.subr.mxu0 0.0
  %2918 = vmatpush1.msra.mxu0 0.0
  %2919 = vmatprep.subr.mxu0 0.0
  %2920 = vmatpush1.msra.mxu0 0.0
  %2921 = vmatprep.subr.mxu0 0.0
  %2922 = vmatpush1.msra.mxu0 0.0
  %2923 = vmatprep.subr.mxu0 0.0
  %2924 = vmatpush1.msra.mxu0 0.0
  %2925 = vmatprep.subr.mxu0 0.0
  %2926 = vmatpush1.msra.mxu0 0.0
  %2927 = vmatprep.subr.mxu0 0.0
  %2928 = vmatpush1.msra.mxu0 0.0
  %2929 = vmatprep.subr.mxu0 0.0
  %2930 = vmatpush1.msra.mxu0 0.0
  %2931 = vmatprep.subr.mxu0 0.0
  %2932 = vmatpush1.msra.mxu0 0.0
  %2933 = vmatprep.subr.mxu0 0.0
  %2934 = vmatpush1.msra.mxu0 0.0
  %2935 = vmatprep.subr.mxu0 0.0
  %2936 = vmatpush1.msra.mxu0 0.0
  %2937 = vmatprep.mubr.f32.mxu0 0.0
  %2938 = vmatmul.mubr.f32.gmra.mrb[0].mxu0 %v2729
  %v2939 = vpop.f32.mrb[0].mxu0
  %v2940 = vadd.f32 %v2724, %v2939
  %v2941 = vpop.f32.mrb[0].mxu0
  %v2942 = vadd.f32 %v2726, %v2941
  %2943 = vdwg.mxu0
  %2944 = vrot.lane.b32.xlu0 %v2466, 17
  %v2945 = vpop.permute.xlu0 %2944
  %2946 = vrot.lane.b32.xlu0 %v2467, 17
  %v2947 = vpop.permute.xlu0 %2946
  %2948 = vrot.lane.b32.xlu0 %v2468, 17
  %v2949 = vpop.permute.xlu0 %2948
  %2950 = vrot.lane.b32.xlu0 %v2469, 17
  %v2951 = vpop.permute.xlu0 %2950
  %2952 = vrot.lane.b32.xlu0 %v2470, 17
  %v2953 = vpop.permute.xlu0 %2952
  %2954 = vrot.lane.b32.xlu0 %v2471, 17
  %v2955 = vpop.permute.xlu0 %2954
  %v2956 = vsel %vm567, %v2953, %v2955
  %v2957 = vsel %vm567, %v2951, %v2953
  %v2958 = vsel %vm567, %v2949, %v2951
  %v2959 = vsel %vm567, %v2947, %v2949
  %v2960 = vsel %vm567, %v2945, %v2947
  %v2961 = vsel %vm567, %v2955, %v2945
  %s2962 = scalar_lea.vmem %s5, 16
  %v2963 = vld [vmem:[%s2962] sm:$0xff]
  %v2965 = vsel %vm2511, %v2963, 0
  %2967 = vmatprep.subr.mxu0 %v2960
  %2968 = vmatpush1.msra.mxu0 %v2961
  %2969 = vmatprep.subr.mxu0 0.0
  %2970 = vmatpush1.msra.mxu0 0.0
  %2971 = vmatprep.subr.mxu0 0.0
  %2972 = vmatpush1.msra.mxu0 0.0
  %2973 = vmatprep.subr.mxu0 0.0
  %2974 = vmatpush1.msra.mxu0 0.0
  %2975 = vmatprep.subr.mxu0 0.0
  %2976 = vmatpush1.msra.mxu0 0.0
  %2977 = vmatprep.subr.mxu0 0.0
  %2978 = vmatpush1.msra.mxu0 0.0
  %2979 = vmatprep.subr.mxu0 0.0
  %2980 = vmatpush1.msra.mxu0 0.0
  %2981 = vmatprep.subr.mxu0 0.0
  %2982 = vmatpush1.msra.mxu0 0.0
  %2983 = vmatprep.subr.mxu0 0.0
  %2984 = vmatpush1.msra.mxu0 0.0
  %2985 = vmatprep.subr.mxu0 0.0
  %2986 = vmatpush1.msra.mxu0 0.0
  %2987 = vmatprep.subr.mxu0 0.0
  %2988 = vmatpush1.msra.mxu0 0.0
  %2989 = vmatprep.subr.mxu0 0.0
  %2990 = vmatpush1.msra.mxu0 0.0
  %2991 = vmatprep.subr.mxu0 0.0
  %2992 = vmatpush1.msra.mxu0 0.0
  %2993 = vmatprep.subr.mxu0 0.0
  %2994 = vmatpush1.msra.mxu0 0.0
  %2995 = vmatprep.subr.mxu0 0.0
  %2996 = vmatpush1.msra.mxu0 0.0
  %2997 = vmatprep.subr.mxu0 0.0
  %2998 = vmatpush1.msra.mxu0 0.0
  %2999 = vmatprep.subr.mxu0 0.0
  %3000 = vmatpush1.msra.mxu0 0.0
  %3001 = vmatprep.subr.mxu0 0.0
  %3002 = vmatpush1.msra.mxu0 0.0
  %3003 = vmatprep.subr.mxu0 0.0
  %3004 = vmatpush1.msra.mxu0 0.0
  %3005 = vmatprep.subr.mxu0 0.0
  %3006 = vmatpush1.msra.mxu0 0.0
  %3007 = vmatprep.subr.mxu0 0.0
  %3008 = vmatpush1.msra.mxu0 0.0
  %3009 = vmatprep.subr.mxu0 0.0
  %3010 = vmatpush1.msra.mxu0 0.0
  %3011 = vmatprep.subr.mxu0 0.0
  %3012 = vmatpush1.msra.mxu0 0.0
  %3013 = vmatprep.subr.mxu0 0.0
  %3014 = vmatpush1.msra.mxu0 0.0
  %3015 = vmatprep.subr.mxu0 0.0
  %3016 = vmatpush1.msra.mxu0 0.0
  %3017 = vmatprep.subr.mxu0 0.0
  %3018 = vmatpush1.msra.mxu0 0.0
  %3019 = vmatprep.subr.mxu0 0.0
  %3020 = vmatpush1.msra.mxu0 0.0
  %3021 = vmatprep.subr.mxu0 0.0
  %3022 = vmatpush1.msra.mxu0 0.0
  %3023 = vmatprep.subr.mxu0 0.0
  %3024 = vmatpush1.msra.mxu0 0.0
  %3025 = vmatprep.subr.mxu0 0.0
  %3026 = vmatpush1.msra.mxu0 0.0
  %3027 = vmatprep.subr.mxu0 0.0
  %3028 = vmatpush1.msra.mxu0 0.0
  %3029 = vmatprep.subr.mxu0 0.0
  %3030 = vmatpush1.msra.mxu0 0.0
  %3031 = vmatprep.mubr.f32.mxu0 0.0
  %3032 = vmatmul.mubr.f32.gmra.mrb[0].mxu0 %v2965
  %v3033 = vpop.f32.mrb[0].mxu0
  %v3034 = vadd.f32 0.0, %v3033
  %v3035 = vpop.f32.mrb[0].mxu0
  %v3036 = vadd.f32 0.0, %v3035
  %3037 = vdwg.mxu0
  %3038 = vmatprep.subr.mxu0 %v2958
  %3039 = vmatpush1.msra.mxu0 %v2959
  %3040 = vmatprep.subr.mxu0 0.0
  %3041 = vmatpush1.msra.mxu0 0.0
  %3042 = vmatprep.subr.mxu0 0.0
  %3043 = vmatpush1.msra.mxu0 0.0
  %3044 = vmatprep.subr.mxu0 0.0
  %3045 = vmatpush1.msra.mxu0 0.0
  %3046 = vmatprep.subr.mxu0 0.0
  %3047 = vmatpush1.msra.mxu0 0.0
  %3048 = vmatprep.subr.mxu0 0.0
  %3049 = vmatpush1.msra.mxu0 0.0
  %3050 = vmatprep.subr.mxu0 0.0
  %3051 = vmatpush1.msra.mxu0 0.0
  %3052 = vmatprep.subr.mxu0 0.0
  %3053 = vmatpush1.msra.mxu0 0.0
  %3054 = vmatprep.subr.mxu0 0.0
  %3055 = vmatpush1.msra.mxu0 0.0
  %3056 = vmatprep.subr.mxu0 0.0
  %3057 = vmatpush1.msra.mxu0 0.0
  %3058 = vmatprep.subr.mxu0 0.0
  %3059 = vmatpush1.msra.mxu0 0.0
  %3060 = vmatprep.subr.mxu0 0.0
  %3061 = vmatpush1.msra.mxu0 0.0
  %3062 = vmatprep.subr.mxu0 0.0
  %3063 = vmatpush1.msra.mxu0 0.0
  %3064 = vmatprep.subr.mxu0 0.0
  %3065 = vmatpush1.msra.mxu0 0.0
  %3066 = vmatprep.subr.mxu0 0.0
  %3067 = vmatpush1.msra.mxu0 0.0
  %3068 = vmatprep.subr.mxu0 0.0
  %3069 = vmatpush1.msra.mxu0 0.0
  %3070 = vmatprep.subr.mxu0 0.0
  %3071 = vmatpush1.msra.mxu0 0.0
  %3072 = vmatprep.subr.mxu0 0.0
  %3073 = vmatpush1.msra.mxu0 0.0
  %3074 = vmatprep.subr.mxu0 0.0
  %3075 = vmatpush1.msra.mxu0 0.0
  %3076 = vmatprep.subr.mxu0 0.0
  %3077 = vmatpush1.msra.mxu0 0.0
  %3078 = vmatprep.subr.mxu0 0.0
  %3079 = vmatpush1.msra.mxu0 0.0
  %3080 = vmatprep.subr.mxu0 0.0
  %3081 = vmatpush1.msra.mxu0 0.0
  %3082 = vmatprep.subr.mxu0 0.0
  %3083 = vmatpush1.msra.mxu0 0.0
  %3084 = vmatprep.subr.mxu0 0.0
  %3085 = vmatpush1.msra.mxu0 0.0
  %3086 = vmatprep.subr.mxu0 0.0
  %3087 = vmatpush1.msra.mxu0 0.0
  %3088 = vmatprep.subr.mxu0 0.0
  %3089 = vmatpush1.msra.mxu0 0.0
  %3090 = vmatprep.subr.mxu0 0.0
  %3091 = vmatpush1.msra.mxu0 0.0
  %3092 = vmatprep.subr.mxu0 0.0
  %3093 = vmatpush1.msra.mxu0 0.0
  %3094 = vmatprep.subr.mxu0 0.0
  %3095 = vmatpush1.msra.mxu0 0.0
  %3096 = vmatprep.subr.mxu0 0.0
  %3097 = vmatpush1.msra.mxu0 0.0
  %3098 = vmatprep.subr.mxu0 0.0
  %3099 = vmatpush1.msra.mxu0 0.0
  %3100 = vmatprep.subr.mxu0 0.0
  %3101 = vmatpush1.msra.mxu0 0.0
  %3102 = vmatprep.mubr.f32.mxu0 0.0
  %3103 = vmatmul.mubr.f32.gmra.mrb[0].mxu0 %v2965
  %v3104 = vpop.f32.mrb[0].mxu0
  %v3105 = vadd.f32 0.0, %v3104
  %v3106 = vpop.f32.mrb[0].mxu0
  %v3107 = vadd.f32 0.0, %v3106
  %3108 = vdwg.mxu0
  %3109 = vmatprep.subr.mxu0 %v2956
  %3110 = vmatpush1.msra.mxu0 %v2957
  %3111 = vmatprep.subr.mxu0 0.0
  %3112 = vmatpush1.msra.mxu0 0.0
  %3113 = vmatprep.subr.mxu0 0.0
  %3114 = vmatpush1.msra.mxu0 0.0
  %3115 = vmatprep.subr.mxu0 0.0
  %3116 = vmatpush1.msra.mxu0 0.0
  %3117 = vmatprep.subr.mxu0 0.0
  %3118 = vmatpush1.msra.mxu0 0.0
  %3119 = vmatprep.subr.mxu0 0.0
  %3120 = vmatpush1.msra.mxu0 0.0
  %3121 = vmatprep.subr.mxu0 0.0
  %3122 = vmatpush1.msra.mxu0 0.0
  %3123 = vmatprep.subr.mxu0 0.0
  %3124 = vmatpush1.msra.mxu0 0.0
  %3125 = vmatprep.subr.mxu0 0.0
  %3126 = vmatpush1.msra.mxu0 0.0
  %3127 = vmatprep.subr.mxu0 0.0
  %3128 = vmatpush1.msra.mxu0 0.0
  %3129 = vmatprep.subr.mxu0 0.0
  %3130 = vmatpush1.msra.mxu0 0.0
  %3131 = vmatprep.subr.mxu0 0.0
  %3132 = vmatpush1.msra.mxu0 0.0
  %3133 = vmatprep.subr.mxu0 0.0
  %3134 = vmatpush1.msra.mxu0 0.0
  %3135 = vmatprep.subr.mxu0 0.0
  %3136 = vmatpush1.msra.mxu0 0.0
  %3137 = vmatprep.subr.mxu0 0.0
  %3138 = vmatpush1.msra.mxu0 0.0
  %3139 = vmatprep.subr.mxu0 0.0
  %3140 = vmatpush1.msra.mxu0 0.0
  %3141 = vmatprep.subr.mxu0 0.0
  %3142 = vmatpush1.msra.mxu0 0.0
  %3143 = vmatprep.subr.mxu0 0.0
  %3144 = vmatpush1.msra.mxu0 0.0
  %3145 = vmatprep.subr.mxu0 0.0
  %3146 = vmatpush1.msra.mxu0 0.0
  %3147 = vmatprep.subr.mxu0 0.0
  %3148 = vmatpush1.msra.mxu0 0.0
  %3149 = vmatprep.subr.mxu0 0.0
  %3150 = vmatpush1.msra.mxu0 0.0
  %3151 = vmatprep.subr.mxu0 0.0
  %3152 = vmatpush1.msra.mxu0 0.0
  %3153 = vmatprep.subr.mxu0 0.0
  %3154 = vmatpush1.msra.mxu0 0.0
  %3155 = vmatprep.subr.mxu0 0.0
  %3156 = vmatpush1.msra.mxu0 0.0
  %3157 = vmatprep.subr.mxu0 0.0
  %3158 = vmatpush1.msra.mxu0 0.0
  %3159 = vmatprep.subr.mxu0 0.0
  %3160 = vmatpush1.msra.mxu0 0.0
  %3161 = vmatprep.subr.mxu0 0.0
  %3162 = vmatpush1.msra.mxu0 0.0
  %3163 = vmatprep.subr.mxu0 0.0
  %3164 = vmatpush1.msra.mxu0 0.0
  %3165 = vmatprep.subr.mxu0 0.0
  %3166 = vmatpush1.msra.mxu0 0.0
  %3167 = vmatprep.subr.mxu0 0.0
  %3168 = vmatpush1.msra.mxu0 0.0
  %3169 = vmatprep.subr.mxu0 0.0
  %3170 = vmatpush1.msra.mxu0 0.0
  %3171 = vmatprep.subr.mxu0 0.0
  %3172 = vmatpush1.msra.mxu0 0.0
  %3173 = vmatprep.mubr.f32.mxu0 0.0
  %3174 = vmatmul.mubr.f32.gmra.mrb[0].mxu0 %v2965
  %v3175 = vpop.f32.mrb[0].mxu0
  %v3176 = vadd.f32 0.0, %v3175
  %v3177 = vpop.f32.mrb[0].mxu0
  %v3178 = vadd.f32 0.0, %v3177
  %3179 = vdwg.mxu0
  %v3180 = vadd.f32 %v2798, %v3034
  %v3181 = vadd.f32 %v2800, %v3036
  %v3182 = vadd.f32 %v2869, %v3105
  %v3183 = vadd.f32 %v2871, %v3107
  %v3184 = vadd.f32 %v2940, %v3176
  %v3185 = vadd.f32 %v2942, %v3178
  %3186 = vrot.lane.b32.xlu0 %v2466, 1
  %v3187 = vpop.permute.xlu0 %3186
  %3188 = vrot.lane.b32.xlu0 %v2467, 1
  %v3189 = vpop.permute.xlu0 %3188
  %3190 = vrot.lane.b32.xlu0 %v2468, 1
  %v3191 = vpop.permute.xlu0 %3190
  %3192 = vrot.lane.b32.xlu0 %v2469, 1
  %v3193 = vpop.permute.xlu0 %3192
  %3194 = vrot.lane.b32.xlu0 %v2470, 1
  %v3195 = vpop.permute.xlu0 %3194
  %3196 = vrot.lane.b32.xlu0 %v2471, 1
  %v3197 = vpop.permute.xlu0 %3196
  %v3198 = vsel %vm828, %v3195, %v3197
  %v3199 = vsel %vm828, %v3193, %v3195
  %v3200 = vsel %vm828, %v3191, %v3193
  %v3201 = vsel %vm828, %v3189, %v3191
  %v3202 = vsel %vm828, %v3187, %v3189
  %v3203 = vsel %vm828, %v3197, %v3187
  %s3204 = scalar_lea.vmem %s5, 24
  %v3205 = vld [vmem:[%s3204] sm:$0xff]
  %v3207 = vsel %vm2511, %v3205, 0
  %3209 = vmatprep.subr.mxu0 %v3202
  %3210 = vmatpush1.msra.mxu0 %v3203
  %3211 = vmatprep.subr.mxu0 0.0
  %3212 = vmatpush1.msra.mxu0 0.0
  %3213 = vmatprep.subr.mxu0 0.0
  %3214 = vmatpush1.msra.mxu0 0.0
  %3215 = vmatprep.subr.mxu0 0.0
  %3216 = vmatpush1.msra.mxu0 0.0
  %3217 = vmatprep.subr.mxu0 0.0
  %3218 = vmatpush1.msra.mxu0 0.0
  %3219 = vmatprep.subr.mxu0 0.0
  %3220 = vmatpush1.msra.mxu0 0.0
  %3221 = vmatprep.subr.mxu0 0.0
  %3222 = vmatpush1.msra.mxu0 0.0
  %3223 = vmatprep.subr.mxu0 0.0
  %3224 = vmatpush1.msra.mxu0 0.0
  %3225 = vmatprep.subr.mxu0 0.0
  %3226 = vmatpush1.msra.mxu0 0.0
  %3227 = vmatprep.subr.mxu0 0.0
  %3228 = vmatpush1.msra.mxu0 0.0
  %3229 = vmatprep.subr.mxu0 0.0
  %3230 = vmatpush1.msra.mxu0 0.0
  %3231 = vmatprep.subr.mxu0 0.0
  %3232 = vmatpush1.msra.mxu0 0.0
  %3233 = vmatprep.subr.mxu0 0.0
  %3234 = vmatpush1.msra.mxu0 0.0
  %3235 = vmatprep.subr.mxu0 0.0
  %3236 = vmatpush1.msra.mxu0 0.0
  %3237 = vmatprep.subr.mxu0 0.0
  %3238 = vmatpush1.msra.mxu0 0.0
  %3239 = vmatprep.subr.mxu0 0.0
  %3240 = vmatpush1.msra.mxu0 0.0
  %3241 = vmatprep.subr.mxu0 0.0
  %3242 = vmatpush1.msra.mxu0 0.0
  %3243 = vmatprep.subr.mxu0 0.0
  %3244 = vmatpush1.msra.mxu0 0.0
  %3245 = vmatprep.subr.mxu0 0.0
  %3246 = vmatpush1.msra.mxu0 0.0
  %3247 = vmatprep.subr.mxu0 0.0
  %3248 = vmatpush1.msra.mxu0 0.0
  %3249 = vmatprep.subr.mxu0 0.0
  %3250 = vmatpush1.msra.mxu0 0.0
  %3251 = vmatprep.subr.mxu0 0.0
  %3252 = vmatpush1.msra.mxu0 0.0
  %3253 = vmatprep.subr.mxu0 0.0
  %3254 = vmatpush1.msra.mxu0 0.0
  %3255 = vmatprep.subr.mxu0 0.0
  %3256 = vmatpush1.msra.mxu0 0.0
  %3257 = vmatprep.subr.mxu0 0.0
  %3258 = vmatpush1.msra.mxu0 0.0
  %3259 = vmatprep.subr.mxu0 0.0
  %3260 = vmatpush1.msra.mxu0 0.0
  %3261 = vmatprep.subr.mxu0 0.0
  %3262 = vmatpush1.msra.mxu0 0.0
  %3263 = vmatprep.subr.mxu0 0.0
  %3264 = vmatpush1.msra.mxu0 0.0
  %3265 = vmatprep.subr.mxu0 0.0
  %3266 = vmatpush1.msra.mxu0 0.0
  %3267 = vmatprep.subr.mxu0 0.0
  %3268 = vmatpush1.msra.mxu0 0.0
  %3269 = vmatprep.subr.mxu0 0.0
  %3270 = vmatpush1.msra.mxu0 0.0
  %3271 = vmatprep.subr.mxu0 0.0
  %3272 = vmatpush1.msra.mxu0 0.0
  %3273 = vmatprep.mubr.f32.mxu0 0.0
  %3274 = vmatmul.mubr.f32.gmra.mrb[0].mxu0 %v3207
  %v3275 = vpop.f32.mrb[0].mxu0
  %v3276 = vadd.f32 0.0, %v3275
  %v3277 = vpop.f32.mrb[0].mxu0
  %v3278 = vadd.f32 0.0, %v3277
  %3279 = vdwg.mxu0
  %3280 = vmatprep.subr.mxu0 %v3200
  %3281 = vmatpush1.msra.mxu0 %v3201
  %3282 = vmatprep.subr.mxu0 0.0
  %3283 = vmatpush1.msra.mxu0 0.0
  %3284 = vmatprep.subr.mxu0 0.0
  %3285 = vmatpush1.msra.mxu0 0.0
  %3286 = vmatprep.subr.mxu0 0.0
  %3287 = vmatpush1.msra.mxu0 0.0
  %3288 = vmatprep.subr.mxu0 0.0
  %3289 = vmatpush1.msra.mxu0 0.0
  %3290 = vmatprep.subr.mxu0 0.0
  %3291 = vmatpush1.msra.mxu0 0.0
  %3292 = vmatprep.subr.mxu0 0.0
  %3293 = vmatpush1.msra.mxu0 0.0
  %3294 = vmatprep.subr.mxu0 0.0
  %3295 = vmatpush1.msra.mxu0 0.0
  %3296 = vmatprep.subr.mxu0 0.0
  %3297 = vmatpush1.msra.mxu0 0.0
  %3298 = vmatprep.subr.mxu0 0.0
  %3299 = vmatpush1.msra.mxu0 0.0
  %3300 = vmatprep.subr.mxu0 0.0
  %3301 = vmatpush1.msra.mxu0 0.0
  %3302 = vmatprep.subr.mxu0 0.0
  %3303 = vmatpush1.msra.mxu0 0.0
  %3304 = vmatprep.subr.mxu0 0.0
  %3305 = vmatpush1.msra.mxu0 0.0
  %3306 = vmatprep.subr.mxu0 0.0
  %3307 = vmatpush1.msra.mxu0 0.0
  %3308 = vmatprep.subr.mxu0 0.0
  %3309 = vmatpush1.msra.mxu0 0.0
  %3310 = vmatprep.subr.mxu0 0.0
  %3311 = vmatpush1.msra.mxu0 0.0
  %3312 = vmatprep.subr.mxu0 0.0
  %3313 = vmatpush1.msra.mxu0 0.0
  %3314 = vmatprep.subr.mxu0 0.0
  %3315 = vmatpush1.msra.mxu0 0.0
  %3316 = vmatprep.subr.mxu0 0.0
  %3317 = vmatpush1.msra.mxu0 0.0
  %3318 = vmatprep.subr.mxu0 0.0
  %3319 = vmatpush1.msra.mxu0 0.0
  %3320 = vmatprep.subr.mxu0 0.0
  %3321 = vmatpush1.msra.mxu0 0.0
  %3322 = vmatprep.subr.mxu0 0.0
  %3323 = vmatpush1.msra.mxu0 0.0
  %3324 = vmatprep.subr.mxu0 0.0
  %3325 = vmatpush1.msra.mxu0 0.0
  %3326 = vmatprep.subr.mxu0 0.0
  %3327 = vmatpush1.msra.mxu0 0.0
  %3328 = vmatprep.subr.mxu0 0.0
  %3329 = vmatpush1.msra.mxu0 0.0
  %3330 = vmatprep.subr.mxu0 0.0
  %3331 = vmatpush1.msra.mxu0 0.0
  %3332 = vmatprep.subr.mxu0 0.0
  %3333 = vmatpush1.msra.mxu0 0.0
  %3334 = vmatprep.subr.mxu0 0.0
  %3335 = vmatpush1.msra.mxu0 0.0
  %3336 = vmatprep.subr.mxu0 0.0
  %3337 = vmatpush1.msra.mxu0 0.0
  %3338 = vmatprep.subr.mxu0 0.0
  %3339 = vmatpush1.msra.mxu0 0.0
  %3340 = vmatprep.subr.mxu0 0.0
  %3341 = vmatpush1.msra.mxu0 0.0
  %3342 = vmatprep.subr.mxu0 0.0
  %3343 = vmatpush1.msra.mxu0 0.0
  %3344 = vmatprep.mubr.f32.mxu0 0.0
  %3345 = vmatmul.mubr.f32.gmra.mrb[0].mxu0 %v3207
  %v3346 = vpop.f32.mrb[0].mxu0
  %v3347 = vadd.f32 0.0, %v3346
  %v3348 = vpop.f32.mrb[0].mxu0
  %v3349 = vadd.f32 0.0, %v3348
  %3350 = vdwg.mxu0
  %3351 = vmatprep.subr.mxu0 %v3198
  %3352 = vmatpush1.msra.mxu0 %v3199
  %3353 = vmatprep.subr.mxu0 0.0
  %3354 = vmatpush1.msra.mxu0 0.0
  %3355 = vmatprep.subr.mxu0 0.0
  %3356 = vmatpush1.msra.mxu0 0.0
  %3357 = vmatprep.subr.mxu0 0.0
  %3358 = vmatpush1.msra.mxu0 0.0
  %3359 = vmatprep.subr.mxu0 0.0
  %3360 = vmatpush1.msra.mxu0 0.0
  %3361 = vmatprep.subr.mxu0 0.0
  %3362 = vmatpush1.msra.mxu0 0.0
  %3363 = vmatprep.subr.mxu0 0.0
  %3364 = vmatpush1.msra.mxu0 0.0
  %3365 = vmatprep.subr.mxu0 0.0
  %3366 = vmatpush1.msra.mxu0 0.0
  %3367 = vmatprep.subr.mxu0 0.0
  %3368 = vmatpush1.msra.mxu0 0.0
  %3369 = vmatprep.subr.mxu0 0.0
  %3370 = vmatpush1.msra.mxu0 0.0
  %3371 = vmatprep.subr.mxu0 0.0
  %3372 = vmatpush1.msra.mxu0 0.0
  %3373 = vmatprep.subr.mxu0 0.0
  %3374 = vmatpush1.msra.mxu0 0.0
  %3375 = vmatprep.subr.mxu0 0.0
  %3376 = vmatpush1.msra.mxu0 0.0
  %3377 = vmatprep.subr.mxu0 0.0
  %3378 = vmatpush1.msra.mxu0 0.0
  %3379 = vmatprep.subr.mxu0 0.0
  %3380 = vmatpush1.msra.mxu0 0.0
  %3381 = vmatprep.subr.mxu0 0.0
  %3382 = vmatpush1.msra.mxu0 0.0
  %3383 = vmatprep.subr.mxu0 0.0
  %3384 = vmatpush1.msra.mxu0 0.0
  %3385 = vmatprep.subr.mxu0 0.0
  %3386 = vmatpush1.msra.mxu0 0.0
  %3387 = vmatprep.subr.mxu0 0.0
  %3388 = vmatpush1.msra.mxu0 0.0
  %3389 = vmatprep.subr.mxu0 0.0
  %3390 = vmatpush1.msra.mxu0 0.0
  %3391 = vmatprep.subr.mxu0 0.0
  %3392 = vmatpush1.msra.mxu0 0.0
  %3393 = vmatprep.subr.mxu0 0.0
  %3394 = vmatpush1.msra.mxu0 0.0
  %3395 = vmatprep.subr.mxu0 0.0
  %3396 = vmatpush1.msra.mxu0 0.0
  %3397 = vmatprep.subr.mxu0 0.0
  %3398 = vmatpush1.msra.mxu0 0.0
  %3399 = vmatprep.subr.mxu0 0.0
  %3400 = vmatpush1.msra.mxu0 0.0
  %3401 = vmatprep.subr.mxu0 0.0
  %3402 = vmatpush1.msra.mxu0 0.0
  %3403 = vmatprep.subr.mxu0 0.0
  %3404 = vmatpush1.msra.mxu0 0.0
  %3405 = vmatprep.subr.mxu0 0.0
  %3406 = vmatpush1.msra.mxu0 0.0
  %3407 = vmatprep.subr.mxu0 0.0
  %3408 = vmatpush1.msra.mxu0 0.0
  %3409 = vmatprep.subr.mxu0 0.0
  %3410 = vmatpush1.msra.mxu0 0.0
  %3411 = vmatprep.subr.mxu0 0.0
  %3412 = vmatpush1.msra.mxu0 0.0
  %3413 = vmatprep.subr.mxu0 0.0
  %3414 = vmatpush1.msra.mxu0 0.0
  %3415 = vmatprep.mubr.f32.mxu0 0.0
  %3416 = vmatmul.mubr.f32.gmra.mrb[0].mxu0 %v3207
  %v3417 = vpop.f32.mrb[0].mxu0
  %v3418 = vadd.f32 0.0, %v3417
  %v3419 = vpop.f32.mrb[0].mxu0
  %v3420 = vadd.f32 0.0, %v3419
  %3421 = vdwg.mxu0
  %v3422 = vadd.f32 %v3180, %v3276
  %v3423 = vadd.f32 %v3181, %v3278
  %v3424 = vadd.f32 %v3182, %v3347
  %v3425 = vadd.f32 %v3183, %v3349
  %v3426 = vadd.f32 %v3184, %v3418
  %v3427 = vadd.f32 %v3185, %v3420
  %s3428 = scalar_lea.vmem %s5, 32
  %v3429 = vld [vmem:[%s3428] sm:$0xff]
  %v3431 = vsel %vm2511, %v3429, 0
  %3433 = vmatprep.subr.mxu0 %v2467
  %3434 = vmatpush1.msra.mxu0 %v2466
  %3435 = vmatprep.subr.mxu0 0.0
  %3436 = vmatpush1.msra.mxu0 0.0
  %3437 = vmatprep.subr.mxu0 0.0
  %3438 = vmatpush1.msra.mxu0 0.0
  %3439 = vmatprep.subr.mxu0 0.0
  %3440 = vmatpush1.msra.mxu0 0.0
  %3441 = vmatprep.subr.mxu0 0.0
  %3442 = vmatpush1.msra.mxu0 0.0
  %3443 = vmatprep.subr.mxu0 0.0
  %3444 = vmatpush1.msra.mxu0 0.0
  %3445 = vmatprep.subr.mxu0 0.0
  %3446 = vmatpush1.msra.mxu0 0.0
  %3447 = vmatprep.subr.mxu0 0.0
  %3448 = vmatpush1.msra.mxu0 0.0
  %3449 = vmatprep.subr.mxu0 0.0
  %3450 = vmatpush1.msra.mxu0 0.0
  %3451 = vmatprep.subr.mxu0 0.0
  %3452 = vmatpush1.msra.mxu0 0.0
  %3453 = vmatprep.subr.mxu0 0.0
  %3454 = vmatpush1.msra.mxu0 0.0
  %3455 = vmatprep.subr.mxu0 0.0
  %3456 = vmatpush1.msra.mxu0 0.0
  %3457 = vmatprep.subr.mxu0 0.0
  %3458 = vmatpush1.msra.mxu0 0.0
  %3459 = vmatprep.subr.mxu0 0.0
  %3460 = vmatpush1.msra.mxu0 0.0
  %3461 = vmatprep.subr.mxu0 0.0
  %3462 = vmatpush1.msra.mxu0 0.0
  %3463 = vmatprep.subr.mxu0 0.0
  %3464 = vmatpush1.msra.mxu0 0.0
  %3465 = vmatprep.subr.mxu0 0.0
  %3466 = vmatpush1.msra.mxu0 0.0
  %3467 = vmatprep.subr.mxu0 0.0
  %3468 = vmatpush1.msra.mxu0 0.0
  %3469 = vmatprep.subr.mxu0 0.0
  %3470 = vmatpush1.msra.mxu0 0.0
  %3471 = vmatprep.subr.mxu0 0.0
  %3472 = vmatpush1.msra.mxu0 0.0
  %3473 = vmatprep.subr.mxu0 0.0
  %3474 = vmatpush1.msra.mxu0 0.0
  %3475 = vmatprep.subr.mxu0 0.0
  %3476 = vmatpush1.msra.mxu0 0.0
  %3477 = vmatprep.subr.mxu0 0.0
  %3478 = vmatpush1.msra.mxu0 0.0
  %3479 = vmatprep.subr.mxu0 0.0
  %3480 = vmatpush1.msra.mxu0 0.0
  %3481 = vmatprep.subr.mxu0 0.0
  %3482 = vmatpush1.msra.mxu0 0.0
  %3483 = vmatprep.subr.mxu0 0.0
  %3484 = vmatpush1.msra.mxu0 0.0
  %3485 = vmatprep.subr.mxu0 0.0
  %3486 = vmatpush1.msra.mxu0 0.0
  %3487 = vmatprep.subr.mxu0 0.0
  %3488 = vmatpush1.msra.mxu0 0.0
  %3489 = vmatprep.subr.mxu0 0.0
  %3490 = vmatpush1.msra.mxu0 0.0
  %3491 = vmatprep.subr.mxu0 0.0
  %3492 = vmatpush1.msra.mxu0 0.0
  %3493 = vmatprep.subr.mxu0 0.0
  %3494 = vmatpush1.msra.mxu0 0.0
  %3495 = vmatprep.subr.mxu0 0.0
  %3496 = vmatpush1.msra.mxu0 0.0
  %3497 = vmatprep.mubr.f32.mxu0 0.0
  %3498 = vmatmul.mubr.f32.gmra.mrb[0].mxu0 %v3431
  %v3499 = vpop.f32.mrb[0].mxu0
  %v3500 = vadd.f32 0.0, %v3499
  %v3501 = vpop.f32.mrb[0].mxu0
  %v3502 = vadd.f32 0.0, %v3501
  %3503 = vdwg.mxu0
  %3504 = vmatprep.subr.mxu0 %v2469
  %3505 = vmatpush1.msra.mxu0 %v2468
  %3506 = vmatprep.subr.mxu0 0.0
  %3507 = vmatpush1.msra.mxu0 0.0
  %3508 = vmatprep.subr.mxu0 0.0
  %3509 = vmatpush1.msra.mxu0 0.0
  %3510 = vmatprep.subr.mxu0 0.0
  %3511 = vmatpush1.msra.mxu0 0.0
  %3512 = vmatprep.subr.mxu0 0.0
  %3513 = vmatpush1.msra.mxu0 0.0
  %3514 = vmatprep.subr.mxu0 0.0
  %3515 = vmatpush1.msra.mxu0 0.0
  %3516 = vmatprep.subr.mxu0 0.0
  %3517 = vmatpush1.msra.mxu0 0.0
  %3518 = vmatprep.subr.mxu0 0.0
  %3519 = vmatpush1.msra.mxu0 0.0
  %3520 = vmatprep.subr.mxu0 0.0
  %3521 = vmatpush1.msra.mxu0 0.0
  %3522 = vmatprep.subr.mxu0 0.0
  %3523 = vmatpush1.msra.mxu0 0.0
  %3524 = vmatprep.subr.mxu0 0.0
  %3525 = vmatpush1.msra.mxu0 0.0
  %3526 = vmatprep.subr.mxu0 0.0
  %3527 = vmatpush1.msra.mxu0 0.0
  %3528 = vmatprep.subr.mxu0 0.0
  %3529 = vmatpush1.msra.mxu0 0.0
  %3530 = vmatprep.subr.mxu0 0.0
  %3531 = vmatpush1.msra.mxu0 0.0
  %3532 = vmatprep.subr.mxu0 0.0
  %3533 = vmatpush1.msra.mxu0 0.0
  %3534 = vmatprep.subr.mxu0 0.0
  %3535 = vmatpush1.msra.mxu0 0.0
  %3536 = vmatprep.subr.mxu0 0.0
  %3537 = vmatpush1.msra.mxu0 0.0
  %3538 = vmatprep.subr.mxu0 0.0
  %3539 = vmatpush1.msra.mxu0 0.0
  %3540 = vmatprep.subr.mxu0 0.0
  %3541 = vmatpush1.msra.mxu0 0.0
  %3542 = vmatprep.subr.mxu0 0.0
  %3543 = vmatpush1.msra.mxu0 0.0
  %3544 = vmatprep.subr.mxu0 0.0
  %3545 = vmatpush1.msra.mxu0 0.0
  %3546 = vmatprep.subr.mxu0 0.0
  %3547 = vmatpush1.msra.mxu0 0.0
  %3548 = vmatprep.subr.mxu0 0.0
  %3549 = vmatpush1.msra.mxu0 0.0
  %3550 = vmatprep.subr.mxu0 0.0
  %3551 = vmatpush1.msra.mxu0 0.0
  %3552 = vmatprep.subr.mxu0 0.0
  %3553 = vmatpush1.msra.mxu0 0.0
  %3554 = vmatprep.subr.mxu0 0.0
  %3555 = vmatpush1.msra.mxu0 0.0
  %3556 = vmatprep.subr.mxu0 0.0
  %3557 = vmatpush1.msra.mxu0 0.0
  %3558 = vmatprep.subr.mxu0 0.0
  %3559 = vmatpush1.msra.mxu0 0.0
  %3560 = vmatprep.subr.mxu0 0.0
  %3561 = vmatpush1.msra.mxu0 0.0
  %3562 = vmatprep.subr.mxu0 0.0
  %3563 = vmatpush1.msra.mxu0 0.0
  %3564 = vmatprep.subr.mxu0 0.0
  %3565 = vmatpush1.msra.mxu0 0.0
  %3566 = vmatprep.subr.mxu0 0.0
  %3567 = vmatpush1.msra.mxu0 0.0
  %3568 = vmatprep.mubr.f32.mxu0 0.0
  %3569 = vmatmul.mubr.f32.gmra.mrb[0].mxu0 %v3431
  %v3570 = vpop.f32.mrb[0].mxu0
  %v3571 = vadd.f32 0.0, %v3570
  %v3572 = vpop.f32.mrb[0].mxu0
  %v3573 = vadd.f32 0.0, %v3572
  %3574 = vdwg.mxu0
  %3575 = vmatprep.subr.mxu0 %v2471
  %3576 = vmatpush1.msra.mxu0 %v2470
  %3577 = vmatprep.subr.mxu0 0.0
  %3578 = vmatpush1.msra.mxu0 0.0
  %3579 = vmatprep.subr.mxu0 0.0
  %3580 = vmatpush1.msra.mxu0 0.0
  %3581 = vmatprep.subr.mxu0 0.0
  %3582 = vmatpush1.msra.mxu0 0.0
  %3583 = vmatprep.subr.mxu0 0.0
  %3584 = vmatpush1.msra.mxu0 0.0
  %3585 = vmatprep.subr.mxu0 0.0
  %3586 = vmatpush1.msra.mxu0 0.0
  %3587 = vmatprep.subr.mxu0 0.0
  %3588 = vmatpush1.msra.mxu0 0.0
  %3589 = vmatprep.subr.mxu0 0.0
  %3590 = vmatpush1.msra.mxu0 0.0
  %3591 = vmatprep.subr.mxu0 0.0
  %3592 = vmatpush1.msra.mxu0 0.0
  %3593 = vmatprep.subr.mxu0 0.0
  %3594 = vmatpush1.msra.mxu0 0.0
  %3595 = vmatprep.subr.mxu0 0.0
  %3596 = vmatpush1.msra.mxu0 0.0
  %3597 = vmatprep.subr.mxu0 0.0
  %3598 = vmatpush1.msra.mxu0 0.0
  %3599 = vmatprep.subr.mxu0 0.0
  %3600 = vmatpush1.msra.mxu0 0.0
  %3601 = vmatprep.subr.mxu0 0.0
  %3602 = vmatpush1.msra.mxu0 0.0
  %3603 = vmatprep.subr.mxu0 0.0
  %3604 = vmatpush1.msra.mxu0 0.0
  %3605 = vmatprep.subr.mxu0 0.0
  %3606 = vmatpush1.msra.mxu0 0.0
  %3607 = vmatprep.subr.mxu0 0.0
  %3608 = vmatpush1.msra.mxu0 0.0
  %3609 = vmatprep.subr.mxu0 0.0
  %3610 = vmatpush1.msra.mxu0 0.0
  %3611 = vmatprep.subr.mxu0 0.0
  %3612 = vmatpush1.msra.mxu0 0.0
  %3613 = vmatprep.subr.mxu0 0.0
  %3614 = vmatpush1.msra.mxu0 0.0
  %3615 = vmatprep.subr.mxu0 0.0
  %3616 = vmatpush1.msra.mxu0 0.0
  %3617 = vmatprep.subr.mxu0 0.0
  %3618 = vmatpush1.msra.mxu0 0.0
  %3619 = vmatprep.subr.mxu0 0.0
  %3620 = vmatpush1.msra.mxu0 0.0
  %3621 = vmatprep.subr.mxu0 0.0
  %3622 = vmatpush1.msra.mxu0 0.0
  %3623 = vmatprep.subr.mxu0 0.0
  %3624 = vmatpush1.msra.mxu0 0.0
  %3625 = vmatprep.subr.mxu0 0.0
  %3626 = vmatpush1.msra.mxu0 0.0
  %3627 = vmatprep.subr.mxu0 0.0
  %3628 = vmatpush1.msra.mxu0 0.0
  %3629 = vmatprep.subr.mxu0 0.0
  %3630 = vmatpush1.msra.mxu0 0.0
  %3631 = vmatprep.subr.mxu0 0.0
  %3632 = vmatpush1.msra.mxu0 0.0
  %3633 = vmatprep.subr.mxu0 0.0
  %3634 = vmatpush1.msra.mxu0 0.0
  %3635 = vmatprep.subr.mxu0 0.0
  %3636 = vmatpush1.msra.mxu0 0.0
  %3637 = vmatprep.subr.mxu0 0.0
  %3638 = vmatpush1.msra.mxu0 0.0
  %3639 = vmatprep.mubr.f32.mxu0 0.0
  %3640 = vmatmul.mubr.f32.gmra.mrb[0].mxu0 %v3431
  %v3641 = vpop.f32.mrb[0].mxu0
  %v3642 = vadd.f32 0.0, %v3641
  %v3643 = vpop.f32.mrb[0].mxu0
  %v3644 = vadd.f32 0.0, %v3643
  %3645 = vdwg.mxu0
  %v3646 = vadd.f32 %v3422, %v3500
  %v3647 = vadd.f32 %v3423, %v3502
  %v3648 = vadd.f32 %v3424, %v3571
  %v3649 = vadd.f32 %v3425, %v3573
  %v3650 = vadd.f32 %v3426, %v3642
  %v3651 = vadd.f32 %v3427, %v3644
  %3652 = vrot.lane.b32.xlu0 %v2466, 127
  %v3653 = vpop.permute.xlu0 %3652
  %3654 = vrot.lane.b32.xlu0 %v2467, 127
  %v3655 = vpop.permute.xlu0 %3654
  %3656 = vrot.lane.b32.xlu0 %v2468, 127
  %v3657 = vpop.permute.xlu0 %3656
  %3658 = vrot.lane.b32.xlu0 %v2469, 127
  %v3659 = vpop.permute.xlu0 %3658
  %3660 = vrot.lane.b32.xlu0 %v2470, 127
  %v3661 = vpop.permute.xlu0 %3660
  %3662 = vrot.lane.b32.xlu0 %v2471, 127
  %v3663 = vpop.permute.xlu0 %3662
  %v3664 = vsel %vm1325, %v3661, %v3663
  %v3665 = vsel %vm1325, %v3659, %v3661
  %v3666 = vsel %vm1325, %v3657, %v3659
  %v3667 = vsel %vm1325, %v3655, %v3657
  %v3668 = vsel %vm1325, %v3653, %v3655
  %v3669 = vsel %vm1325, %v3663, %v3653
  %s3670 = scalar_lea.vmem %s5, 40
  %v3671 = vld [vmem:[%s3670] sm:$0xff]
  %v3673 = vsel %vm2511, %v3671, 0
  %3675 = vmatprep.subr.mxu0 %v3667
  %3676 = vmatpush1.msra.mxu0 %v3668
  %3677 = vmatprep.subr.mxu0 0.0
  %3678 = vmatpush1.msra.mxu0 0.0
  %3679 = vmatprep.subr.mxu0 0.0
  %3680 = vmatpush1.msra.mxu0 0.0
  %3681 = vmatprep.subr.mxu0 0.0
  %3682 = vmatpush1.msra.mxu0 0.0
  %3683 = vmatprep.subr.mxu0 0.0
  %3684 = vmatpush1.msra.mxu0 0.0
  %3685 = vmatprep.subr.mxu0 0.0
  %3686 = vmatpush1.msra.mxu0 0.0
  %3687 = vmatprep.subr.mxu0 0.0
  %3688 = vmatpush1.msra.mxu0 0.0
  %3689 = vmatprep.subr.mxu0 0.0
  %3690 = vmatpush1.msra.mxu0 0.0
  %3691 = vmatprep.subr.mxu0 0.0
  %3692 = vmatpush1.msra.mxu0 0.0
  %3693 = vmatprep.subr.mxu0 0.0
  %3694 = vmatpush1.msra.mxu0 0.0
  %3695 = vmatprep.subr.mxu0 0.0
  %3696 = vmatpush1.msra.mxu0 0.0
  %3697 = vmatprep.subr.mxu0 0.0
  %3698 = vmatpush1.msra.mxu0 0.0
  %3699 = vmatprep.subr.mxu0 0.0
  %3700 = vmatpush1.msra.mxu0 0.0
  %3701 = vmatprep.subr.mxu0 0.0
  %3702 = vmatpush1.msra.mxu0 0.0
  %3703 = vmatprep.subr.mxu0 0.0
  %3704 = vmatpush1.msra.mxu0 0.0
  %3705 = vmatprep.subr.mxu0 0.0
  %3706 = vmatpush1.msra.mxu0 0.0
  %3707 = vmatprep.subr.mxu0 0.0
  %3708 = vmatpush1.msra.mxu0 0.0
  %3709 = vmatprep.subr.mxu0 0.0
  %3710 = vmatpush1.msra.mxu0 0.0
  %3711 = vmatprep.subr.mxu0 0.0
  %3712 = vmatpush1.msra.mxu0 0.0
  %3713 = vmatprep.subr.mxu0 0.0
  %3714 = vmatpush1.msra.mxu0 0.0
  %3715 = vmatprep.subr.mxu0 0.0
  %3716 = vmatpush1.msra.mxu0 0.0
  %3717 = vmatprep.subr.mxu0 0.0
  %3718 = vmatpush1.msra.mxu0 0.0
  %3719 = vmatprep.subr.mxu0 0.0
  %3720 = vmatpush1.msra.mxu0 0.0
  %3721 = vmatprep.subr.mxu0 0.0
  %3722 = vmatpush1.msra.mxu0 0.0
  %3723 = vmatprep.subr.mxu0 0.0
  %3724 = vmatpush1.msra.mxu0 0.0
  %3725 = vmatprep.subr.mxu0 0.0
  %3726 = vmatpush1.msra.mxu0 0.0
  %3727 = vmatprep.subr.mxu0 0.0
  %3728 = vmatpush1.msra.mxu0 0.0
  %3729 = vmatprep.subr.mxu0 0.0
  %3730 = vmatpush1.msra.mxu0 0.0
  %3731 = vmatprep.subr.mxu0 0.0
  %3732 = vmatpush1.msra.mxu0 0.0
  %3733 = vmatprep.subr.mxu0 0.0
  %3734 = vmatpush1.msra.mxu0 0.0
  %3735 = vmatprep.subr.mxu0 0.0
  %3736 = vmatpush1.msra.mxu0 0.0
  %3737 = vmatprep.subr.mxu0 0.0
  %3738 = vmatpush1.msra.mxu0 0.0
  %3739 = vmatprep.mubr.f32.mxu0 0.0
  %3740 = vmatmul.mubr.f32.gmra.mrb[0].mxu0 %v3673
  %v3741 = vpop.f32.mrb[0].mxu0
  %v3742 = vadd.f32 0.0, %v3741
  %v3743 = vpop.f32.mrb[0].mxu0
  %v3744 = vadd.f32 0.0, %v3743
  %3745 = vdwg.mxu0
  %3746 = vmatprep.subr.mxu0 %v3665
  %3747 = vmatpush1.msra.mxu0 %v3666
  %3748 = vmatprep.subr.mxu0 0.0
  %3749 = vmatpush1.msra.mxu0 0.0
  %3750 = vmatprep.subr.mxu0 0.0
  %3751 = vmatpush1.msra.mxu0 0.0
  %3752 = vmatprep.subr.mxu0 0.0
  %3753 = vmatpush1.msra.mxu0 0.0
  %3754 = vmatprep.subr.mxu0 0.0
  %3755 = vmatpush1.msra.mxu0 0.0
  %3756 = vmatprep.subr.mxu0 0.0
  %3757 = vmatpush1.msra.mxu0 0.0
  %3758 = vmatprep.subr.mxu0 0.0
  %3759 = vmatpush1.msra.mxu0 0.0
  %3760 = vmatprep.subr.mxu0 0.0
  %3761 = vmatpush1.msra.mxu0 0.0
  %3762 = vmatprep.subr.mxu0 0.0
  %3763 = vmatpush1.msra.mxu0 0.0
  %3764 = vmatprep.subr.mxu0 0.0
  %3765 = vmatpush1.msra.mxu0 0.0
  %3766 = vmatprep.subr.mxu0 0.0
  %3767 = vmatpush1.msra.mxu0 0.0
  %3768 = vmatprep.subr.mxu0 0.0
  %3769 = vmatpush1.msra.mxu0 0.0
  %3770 = vmatprep.subr.mxu0 0.0
  %3771 = vmatpush1.msra.mxu0 0.0
  %3772 = vmatprep.subr.mxu0 0.0
  %3773 = vmatpush1.msra.mxu0 0.0
  %3774 = vmatprep.subr.mxu0 0.0
  %3775 = vmatpush1.msra.mxu0 0.0
  %3776 = vmatprep.subr.mxu0 0.0
  %3777 = vmatpush1.msra.mxu0 0.0
  %3778 = vmatprep.subr.mxu0 0.0
  %3779 = vmatpush1.msra.mxu0 0.0
  %3780 = vmatprep.subr.mxu0 0.0
  %3781 = vmatpush1.msra.mxu0 0.0
  %3782 = vmatprep.subr.mxu0 0.0
  %3783 = vmatpush1.msra.mxu0 0.0
  %3784 = vmatprep.subr.mxu0 0.0
  %3785 = vmatpush1.msra.mxu0 0.0
  %3786 = vmatprep.subr.mxu0 0.0
  %3787 = vmatpush1.msra.mxu0 0.0
  %3788 = vmatprep.subr.mxu0 0.0
  %3789 = vmatpush1.msra.mxu0 0.0
  %3790 = vmatprep.subr.mxu0 0.0
  %3791 = vmatpush1.msra.mxu0 0.0
  %3792 = vmatprep.subr.mxu0 0.0
  %3793 = vmatpush1.msra.mxu0 0.0
  %3794 = vmatprep.subr.mxu0 0.0
  %3795 = vmatpush1.msra.mxu0 0.0
  %3796 = vmatprep.subr.mxu0 0.0
  %3797 = vmatpush1.msra.mxu0 0.0
  %3798 = vmatprep.subr.mxu0 0.0
  %3799 = vmatpush1.msra.mxu0 0.0
  %3800 = vmatprep.subr.mxu0 0.0
  %3801 = vmatpush1.msra.mxu0 0.0
  %3802 = vmatprep.subr.mxu0 0.0
  %3803 = vmatpush1.msra.mxu0 0.0
  %3804 = vmatprep.subr.mxu0 0.0
  %3805 = vmatpush1.msra.mxu0 0.0
  %3806 = vmatprep.subr.mxu0 0.0
  %3807 = vmatpush1.msra.mxu0 0.0
  %3808 = vmatprep.subr.mxu0 0.0
  %3809 = vmatpush1.msra.mxu0 0.0
  %3810 = vmatprep.mubr.f32.mxu0 0.0
  %3811 = vmatmul.mubr.f32.gmra.mrb[0].mxu0 %v3673
  %v3812 = vpop.f32.mrb[0].mxu0
  %v3813 = vadd.f32 0.0, %v3812
  %v3814 = vpop.f32.mrb[0].mxu0
  %v3815 = vadd.f32 0.0, %v3814
  %3816 = vdwg.mxu0
  %3817 = vmatprep.subr.mxu0 %v3669
  %3818 = vmatpush1.msra.mxu0 %v3664
  %3819 = vmatprep.subr.mxu0 0.0
  %3820 = vmatpush1.msra.mxu0 0.0
  %3821 = vmatprep.subr.mxu0 0.0
  %3822 = vmatpush1.msra.mxu0 0.0
  %3823 = vmatprep.subr.mxu0 0.0
  %3824 = vmatpush1.msra.mxu0 0.0
  %3825 = vmatprep.subr.mxu0 0.0
  %3826 = vmatpush1.msra.mxu0 0.0
  %3827 = vmatprep.subr.mxu0 0.0
  %3828 = vmatpush1.msra.mxu0 0.0
  %3829 = vmatprep.subr.mxu0 0.0
  %3830 = vmatpush1.msra.mxu0 0.0
  %3831 = vmatprep.subr.mxu0 0.0
  %3832 = vmatpush1.msra.mxu0 0.0
  %3833 = vmatprep.subr.mxu0 0.0
  %3834 = vmatpush1.msra.mxu0 0.0
  %3835 = vmatprep.subr.mxu0 0.0
  %3836 = vmatpush1.msra.mxu0 0.0
  %3837 = vmatprep.subr.mxu0 0.0
  %3838 = vmatpush1.msra.mxu0 0.0
  %3839 = vmatprep.subr.mxu0 0.0
  %3840 = vmatpush1.msra.mxu0 0.0
  %3841 = vmatprep.subr.mxu0 0.0
  %3842 = vmatpush1.msra.mxu0 0.0
  %3843 = vmatprep.subr.mxu0 0.0
  %3844 = vmatpush1.msra.mxu0 0.0
  %3845 = vmatprep.subr.mxu0 0.0
  %3846 = vmatpush1.msra.mxu0 0.0
  %3847 = vmatprep.subr.mxu0 0.0
  %3848 = vmatpush1.msra.mxu0 0.0
  %3849 = vmatprep.subr.mxu0 0.0
  %3850 = vmatpush1.msra.mxu0 0.0
  %3851 = vmatprep.subr.mxu0 0.0
  %3852 = vmatpush1.msra.mxu0 0.0
  %3853 = vmatprep.subr.mxu0 0.0
  %3854 = vmatpush1.msra.mxu0 0.0
  %3855 = vmatprep.subr.mxu0 0.0
  %3856 = vmatpush1.msra.mxu0 0.0
  %3857 = vmatprep.subr.mxu0 0.0
  %3858 = vmatpush1.msra.mxu0 0.0
  %3859 = vmatprep.subr.mxu0 0.0
  %3860 = vmatpush1.msra.mxu0 0.0
  %3861 = vmatprep.subr.mxu0 0.0
  %3862 = vmatpush1.msra.mxu0 0.0
  %3863 = vmatprep.subr.mxu0 0.0
  %3864 = vmatpush1.msra.mxu0 0.0
  %3865 = vmatprep.subr.mxu0 0.0
  %3866 = vmatpush1.msra.mxu0 0.0
  %3867 = vmatprep.subr.mxu0 0.0
  %3868 = vmatpush1.msra.mxu0 0.0
  %3869 = vmatprep.subr.mxu0 0.0
  %3870 = vmatpush1.msra.mxu0 0.0
  %3871 = vmatprep.subr.mxu0 0.0
  %3872 = vmatpush1.msra.mxu0 0.0
  %3873 = vmatprep.subr.mxu0 0.0
  %3874 = vmatpush1.msra.mxu0 0.0
  %3875 = vmatprep.subr.mxu0 0.0
  %3876 = vmatpush1.msra.mxu0 0.0
  %3877 = vmatprep.subr.mxu0 0.0
  %3878 = vmatpush1.msra.mxu0 0.0
  %3879 = vmatprep.subr.mxu0 0.0
  %3880 = vmatpush1.msra.mxu0 0.0
  %3881 = vmatprep.mubr.f32.mxu0 0.0
  %3882 = vmatmul.mubr.f32.gmra.mrb[0].mxu0 %v3673
  %v3883 = vpop.f32.mrb[0].mxu0
  %v3884 = vadd.f32 0.0, %v3883
  %v3885 = vpop.f32.mrb[0].mxu0
  %v3886 = vadd.f32 0.0, %v3885
  %3887 = vdwg.mxu0
  %v3888 = vadd.f32 %v3646, %v3742
  %v3889 = vadd.f32 %v3647, %v3744
  %v3890 = vadd.f32 %v3648, %v3813
  %v3891 = vadd.f32 %v3649, %v3815
  %v3892 = vadd.f32 %v3650, %v3884
  %v3893 = vadd.f32 %v3651, %v3886
  %3894 = vrot.lane.b32.xlu0 %v2466, 111
  %v3895 = vpop.permute.xlu0 %3894
  %3896 = vrot.lane.b32.xlu0 %v2467, 111
  %v3897 = vpop.permute.xlu0 %3896
  %3898 = vrot.lane.b32.xlu0 %v2468, 111
  %v3899 = vpop.permute.xlu0 %3898
  %3900 = vrot.lane.b32.xlu0 %v2469, 111
  %v3901 = vpop.permute.xlu0 %3900
  %3902 = vrot.lane.b32.xlu0 %v2470, 111
  %v3903 = vpop.permute.xlu0 %3902
  %3904 = vrot.lane.b32.xlu0 %v2471, 111
  %v3905 = vpop.permute.xlu0 %3904
  %v3906 = vsel %vm1586, %v3903, %v3905
  %v3907 = vsel %vm1586, %v3901, %v3903
  %v3908 = vsel %vm1586, %v3899, %v3901
  %v3909 = vsel %vm1586, %v3897, %v3899
  %v3910 = vsel %vm1586, %v3895, %v3897
  %v3911 = vsel %vm1586, %v3905, %v3895
  %s3912 = scalar_lea.vmem %s5, 48
  %v3913 = vld [vmem:[%s3912] sm:$0xff]
  %v3915 = vsel %vm2511, %v3913, 0
  %3917 = vmatprep.subr.mxu0 %v3909
  %3918 = vmatpush1.msra.mxu0 %v3910
  %3919 = vmatprep.subr.mxu0 0.0
  %3920 = vmatpush1.msra.mxu0 0.0
  %3921 = vmatprep.subr.mxu0 0.0
  %3922 = vmatpush1.msra.mxu0 0.0
  %3923 = vmatprep.subr.mxu0 0.0
  %3924 = vmatpush1.msra.mxu0 0.0
  %3925 = vmatprep.subr.mxu0 0.0
  %3926 = vmatpush1.msra.mxu0 0.0
  %3927 = vmatprep.subr.mxu0 0.0
  %3928 = vmatpush1.msra.mxu0 0.0
  %3929 = vmatprep.subr.mxu0 0.0
  %3930 = vmatpush1.msra.mxu0 0.0
  %3931 = vmatprep.subr.mxu0 0.0
  %3932 = vmatpush1.msra.mxu0 0.0
  %3933 = vmatprep.subr.mxu0 0.0
  %3934 = vmatpush1.msra.mxu0 0.0
  %3935 = vmatprep.subr.mxu0 0.0
  %3936 = vmatpush1.msra.mxu0 0.0
  %3937 = vmatprep.subr.mxu0 0.0
  %3938 = vmatpush1.msra.mxu0 0.0
  %3939 = vmatprep.subr.mxu0 0.0
  %3940 = vmatpush1.msra.mxu0 0.0
  %3941 = vmatprep.subr.mxu0 0.0
  %3942 = vmatpush1.msra.mxu0 0.0
  %3943 = vmatprep.subr.mxu0 0.0
  %3944 = vmatpush1.msra.mxu0 0.0
  %3945 = vmatprep.subr.mxu0 0.0
  %3946 = vmatpush1.msra.mxu0 0.0
  %3947 = vmatprep.subr.mxu0 0.0
  %3948 = vmatpush1.msra.mxu0 0.0
  %3949 = vmatprep.subr.mxu0 0.0
  %3950 = vmatpush1.msra.mxu0 0.0
  %3951 = vmatprep.subr.mxu0 0.0
  %3952 = vmatpush1.msra.mxu0 0.0
  %3953 = vmatprep.subr.mxu0 0.0
  %3954 = vmatpush1.msra.mxu0 0.0
  %3955 = vmatprep.subr.mxu0 0.0
  %3956 = vmatpush1.msra.mxu0 0.0
  %3957 = vmatprep.subr.mxu0 0.0
  %3958 = vmatpush1.msra.mxu0 0.0
  %3959 = vmatprep.subr.mxu0 0.0
  %3960 = vmatpush1.msra.mxu0 0.0
  %3961 = vmatprep.subr.mxu0 0.0
  %3962 = vmatpush1.msra.mxu0 0.0
  %3963 = vmatprep.subr.mxu0 0.0
  %3964 = vmatpush1.msra.mxu0 0.0
  %3965 = vmatprep.subr.mxu0 0.0
  %3966 = vmatpush1.msra.mxu0 0.0
  %3967 = vmatprep.subr.mxu0 0.0
  %3968 = vmatpush1.msra.mxu0 0.0
  %3969 = vmatprep.subr.mxu0 0.0
  %3970 = vmatpush1.msra.mxu0 0.0
  %3971 = vmatprep.subr.mxu0 0.0
  %3972 = vmatpush1.msra.mxu0 0.0
  %3973 = vmatprep.subr.mxu0 0.0
  %3974 = vmatpush1.msra.mxu0 0.0
  %3975 = vmatprep.subr.mxu0 0.0
  %3976 = vmatpush1.msra.mxu0 0.0
  %3977 = vmatprep.subr.mxu0 0.0
  %3978 = vmatpush1.msra.mxu0 0.0
  %3979 = vmatprep.subr.mxu0 0.0
  %3980 = vmatpush1.msra.mxu0 0.0
  %3981 = vmatprep.mubr.f32.mxu0 0.0
  %3982 = vmatmul.mubr.f32.gmra.mrb[0].mxu0 %v3915
  %v3983 = vpop.f32.mrb[0].mxu0
  %v3984 = vadd.f32 0.0, %v3983
  %v3985 = vpop.f32.mrb[0].mxu0
  %v3986 = vadd.f32 0.0, %v3985
  %3987 = vdwg.mxu0
  %3988 = vmatprep.subr.mxu0 %v3907
  %3989 = vmatpush1.msra.mxu0 %v3908
  %3990 = vmatprep.subr.mxu0 0.0
  %3991 = vmatpush1.msra.mxu0 0.0
  %3992 = vmatprep.subr.mxu0 0.0
  %3993 = vmatpush1.msra.mxu0 0.0
  %3994 = vmatprep.subr.mxu0 0.0
  %3995 = vmatpush1.msra.mxu0 0.0
  %3996 = vmatprep.subr.mxu0 0.0
  %3997 = vmatpush1.msra.mxu0 0.0
  %3998 = vmatprep.subr.mxu0 0.0
  %3999 = vmatpush1.msra.mxu0 0.0
  %4000 = vmatprep.subr.mxu0 0.0
  %4001 = vmatpush1.msra.mxu0 0.0
  %4002 = vmatprep.subr.mxu0 0.0
  %4003 = vmatpush1.msra.mxu0 0.0
  %4004 = vmatprep.subr.mxu0 0.0
  %4005 = vmatpush1.msra.mxu0 0.0
  %4006 = vmatprep.subr.mxu0 0.0
  %4007 = vmatpush1.msra.mxu0 0.0
  %4008 = vmatprep.subr.mxu0 0.0
  %4009 = vmatpush1.msra.mxu0 0.0
  %4010 = vmatprep.subr.mxu0 0.0
  %4011 = vmatpush1.msra.mxu0 0.0
  %4012 = vmatprep.subr.mxu0 0.0
  %4013 = vmatpush1.msra.mxu0 0.0
  %4014 = vmatprep.subr.mxu0 0.0
  %4015 = vmatpush1.msra.mxu0 0.0
  %4016 = vmatprep.subr.mxu0 0.0
  %4017 = vmatpush1.msra.mxu0 0.0
  %4018 = vmatprep.subr.mxu0 0.0
  %4019 = vmatpush1.msra.mxu0 0.0
  %4020 = vmatprep.subr.mxu0 0.0
  %4021 = vmatpush1.msra.mxu0 0.0
  %4022 = vmatprep.subr.mxu0 0.0
  %4023 = vmatpush1.msra.mxu0 0.0
  %4024 = vmatprep.subr.mxu0 0.0
  %4025 = vmatpush1.msra.mxu0 0.0
  %4026 = vmatprep.subr.mxu0 0.0
  %4027 = vmatpush1.msra.mxu0 0.0
  %4028 = vmatprep.subr.mxu0 0.0
  %4029 = vmatpush1.msra.mxu0 0.0
  %4030 = vmatprep.subr.mxu0 0.0
  %4031 = vmatpush1.msra.mxu0 0.0
  %4032 = vmatprep.subr.mxu0 0.0
  %4033 = vmatpush1.msra.mxu0 0.0
  %4034 = vmatprep.subr.mxu0 0.0
  %4035 = vmatpush1.msra.mxu0 0.0
  %4036 = vmatprep.subr.mxu0 0.0
  %4037 = vmatpush1.msra.mxu0 0.0
  %4038 = vmatprep.subr.mxu0 0.0
  %4039 = vmatpush1.msra.mxu0 0.0
  %4040 = vmatprep.subr.mxu0 0.0
  %4041 = vmatpush1.msra.mxu0 0.0
  %4042 = vmatprep.subr.mxu0 0.0
  %4043 = vmatpush1.msra.mxu0 0.0
  %4044 = vmatprep.subr.mxu0 0.0
  %4045 = vmatpush1.msra.mxu0 0.0
  %4046 = vmatprep.subr.mxu0 0.0
  %4047 = vmatpush1.msra.mxu0 0.0
  %4048 = vmatprep.subr.mxu0 0.0
  %4049 = vmatpush1.msra.mxu0 0.0
  %4050 = vmatprep.subr.mxu0 0.0
  %4051 = vmatpush1.msra.mxu0 0.0
  %4052 = vmatprep.mubr.f32.mxu0 0.0
  %4053 = vmatmul.mubr.f32.gmra.mrb[0].mxu0 %v3915
  %v4054 = vpop.f32.mrb[0].mxu0
  %v4055 = vadd.f32 0.0, %v4054
  %v4056 = vpop.f32.mrb[0].mxu0
  %v4057 = vadd.f32 0.0, %v4056
  %4058 = vdwg.mxu0
  %4059 = vmatprep.subr.mxu0 %v3911
  %4060 = vmatpush1.msra.mxu0 %v3906
  %4061 = vmatprep.subr.mxu0 0.0
  %4062 = vmatpush1.msra.mxu0 0.0
  %4063 = vmatprep.subr.mxu0 0.0
  %4064 = vmatpush1.msra.mxu0 0.0
  %4065 = vmatprep.subr.mxu0 0.0
  %4066 = vmatpush1.msra.mxu0 0.0
  %4067 = vmatprep.subr.mxu0 0.0
  %4068 = vmatpush1.msra.mxu0 0.0
  %4069 = vmatprep.subr.mxu0 0.0
  %4070 = vmatpush1.msra.mxu0 0.0
  %4071 = vmatprep.subr.mxu0 0.0
  %4072 = vmatpush1.msra.mxu0 0.0
  %4073 = vmatprep.subr.mxu0 0.0
  %4074 = vmatpush1.msra.mxu0 0.0
  %4075 = vmatprep.subr.mxu0 0.0
  %4076 = vmatpush1.msra.mxu0 0.0
  %4077 = vmatprep.subr.mxu0 0.0
  %4078 = vmatpush1.msra.mxu0 0.0
  %4079 = vmatprep.subr.mxu0 0.0
  %4080 = vmatpush1.msra.mxu0 0.0
  %4081 = vmatprep.subr.mxu0 0.0
  %4082 = vmatpush1.msra.mxu0 0.0
  %4083 = vmatprep.subr.mxu0 0.0
  %4084 = vmatpush1.msra.mxu0 0.0
  %4085 = vmatprep.subr.mxu0 0.0
  %4086 = vmatpush1.msra.mxu0 0.0
  %4087 = vmatprep.subr.mxu0 0.0
  %4088 = vmatpush1.msra.mxu0 0.0
  %4089 = vmatprep.subr.mxu0 0.0
  %4090 = vmatpush1.msra.mxu0 0.0
  %4091 = vmatprep.subr.mxu0 0.0
  %4092 = vmatpush1.msra.mxu0 0.0
  %4093 = vmatprep.subr.mxu0 0.0
  %4094 = vmatpush1.msra.mxu0 0.0
  %4095 = vmatprep.subr.mxu0 0.0
  %4096 = vmatpush1.msra.mxu0 0.0
  %4097 = vmatprep.subr.mxu0 0.0
  %4098 = vmatpush1.msra.mxu0 0.0
  %4099 = vmatprep.subr.mxu0 0.0
  %4100 = vmatpush1.msra.mxu0 0.0
  %4101 = vmatprep.subr.mxu0 0.0
  %4102 = vmatpush1.msra.mxu0 0.0
  %4103 = vmatprep.subr.mxu0 0.0
  %4104 = vmatpush1.msra.mxu0 0.0
  %4105 = vmatprep.subr.mxu0 0.0
  %4106 = vmatpush1.msra.mxu0 0.0
  %4107 = vmatprep.subr.mxu0 0.0
  %4108 = vmatpush1.msra.mxu0 0.0
  %4109 = vmatprep.subr.mxu0 0.0
  %4110 = vmatpush1.msra.mxu0 0.0
  %4111 = vmatprep.subr.mxu0 0.0
  %4112 = vmatpush1.msra.mxu0 0.0
  %4113 = vmatprep.subr.mxu0 0.0
  %4114 = vmatpush1.msra.mxu0 0.0
  %4115 = vmatprep.subr.mxu0 0.0
  %4116 = vmatpush1.msra.mxu0 0.0
  %4117 = vmatprep.subr.mxu0 0.0
  %4118 = vmatpush1.msra.mxu0 0.0
  %4119 = vmatprep.subr.mxu0 0.0
  %4120 = vmatpush1.msra.mxu0 0.0
  %4121 = vmatprep.subr.mxu0 0.0
  %4122 = vmatpush1.msra.mxu0 0.0
  %4123 = vmatprep.mubr.f32.mxu0 0.0
  %4124 = vmatmul.mubr.f32.gmra.mrb[0].mxu0 %v3915
  %v4125 = vpop.f32.mrb[0].mxu0
  %v4126 = vadd.f32 0.0, %v4125
  %v4127 = vpop.f32.mrb[0].mxu0
  %v4128 = vadd.f32 0.0, %v4127
  %4129 = vdwg.mxu0
  %v4130 = vadd.f32 %v3888, %v3984
  %v4131 = vadd.f32 %v3889, %v3986
  %v4132 = vadd.f32 %v3890, %v4055
  %v4133 = vadd.f32 %v3891, %v4057
  %v4134 = vadd.f32 %v3892, %v4126
  %v4135 = vadd.f32 %v3893, %v4128
  %4136 = vrot.lane.b32.xlu0 %v2466, 110
  %v4137 = vpop.permute.xlu0 %4136
  %4138 = vrot.lane.b32.xlu0 %v2467, 110
  %v4139 = vpop.permute.xlu0 %4138
  %4140 = vrot.lane.b32.xlu0 %v2468, 110
  %v4141 = vpop.permute.xlu0 %4140
  %4142 = vrot.lane.b32.xlu0 %v2469, 110
  %v4143 = vpop.permute.xlu0 %4142
  %4144 = vrot.lane.b32.xlu0 %v2470, 110
  %v4145 = vpop.permute.xlu0 %4144
  %4146 = vrot.lane.b32.xlu0 %v2471, 110
  %v4147 = vpop.permute.xlu0 %4146
  %v4148 = vsel %vm1847, %v4145, %v4147
  %v4149 = vsel %vm1847, %v4143, %v4145
  %v4150 = vsel %vm1847, %v4141, %v4143
  %v4151 = vsel %vm1847, %v4139, %v4141
  %v4152 = vsel %vm1847, %v4137, %v4139
  %v4153 = vsel %vm1847, %v4147, %v4137
  %s4154 = scalar_lea.vmem %s5, 56
  %v4155 = vld [vmem:[%s4154] sm:$0xff]
  %v4157 = vsel %vm2511, %v4155, 0
  %4159 = vmatprep.subr.mxu0 %v4151
  %4160 = vmatpush1.msra.mxu0 %v4152
  %4161 = vmatprep.subr.mxu0 0.0
  %4162 = vmatpush1.msra.mxu0 0.0
  %4163 = vmatprep.subr.mxu0 0.0
  %4164 = vmatpush1.msra.mxu0 0.0
  %4165 = vmatprep.subr.mxu0 0.0
  %4166 = vmatpush1.msra.mxu0 0.0
  %4167 = vmatprep.subr.mxu0 0.0
  %4168 = vmatpush1.msra.mxu0 0.0
  %4169 = vmatprep.subr.mxu0 0.0
  %4170 = vmatpush1.msra.mxu0 0.0
  %4171 = vmatprep.subr.mxu0 0.0
  %4172 = vmatpush1.msra.mxu0 0.0
  %4173 = vmatprep.subr.mxu0 0.0
  %4174 = vmatpush1.msra.mxu0 0.0
  %4175 = vmatprep.subr.mxu0 0.0
  %4176 = vmatpush1.msra.mxu0 0.0
  %4177 = vmatprep.subr.mxu0 0.0
  %4178 = vmatpush1.msra.mxu0 0.0
  %4179 = vmatprep.subr.mxu0 0.0
  %4180 = vmatpush1.msra.mxu0 0.0
  %4181 = vmatprep.subr.mxu0 0.0
  %4182 = vmatpush1.msra.mxu0 0.0
  %4183 = vmatprep.subr.mxu0 0.0
  %4184 = vmatpush1.msra.mxu0 0.0
  %4185 = vmatprep.subr.mxu0 0.0
  %4186 = vmatpush1.msra.mxu0 0.0
  %4187 = vmatprep.subr.mxu0 0.0
  %4188 = vmatpush1.msra.mxu0 0.0
  %4189 = vmatprep.subr.mxu0 0.0
  %4190 = vmatpush1.msra.mxu0 0.0
  %4191 = vmatprep.subr.mxu0 0.0
  %4192 = vmatpush1.msra.mxu0 0.0
  %4193 = vmatprep.subr.mxu0 0.0
  %4194 = vmatpush1.msra.mxu0 0.0
  %4195 = vmatprep.subr.mxu0 0.0
  %4196 = vmatpush1.msra.mxu0 0.0
  %4197 = vmatprep.subr.mxu0 0.0
  %4198 = vmatpush1.msra.mxu0 0.0
  %4199 = vmatprep.subr.mxu0 0.0
  %4200 = vmatpush1.msra.mxu0 0.0
  %4201 = vmatprep.subr.mxu0 0.0
  %4202 = vmatpush1.msra.mxu0 0.0
  %4203 = vmatprep.subr.mxu0 0.0
  %4204 = vmatpush1.msra.mxu0 0.0
  %4205 = vmatprep.subr.mxu0 0.0
  %4206 = vmatpush1.msra.mxu0 0.0
  %4207 = vmatprep.subr.mxu0 0.0
  %4208 = vmatpush1.msra.mxu0 0.0
  %4209 = vmatprep.subr.mxu0 0.0
  %4210 = vmatpush1.msra.mxu0 0.0
  %4211 = vmatprep.subr.mxu0 0.0
  %4212 = vmatpush1.msra.mxu0 0.0
  %4213 = vmatprep.subr.mxu0 0.0
  %4214 = vmatpush1.msra.mxu0 0.0
  %4215 = vmatprep.subr.mxu0 0.0
  %4216 = vmatpush1.msra.mxu0 0.0
  %4217 = vmatprep.subr.mxu0 0.0
  %4218 = vmatpush1.msra.mxu0 0.0
  %4219 = vmatprep.subr.mxu0 0.0
  %4220 = vmatpush1.msra.mxu0 0.0
  %4221 = vmatprep.subr.mxu0 0.0
  %4222 = vmatpush1.msra.mxu0 0.0
  %4223 = vmatprep.mubr.f32.mxu0 0.0
  %4224 = vmatmul.mubr.f32.gmra.mrb[0].mxu0 %v4157
  %v4225 = vpop.f32.mrb[0].mxu0
  %v4226 = vadd.f32 0.0, %v4225
  %v4227 = vpop.f32.mrb[0].mxu0
  %v4228 = vadd.f32 0.0, %v4227
  %4229 = vdwg.mxu0
  %4230 = vmatprep.subr.mxu0 %v4149
  %4231 = vmatpush1.msra.mxu0 %v4150
  %4232 = vmatprep.subr.mxu0 0.0
  %4233 = vmatpush1.msra.mxu0 0.0
  %4234 = vmatprep.subr.mxu0 0.0
  %4235 = vmatpush1.msra.mxu0 0.0
  %4236 = vmatprep.subr.mxu0 0.0
  %4237 = vmatpush1.msra.mxu0 0.0
  %4238 = vmatprep.subr.mxu0 0.0
  %4239 = vmatpush1.msra.mxu0 0.0
  %4240 = vmatprep.subr.mxu0 0.0
  %4241 = vmatpush1.msra.mxu0 0.0
  %4242 = vmatprep.subr.mxu0 0.0
  %4243 = vmatpush1.msra.mxu0 0.0
  %4244 = vmatprep.subr.mxu0 0.0
  %4245 = vmatpush1.msra.mxu0 0.0
  %4246 = vmatprep.subr.mxu0 0.0
  %4247 = vmatpush1.msra.mxu0 0.0
  %4248 = vmatprep.subr.mxu0 0.0
  %4249 = vmatpush1.msra.mxu0 0.0
  %4250 = vmatprep.subr.mxu0 0.0
  %4251 = vmatpush1.msra.mxu0 0.0
  %4252 = vmatprep.subr.mxu0 0.0
  %4253 = vmatpush1.msra.mxu0 0.0
  %4254 = vmatprep.subr.mxu0 0.0
  %4255 = vmatpush1.msra.mxu0 0.0
  %4256 = vmatprep.subr.mxu0 0.0
  %4257 = vmatpush1.msra.mxu0 0.0
  %4258 = vmatprep.subr.mxu0 0.0
  %4259 = vmatpush1.msra.mxu0 0.0
  %4260 = vmatprep.subr.mxu0 0.0
  %4261 = vmatpush1.msra.mxu0 0.0
  %4262 = vmatprep.subr.mxu0 0.0
  %4263 = vmatpush1.msra.mxu0 0.0
  %4264 = vmatprep.subr.mxu0 0.0
  %4265 = vmatpush1.msra.mxu0 0.0
  %4266 = vmatprep.subr.mxu0 0.0
  %4267 = vmatpush1.msra.mxu0 0.0
  %4268 = vmatprep.subr.mxu0 0.0
  %4269 = vmatpush1.msra.mxu0 0.0
  %4270 = vmatprep.subr.mxu0 0.0
  %4271 = vmatpush1.msra.mxu0 0.0
  %4272 = vmatprep.subr.mxu0 0.0
  %4273 = vmatpush1.msra.mxu0 0.0
  %4274 = vmatprep.subr.mxu0 0.0
  %4275 = vmatpush1.msra.mxu0 0.0
  %4276 = vmatprep.subr.mxu0 0.0
  %4277 = vmatpush1.msra.mxu0 0.0
  %4278 = vmatprep.subr.mxu0 0.0
  %4279 = vmatpush1.msra.mxu0 0.0
  %4280 = vmatprep.subr.mxu0 0.0
  %4281 = vmatpush1.msra.mxu0 0.0
  %4282 = vmatprep.subr.mxu0 0.0
  %4283 = vmatpush1.msra.mxu0 0.0
  %4284 = vmatprep.subr.mxu0 0.0
  %4285 = vmatpush1.msra.mxu0 0.0
  %4286 = vmatprep.subr.mxu0 0.0
  %4287 = vmatpush1.msra.mxu0 0.0
  %4288 = vmatprep.subr.mxu0 0.0
  %4289 = vmatpush1.msra.mxu0 0.0
  %4290 = vmatprep.subr.mxu0 0.0
  %4291 = vmatpush1.msra.mxu0 0.0
  %4292 = vmatprep.subr.mxu0 0.0
  %4293 = vmatpush1.msra.mxu0 0.0
  %4294 = vmatprep.mubr.f32.mxu0 0.0
  %4295 = vmatmul.mubr.f32.gmra.mrb[0].mxu0 %v4157
  %v4296 = vpop.f32.mrb[0].mxu0
  %v4297 = vadd.f32 0.0, %v4296
  %v4298 = vpop.f32.mrb[0].mxu0
  %v4299 = vadd.f32 0.0, %v4298
  %4300 = vdwg.mxu0
  %4301 = vmatprep.subr.mxu0 %v4153
  %4302 = vmatpush1.msra.mxu0 %v4148
  %4303 = vmatprep.subr.mxu0 0.0
  %4304 = vmatpush1.msra.mxu0 0.0
  %4305 = vmatprep.subr.mxu0 0.0
  %4306 = vmatpush1.msra.mxu0 0.0
  %4307 = vmatprep.subr.mxu0 0.0
  %4308 = vmatpush1.msra.mxu0 0.0
  %4309 = vmatprep.subr.mxu0 0.0
  %4310 = vmatpush1.msra.mxu0 0.0
  %4311 = vmatprep.subr.mxu0 0.0
  %4312 = vmatpush1.msra.mxu0 0.0
  %4313 = vmatprep.subr.mxu0 0.0
  %4314 = vmatpush1.msra.mxu0 0.0
  %4315 = vmatprep.subr.mxu0 0.0
  %4316 = vmatpush1.msra.mxu0 0.0
  %4317 = vmatprep.subr.mxu0 0.0
  %4318 = vmatpush1.msra.mxu0 0.0
  %4319 = vmatprep.subr.mxu0 0.0
  %4320 = vmatpush1.msra.mxu0 0.0
  %4321 = vmatprep.subr.mxu0 0.0
  %4322 = vmatpush1.msra.mxu0 0.0
  %4323 = vmatprep.subr.mxu0 0.0
  %4324 = vmatpush1.msra.mxu0 0.0
  %4325 = vmatprep.subr.mxu0 0.0
  %4326 = vmatpush1.msra.mxu0 0.0
  %4327 = vmatprep.subr.mxu0 0.0
  %4328 = vmatpush1.msra.mxu0 0.0
  %4329 = vmatprep.subr.mxu0 0.0
  %4330 = vmatpush1.msra.mxu0 0.0
  %4331 = vmatprep.subr.mxu0 0.0
  %4332 = vmatpush1.msra.mxu0 0.0
  %4333 = vmatprep.subr.mxu0 0.0
  %4334 = vmatpush1.msra.mxu0 0.0
  %4335 = vmatprep.subr.mxu0 0.0
  %4336 = vmatpush1.msra.mxu0 0.0
  %4337 = vmatprep.subr.mxu0 0.0
  %4338 = vmatpush1.msra.mxu0 0.0
  %4339 = vmatprep.subr.mxu0 0.0
  %4340 = vmatpush1.msra.mxu0 0.0
  %4341 = vmatprep.subr.mxu0 0.0
  %4342 = vmatpush1.msra.mxu0 0.0
  %4343 = vmatprep.subr.mxu0 0.0
  %4344 = vmatpush1.msra.mxu0 0.0
  %4345 = vmatprep.subr.mxu0 0.0
  %4346 = vmatpush1.msra.mxu0 0.0
  %4347 = vmatprep.subr.mxu0 0.0
  %4348 = vmatpush1.msra.mxu0 0.0
  %4349 = vmatprep.subr.mxu0 0.0
  %4350 = vmatpush1.msra.mxu0 0.0
  %4351 = vmatprep.subr.mxu0 0.0
  %4352 = vmatpush1.msra.mxu0 0.0
  %4353 = vmatprep.subr.mxu0 0.0
  %4354 = vmatpush1.msra.mxu0 0.0
  %4355 = vmatprep.subr.mxu0 0.0
  %4356 = vmatpush1.msra.mxu0 0.0
  %4357 = vmatprep.subr.mxu0 0.0
  %4358 = vmatpush1.msra.mxu0 0.0
  %4359 = vmatprep.subr.mxu0 0.0
  %4360 = vmatpush1.msra.mxu0 0.0
  %4361 = vmatprep.subr.mxu0 0.0
  %4362 = vmatpush1.msra.mxu0 0.0
  %4363 = vmatprep.subr.mxu0 0.0
  %4364 = vmatpush1.msra.mxu0 0.0
  %4365 = vmatprep.mubr.f32.mxu0 0.0
  %4366 = vmatmul.mubr.f32.gmra.mrb[0].mxu0 %v4157
  %v4367 = vpop.f32.mrb[0].mxu0
  %v4368 = vadd.f32 0.0, %v4367
  %v4369 = vpop.f32.mrb[0].mxu0
  %v4370 = vadd.f32 0.0, %v4369
  %4371 = vdwg.mxu0
  %v4372 = vadd.f32 %v4130, %v4226
  %v4373 = vadd.f32 %v4131, %v4228
  %v4374 = vadd.f32 %v4132, %v4297
  %v4375 = vadd.f32 %v4133, %v4299
  %v4376 = vadd.f32 %v4134, %v4368
  %v4377 = vadd.f32 %v4135, %v4370
  %4378 = vrot.lane.b32.xlu0 %v2466, 109
  %v4379 = vpop.permute.xlu0 %4378
  %4380 = vrot.lane.b32.xlu0 %v2467, 109
  %v4381 = vpop.permute.xlu0 %4380
  %4382 = vrot.lane.b32.xlu0 %v2468, 109
  %v4383 = vpop.permute.xlu0 %4382
  %4384 = vrot.lane.b32.xlu0 %v2469, 109
  %v4385 = vpop.permute.xlu0 %4384
  %4386 = vrot.lane.b32.xlu0 %v2470, 109
  %v4387 = vpop.permute.xlu0 %4386
  %4388 = vrot.lane.b32.xlu0 %v2471, 109
  %v4389 = vpop.permute.xlu0 %4388
  %v4390 = vsel %vm2108, %v4387, %v4389
  %v4391 = vsel %vm2108, %v4385, %v4387
  %v4392 = vsel %vm2108, %v4383, %v4385
  %v4393 = vsel %vm2108, %v4381, %v4383
  %v4394 = vsel %vm2108, %v4379, %v4381
  %v4395 = vsel %vm2108, %v4389, %v4379
  %s4396 = scalar_lea.vmem %s5, 64
  %v4397 = vld [vmem:[%s4396] sm:$0xff]
  %v4399 = vsel %vm2511, %v4397, 0
  %4401 = vmatprep.subr.mxu0 %v4393
  %4402 = vmatpush1.msra.mxu0 %v4394
  %4403 = vmatprep.subr.mxu0 0.0
  %4404 = vmatpush1.msra.mxu0 0.0
  %4405 = vmatprep.subr.mxu0 0.0
  %4406 = vmatpush1.msra.mxu0 0.0
  %4407 = vmatprep.subr.mxu0 0.0
  %4408 = vmatpush1.msra.mxu0 0.0
  %4409 = vmatprep.subr.mxu0 0.0
  %4410 = vmatpush1.msra.mxu0 0.0
  %4411 = vmatprep.subr.mxu0 0.0
  %4412 = vmatpush1.msra.mxu0 0.0
  %4413 = vmatprep.subr.mxu0 0.0
  %4414 = vmatpush1.msra.mxu0 0.0
  %4415 = vmatprep.subr.mxu0 0.0
  %4416 = vmatpush1.msra.mxu0 0.0
  %4417 = vmatprep.subr.mxu0 0.0
  %4418 = vmatpush1.msra.mxu0 0.0
  %4419 = vmatprep.subr.mxu0 0.0
  %4420 = vmatpush1.msra.mxu0 0.0
  %4421 = vmatprep.subr.mxu0 0.0
  %4422 = vmatpush1.msra.mxu0 0.0
  %4423 = vmatprep.subr.mxu0 0.0
  %4424 = vmatpush1.msra.mxu0 0.0
  %4425 = vmatprep.subr.mxu0 0.0
  %4426 = vmatpush1.msra.mxu0 0.0
  %4427 = vmatprep.subr.mxu0 0.0
  %4428 = vmatpush1.msra.mxu0 0.0
  %4429 = vmatprep.subr.mxu0 0.0
  %4430 = vmatpush1.msra.mxu0 0.0
  %4431 = vmatprep.subr.mxu0 0.0
  %4432 = vmatpush1.msra.mxu0 0.0
  %4433 = vmatprep.subr.mxu0 0.0
  %4434 = vmatpush1.msra.mxu0 0.0
  %4435 = vmatprep.subr.mxu0 0.0
  %4436 = vmatpush1.msra.mxu0 0.0
  %4437 = vmatprep.subr.mxu0 0.0
  %4438 = vmatpush1.msra.mxu0 0.0
  %4439 = vmatprep.subr.mxu0 0.0
  %4440 = vmatpush1.msra.mxu0 0.0
  %4441 = vmatprep.subr.mxu0 0.0
  %4442 = vmatpush1.msra.mxu0 0.0
  %4443 = vmatprep.subr.mxu0 0.0
  %4444 = vmatpush1.msra.mxu0 0.0
  %4445 = vmatprep.subr.mxu0 0.0
  %4446 = vmatpush1.msra.mxu0 0.0
  %4447 = vmatprep.subr.mxu0 0.0
  %4448 = vmatpush1.msra.mxu0 0.0
  %4449 = vmatprep.subr.mxu0 0.0
  %4450 = vmatpush1.msra.mxu0 0.0
  %4451 = vmatprep.subr.mxu0 0.0
  %4452 = vmatpush1.msra.mxu0 0.0
  %4453 = vmatprep.subr.mxu0 0.0
  %4454 = vmatpush1.msra.mxu0 0.0
  %4455 = vmatprep.subr.mxu0 0.0
  %4456 = vmatpush1.msra.mxu0 0.0
  %4457 = vmatprep.subr.mxu0 0.0
  %4458 = vmatpush1.msra.mxu0 0.0
  %4459 = vmatprep.subr.mxu0 0.0
  %4460 = vmatpush1.msra.mxu0 0.0
  %4461 = vmatprep.subr.mxu0 0.0
  %4462 = vmatpush1.msra.mxu0 0.0
  %4463 = vmatprep.subr.mxu0 0.0
  %4464 = vmatpush1.msra.mxu0 0.0
  %4465 = vmatprep.mubr.f32.mxu0 0.0
  %4466 = vmatmul.mubr.f32.gmra.mrb[0].mxu0 %v4399
  %v4467 = vpop.f32.mrb[0].mxu0
  %v4468 = vadd.f32 0.0, %v4467
  %v4469 = vpop.f32.mrb[0].mxu0
  %v4470 = vadd.f32 0.0, %v4469
  %4471 = vdwg.mxu0
  %4472 = vmatprep.subr.mxu0 %v4391
  %4473 = vmatpush1.msra.mxu0 %v4392
  %4474 = vmatprep.subr.mxu0 0.0
  %4475 = vmatpush1.msra.mxu0 0.0
  %4476 = vmatprep.subr.mxu0 0.0
  %4477 = vmatpush1.msra.mxu0 0.0
  %4478 = vmatprep.subr.mxu0 0.0
  %4479 = vmatpush1.msra.mxu0 0.0
  %4480 = vmatprep.subr.mxu0 0.0
  %4481 = vmatpush1.msra.mxu0 0.0
  %4482 = vmatprep.subr.mxu0 0.0
  %4483 = vmatpush1.msra.mxu0 0.0
  %4484 = vmatprep.subr.mxu0 0.0
  %4485 = vmatpush1.msra.mxu0 0.0
  %4486 = vmatprep.subr.mxu0 0.0
  %4487 = vmatpush1.msra.mxu0 0.0
  %4488 = vmatprep.subr.mxu0 0.0
  %4489 = vmatpush1.msra.mxu0 0.0
  %4490 = vmatprep.subr.mxu0 0.0
  %4491 = vmatpush1.msra.mxu0 0.0
  %4492 = vmatprep.subr.mxu0 0.0
  %4493 = vmatpush1.msra.mxu0 0.0
  %4494 = vmatprep.subr.mxu0 0.0
  %4495 = vmatpush1.msra.mxu0 0.0
  %4496 = vmatprep.subr.mxu0 0.0
  %4497 = vmatpush1.msra.mxu0 0.0
  %4498 = vmatprep.subr.mxu0 0.0
  %4499 = vmatpush1.msra.mxu0 0.0
  %4500 = vmatprep.subr.mxu0 0.0
  %4501 = vmatpush1.msra.mxu0 0.0
  %4502 = vmatprep.subr.mxu0 0.0
  %4503 = vmatpush1.msra.mxu0 0.0
  %4504 = vmatprep.subr.mxu0 0.0
  %4505 = vmatpush1.msra.mxu0 0.0
  %4506 = vmatprep.subr.mxu0 0.0
  %4507 = vmatpush1.msra.mxu0 0.0
  %4508 = vmatprep.subr.mxu0 0.0
  %4509 = vmatpush1.msra.mxu0 0.0
  %4510 = vmatprep.subr.mxu0 0.0
  %4511 = vmatpush1.msra.mxu0 0.0
  %4512 = vmatprep.subr.mxu0 0.0
  %4513 = vmatpush1.msra.mxu0 0.0
  %4514 = vmatprep.subr.mxu0 0.0
  %4515 = vmatpush1.msra.mxu0 0.0
  %4516 = vmatprep.subr.mxu0 0.0
  %4517 = vmatpush1.msra.mxu0 0.0
  %4518 = vmatprep.subr.mxu0 0.0
  %4519 = vmatpush1.msra.mxu0 0.0
  %4520 = vmatprep.subr.mxu0 0.0
  %4521 = vmatpush1.msra.mxu0 0.0
  %4522 = vmatprep.subr.mxu0 0.0
  %4523 = vmatpush1.msra.mxu0 0.0
  %4524 = vmatprep.subr.mxu0 0.0
  %4525 = vmatpush1.msra.mxu0 0.0
  %4526 = vmatprep.subr.mxu0 0.0
  %4527 = vmatpush1.msra.mxu0 0.0
  %4528 = vmatprep.subr.mxu0 0.0
  %4529 = vmatpush1.msra.mxu0 0.0
  %4530 = vmatprep.subr.mxu0 0.0
  %4531 = vmatpush1.msra.mxu0 0.0
  %4532 = vmatprep.subr.mxu0 0.0
  %4533 = vmatpush1.msra.mxu0 0.0
  %4534 = vmatprep.subr.mxu0 0.0
  %4535 = vmatpush1.msra.mxu0 0.0
  %4536 = vmatprep.mubr.f32.mxu0 0.0
  %4537 = vmatmul.mubr.f32.gmra.mrb[0].mxu0 %v4399
  %v4538 = vpop.f32.mrb[0].mxu0
  %v4539 = vadd.f32 0.0, %v4538
  %v4540 = vpop.f32.mrb[0].mxu0
  %v4541 = vadd.f32 0.0, %v4540
  %4542 = vdwg.mxu0
  %4543 = vmatprep.subr.mxu0 %v4395
  %4544 = vmatpush1.msra.mxu0 %v4390
  %4545 = vmatprep.subr.mxu0 0.0
  %4546 = vmatpush1.msra.mxu0 0.0
  %4547 = vmatprep.subr.mxu0 0.0
  %4548 = vmatpush1.msra.mxu0 0.0
  %4549 = vmatprep.subr.mxu0 0.0
  %4550 = vmatpush1.msra.mxu0 0.0
  %4551 = vmatprep.subr.mxu0 0.0
  %4552 = vmatpush1.msra.mxu0 0.0
  %4553 = vmatprep.subr.mxu0 0.0
  %4554 = vmatpush1.msra.mxu0 0.0
  %4555 = vmatprep.subr.mxu0 0.0
  %4556 = vmatpush1.msra.mxu0 0.0
  %4557 = vmatprep.subr.mxu0 0.0
  %4558 = vmatpush1.msra.mxu0 0.0
  %4559 = vmatprep.subr.mxu0 0.0
  %4560 = vmatpush1.msra.mxu0 0.0
  %4561 = vmatprep.subr.mxu0 0.0
  %4562 = vmatpush1.msra.mxu0 0.0
  %4563 = vmatprep.subr.mxu0 0.0
  %4564 = vmatpush1.msra.mxu0 0.0
  %4565 = vmatprep.subr.mxu0 0.0
  %4566 = vmatpush1.msra.mxu0 0.0
  %4567 = vmatprep.subr.mxu0 0.0
  %4568 = vmatpush1.msra.mxu0 0.0
  %4569 = vmatprep.subr.mxu0 0.0
  %4570 = vmatpush1.msra.mxu0 0.0
  %4571 = vmatprep.subr.mxu0 0.0
  %4572 = vmatpush1.msra.mxu0 0.0
  %4573 = vmatprep.subr.mxu0 0.0
  %4574 = vmatpush1.msra.mxu0 0.0
  %4575 = vmatprep.subr.mxu0 0.0
  %4576 = vmatpush1.msra.mxu0 0.0
  %4577 = vmatprep.subr.mxu0 0.0
  %4578 = vmatpush1.msra.mxu0 0.0
  %4579 = vmatprep.subr.mxu0 0.0
  %4580 = vmatpush1.msra.mxu0 0.0
  %4581 = vmatprep.subr.mxu0 0.0
  %4582 = vmatpush1.msra.mxu0 0.0
  %4583 = vmatprep.subr.mxu0 0.0
  %4584 = vmatpush1.msra.mxu0 0.0
  %4585 = vmatprep.subr.mxu0 0.0
  %4586 = vmatpush1.msra.mxu0 0.0
  %4587 = vmatprep.subr.mxu0 0.0
  %4588 = vmatpush1.msra.mxu0 0.0
  %4589 = vmatprep.subr.mxu0 0.0
  %4590 = vmatpush1.msra.mxu0 0.0
  %4591 = vmatprep.subr.mxu0 0.0
  %4592 = vmatpush1.msra.mxu0 0.0
  %4593 = vmatprep.subr.mxu0 0.0
  %4594 = vmatpush1.msra.mxu0 0.0
  %4595 = vmatprep.subr.mxu0 0.0
  %4596 = vmatpush1.msra.mxu0 0.0
  %4597 = vmatprep.subr.mxu0 0.0
  %4598 = vmatpush1.msra.mxu0 0.0
  %4599 = vmatprep.subr.mxu0 0.0
  %4600 = vmatpush1.msra.mxu0 0.0
  %4601 = vmatprep.subr.mxu0 0.0
  %4602 = vmatpush1.msra.mxu0 0.0
  %4603 = vmatprep.subr.mxu0 0.0
  %4604 = vmatpush1.msra.mxu0 0.0
  %4605 = vmatprep.subr.mxu0 0.0
  %4606 = vmatpush1.msra.mxu0 0.0
  %4607 = vmatprep.mubr.f32.mxu0 0.0
  %4608 = vmatmul.mubr.f32.gmra.mrb[0].mxu0 %v4399
  %v4609 = vpop.f32.mrb[0].mxu0
  %v4610 = vadd.f32 0.0, %v4609
  %v4611 = vpop.f32.mrb[0].mxu0
  %v4612 = vadd.f32 0.0, %v4611
  %4613 = vdwg.mxu0
  %v4614 = vadd.f32 %v4372, %v4468
  %v4615 = vadd.f32 %v4373, %v4470
  %v4616 = vadd.f32 %v4374, %v4539
  %v4617 = vadd.f32 %v4375, %v4541
  %v4618 = vadd.f32 %v4376, %v4610
  %v4619 = vadd.f32 %v4377, %v4612
  %v4620 = vld [vmem:[%s6] sm:$0xff]
  %v4621 = vld [vmem:[%s7] sm:$0xff]
  %v4622 = vmul.f32 %v4614, %v2363
  %v4623 = vmul.f32 %v4615, %v2367
  %v4624 = vmul.f32 %v4616, %v2371
  %v4625 = vmul.f32 %v4617, %v2375
  %v4626 = vmul.f32 %v4618, %v2379
  %v4627 = vmul.f32 %v4619, %v2383
  %v4628 = vadd.f32 %v4622, %v4623
  %v4629 = vadd.f32 %v4628, %v4624
  %v4630 = vadd.f32 %v4629, %v4625
  %v4631 = vadd.f32 %v4630, %v4626
  %v4632 = vadd.f32 %v4631, %v4627
  %4633 = vadd.xlane.f32.xlu0 %v4632
  %v4634 = vpop.xlane.xlu0 %4633
  %v4635 = vmul.f32 %v4634, 0.001953125
  %v4636 = vsub.f32 %v4614, %v4635
  %v4637 = vsub.f32 %v4615, %v4635
  %v4638 = vsub.f32 %v4616, %v4635
  %v4639 = vsub.f32 %v4617, %v4635
  %v4640 = vsub.f32 %v4618, %v4635
  %v4641 = vsub.f32 %v4619, %v4635
  %v4642 = vmul.f32 %v4636, %v2363
  %v4643 = vmul.f32 %v4637, %v2367
  %v4644 = vmul.f32 %v4638, %v2371
  %v4645 = vmul.f32 %v4639, %v2375
  %v4646 = vmul.f32 %v4640, %v2379
  %v4647 = vmul.f32 %v4641, %v2383
  %v4648 = vmul.f32 %v4642, %v4642
  %v4649 = vmul.f32 %v4643, %v4643
  %v4650 = vmul.f32 %v4644, %v4644
  %v4651 = vmul.f32 %v4645, %v4645
  %v4652 = vmul.f32 %v4646, %v4646
  %v4653 = vmul.f32 %v4647, %v4647
  %v4654 = vadd.f32 %v4648, %v4649
  %v4655 = vadd.f32 %v4654, %v4650
  %v4656 = vadd.f32 %v4655, %v4651
  %v4657 = vadd.f32 %v4656, %v4652
  %v4658 = vadd.f32 %v4657, %v4653
  %4659 = vadd.xlane.f32.xlu0 %v4658
  %v4660 = vpop.xlane.xlu0 %4659
  %v4661 = vmul.f32 %v4660, 0.001953125
  %v4662 = vadd.f32 %v4661, 1e-05
  %v4663 = vrsqrt.pop %v4662
  %v4664 = vmul.f32 %v4636, %v4663
  %v4665 = vmul.f32 %v4637, %v4663
  %v4666 = vmul.f32 %v4638, %v4663
  %v4667 = vmul.f32 %v4639, %v4663
  %v4668 = vmul.f32 %v4640, %v4663
  %v4669 = vmul.f32 %v4641, %v4663
  %4671 = vset.pattern.permute.xlu0 0
  %4672 = vperm.xlu0 %4671, %v4620
  %v4673 = vpop.permute.xlu0 %4672
  %v4675 = vmul.f32 %v4664, %v4673
  %v4676 = vmul.f32 %v4665, %v4673
  %v4677 = vmul.f32 %v4666, %v4673
  %v4678 = vmul.f32 %v4667, %v4673
  %v4679 = vmul.f32 %v4668, %v4673
  %v4680 = vmul.f32 %v4669, %v4673
  %4682 = vset.pattern.permute.xlu0 0
  %4683 = vperm.xlu0 %4682, %v4621
  %v4684 = vpop.permute.xlu0 %4683
  %v4686 = vadd.f32 %v4675, %v4684
  %v4687 = vadd.f32 %v4676, %v4684
  %v4688 = vadd.f32 %v4677, %v4684
  %v4689 = vadd.f32 %v4678, %v4684
  %v4690 = vadd.f32 %v4679, %v4684
  %v4691 = vadd.f32 %v4680, %v4684
  %v4692 = vmax.f32 %v4686, 0.0
  %v4693 = vmax.f32 %v4687, 0.0
  %v4694 = vmax.f32 %v4688, 0.0
  %v4695 = vmax.f32 %v4689, 0.0
  %v4696 = vmax.f32 %v4690, 0.0
  %v4697 = vmax.f32 %v4691, 0.0
  %v4698 = vmul.f32 %v4692, %v2363
  %v4699 = vmul.f32 %v4693, %v2367
  %v4700 = vmul.f32 %v4694, %v2371
  %v4701 = vmul.f32 %v4695, %v2375
  %v4702 = vmul.f32 %v4696, %v2379
  %v4703 = vmul.f32 %v4697, %v2383
  %4704 = vst [vmem:[%s8] sm:$0xff] %v4698
  %4705 = vst [vmem:[%s8 + $0x8] sm:$0xff] %v4699
  %4706 = vst [vmem:[%s8 + $0x10] sm:$0xff] %v4700
  %4707 = vst [vmem:[%s8 + $0x18] sm:$0xff] %v4701
  %4708 = vst [vmem:[%s8 + $0x20] sm:$0xff] %v4702
  %4709 = vst [vmem:[%s8 + $0x28] sm:$0xff] %v4703
  // Predicated region
  $region34: #{unet_block_forward.1} parent=0 // pred_check
    _
  $region35: #{unet_block_forward.1} parent=0 // pred_check_branch
    %4711 = sbr.rel (0) target = $region37
  $region36: #{unet_block_forward.1} parent=0 // pred_region
    _
  $region37: #{unet_block_forward.1} parent=0 // pred_fallthru
    _
  // Predicated region
  $region38: #{unet_block_forward.1} parent=0 // pred_check
    _
  $region39: #{unet_block_forward.1} parent=0 // pred_check_branch
    %4713 = sbr.rel (0) target = $region41
  $region40: #{unet_block_forward.1} parent=0 // pred_region
    _
  $region41: #{unet_block_forward.1} parent=0 // pred_fallthru
    _

</llo_original>
